<compile_context>
chip_gen: v7x
topology: tpu7x:2x2x1
jax: 0.10.0
libtpu: 0.0.40
codegen_flags: <defaults>
</compile_context>

<pallas_src>
import functools

import numpy as np
import jax
import jax.numpy as jnp
from jax import lax
from jax.experimental import pallas as pl
from jax.experimental.pallas import tpu as pltpu


def _round_up(x, m):
    return (x + m - 1) // m * m


def _basic_block_kernel(xph_ref, w1_ref, b1_ref, w2_ref, b2_ref, *rest,
                        stride, Ho, Wo, Hph, project):
    """One grid step == one batch element.

    xph_ref : (1, s*s*Hph, Wph, Cin_p)  stride-phase-decomposed, zero-padded x (bf16)
    w1_ref  : (9*Cin_p, Cout_p)         conv1 weight, BN1 scale folded in (bf16)
    b1_ref  : (1, Cout_p)               folded BN1 bias (f32)
    w2_ref  : (9*Cout_p, Cout_p)        conv2 weight, BN2 scale folded in (bf16)
    b2_ref  : (1, Cout_p)               folded BN2 bias (f32)
    [ws_ref : (Cin_p, Cout_p)           1x1 shortcut weight, BN_s scale folded (bf16)]
    [bs_ref : (1, Cout_p)               folded BN_s bias (f32)]
    o_ref   : (1, Ho*Wo, Cout_p)        block output (f32)
    p1_scr  : (Ho*Wo, 9*Cin_p)          conv1 im2col patches (VMEM scratch)
    y1pad_scr: (Ho+2, Wpad, Cout_p)     zero-bordered conv1 output (VMEM scratch)
    p2_scr  : (Ho*Wo, 9*Cout_p)         conv2 im2col patches (VMEM scratch)
    """
    if project:
        ws_ref, bs_ref, o_ref, p1_scr, y1pad_scr, p2_scr = rest
    else:
        o_ref, p1_scr, y1pad_scr, p2_scr = rest
        ws_ref = bs_ref = None

    Cin_p = xph_ref.shape[-1]
    Cout_p = o_ref.shape[-1]
    cdt = p1_scr.dtype                      # compute dtype (bf16)

    # ---- conv1 (3x3, stride s): build the (Ho*Wo, 9*Cin_p) patch matrix in VMEM
    # from the phase-decomposed padded input (unit-stride slices only), then one
    # deep-K matmul on the MXU.  BN1 scale is already folded into w1.
    for dy in range(3):
        for dx in range(3):
            t = dy * 3 + dx
            p = (dy % stride) * stride + (dx % stride)
            rs = p * Hph + dy // stride
            cs = dx // stride
            patch = xph_ref[0, rs:rs + Ho, cs:cs + Wo, :]
            p1_scr[:, t * Cin_p:(t + 1) * Cin_p] = patch.reshape(Ho * Wo, Cin_p)

    y1 = jnp.dot(p1_scr[...], w1_ref[...], preferred_element_type=jnp.float32)
    y1 = jnp.maximum(y1 + b1_ref[...], 0.0)

    # ---- lay conv1 output into a zero-bordered scratch so conv2 (3x3, stride 1,
    # pad 1) can be expressed as 9 shifted unit-stride slices.  Only the border
    # needs zeros; the interior is fully rewritten every step (so this stays
    # correct with a "parallel" batch axis — no reliance on step-0 init).
    zrow = jnp.zeros((1,) + tuple(y1pad_scr.shape[1:]), cdt)
    zcol = jnp.zeros((Ho + 2, 1, Cout_p), cdt)
    y1pad_scr[0:1, :, :] = zrow
    y1pad_scr[Ho + 1:Ho + 2, :, :] = zrow
    y1pad_scr[:, 0:1, :] = zcol
    y1pad_scr[:, Wo + 1:Wo + 2, :] = zcol
    y1pad_scr[1:Ho + 1, 1:Wo + 1, :] = y1.astype(cdt).reshape(Ho, Wo, Cout_p)

    # ---- conv2: build (Ho*Wo, 9*Cout_p) patches, single deep-K matmul, BN2 bias.
    for dy in range(3):
        for dx in range(3):
            t = dy * 3 + dx
            patch = y1pad_scr[dy:dy + Ho, dx:dx + Wo, :]
            p2_scr[:, t * Cout_p:(t + 1) * Cout_p] = patch.reshape(Ho * Wo, Cout_p)

    y2 = jnp.dot(p2_scr[...], w2_ref[...], preferred_element_type=jnp.float32)
    y2 = y2 + b2_ref[...]

    # ---- shortcut: the strided x (x[s*i, s*j]) comes out of the same phase array.
    p = (1 % stride) * stride + (1 % stride)
    rs = p * Hph + 1 // stride
    cs = 1 // stride
    xs = xph_ref[0, rs:rs + Ho, cs:cs + Wo, :].reshape(Ho * Wo, Cin_p)
    if project:
        sc = jnp.dot(xs, ws_ref[...], preferred_element_type=jnp.float32)
        sc = sc + bs_ref[...]
    else:
        sc = xs.astype(jnp.float32)

    o_ref[0] = (y2 + sc).astype(o_ref.dtype)


def _fold_bn(g, b, m, v, eps=1e-5):
    scale = g / jnp.sqrt(v + eps)
    bias = b - m * scale
    return scale.astype(jnp.float32), bias.astype(jnp.float32)


def basic_block_forward(x_nchw, params, stride, compute_dtype=jnp.bfloat16):
    """Pallas implementation of BasicBlock.forward. Input/output are NCHW f32."""
    N, Cin, H, W = x_nchw.shape
    w1 = params["conv1_w"]            # (Cout, Cin, 3, 3)
    w2 = params["conv2_w"]            # (Cout, Cout, 3, 3)
    Cout = w1.shape[0]
    Ho = (H + 2 - 3) // stride + 1
    Wo = (W + 2 - 3) // stride + 1
    project = "short_w" in params

    Cin_p = _round_up(Cin, 128)       # lane-dense channels
    Cout_p = _round_up(Cout, 128)
    # TODO(synk): for stem-like tiny Cin (e.g. 3), padding Cin to 128 wastes MXU
    #             K; a per-layer choice would be better.

    # ---- activations: NCHW -> NHWC, spatial pad 1, channel pad to lane width,
    # then decompose into stride*stride phases so every conv tap in the kernel
    # is a unit-stride slice (no strided loads, no 9x im2col in HBM).
    x = jnp.transpose(x_nchw, (0, 2, 3, 1))
    xpad = jnp.pad(x, ((0, 0), (1, 1), (1, 1), (0, Cin_p - Cin)))
    xpad = xpad.astype(compute_dtype)

    Hph = Ho + 2 // stride
    Wph = Wo + 2 // stride
    phases = []
    for pr in range(stride):
        for pc in range(stride):
            ph = xpad[:, pr::stride, pc::stride, :][:, :Hph, :Wph, :]
            ph = jnp.pad(ph, ((0, 0), (0, Hph - ph.shape[1]),
                              (0, Wph - ph.shape[2]), (0, 0)))
            phases.append(ph)
    xph = jnp.concatenate(phases, axis=1)        # (N, s*s*Hph, Wph, Cin_p)

    # ---- weights: fold BN scale into conv weights, pad channels, cast to bf16.
    s1, b1 = _fold_bn(*params["bn1"])
    s2, b2 = _fold_bn(*params["bn2"])

    def pack_3x3(w, scale, cin, cin_p):
        wm = jnp.transpose(w, (2, 3, 1, 0)).reshape(9, cin, Cout)   # (tap, ci, co)
        wm = wm * scale[None, None, :]
        wm = jnp.pad(wm, ((0, 0), (0, cin_p - cin), (0, Cout_p - Cout)))
        return wm.reshape(9 * cin_p, Cout_p).astype(compute_dtype)

    w1_mat = pack_3x3(w1, s1, Cin, Cin_p)
    w2_mat = pack_3x3(w2, s2, Cout, Cout_p)
    b1_v = jnp.pad(b1, (0, Cout_p - Cout)).reshape(1, Cout_p)
    b2_v = jnp.pad(b2, (0, Cout_p - Cout)).reshape(1, Cout_p)

    args = [xph, w1_mat, b1_v, w2_mat, b2_v]
    in_specs = [
        pl.BlockSpec((1, stride * stride * Hph, Wph, Cin_p),
                     lambda n: (n, 0, 0, 0)),
        pl.BlockSpec((9 * Cin_p, Cout_p), lambda n: (0, 0)),
        pl.BlockSpec((1, Cout_p), lambda n: (0, 0)),
        pl.BlockSpec((9 * Cout_p, Cout_p), lambda n: (0, 0)),
        pl.BlockSpec((1, Cout_p), lambda n: (0, 0)),
    ]
    if project:
        ss, bs = _fold_bn(*params["bn_s"])
        ws = jnp.transpose(params["short_w"][:, :, 0, 0], (1, 0)) * ss[None, :]
        ws = jnp.pad(ws, ((0, Cin_p - Cin), (0, Cout_p - Cout))).astype(compute_dtype)
        bs_v = jnp.pad(bs, (0, Cout_p - Cout)).reshape(1, Cout_p)
        args += [ws, bs_v]
        in_specs += [pl.BlockSpec((Cin_p, Cout_p), lambda n: (0, 0)),
                     pl.BlockSpec((1, Cout_p), lambda n: (0, 0))]
    # else: no dummy identity weights are shipped at all.

    Wpad = _round_up(Wo + 2, 16)      # sublane-aligned padded-y1 scratch rows

    kernel = functools.partial(_basic_block_kernel, stride=stride, Ho=Ho, Wo=Wo,
                               Hph=Hph, project=project)

    out = pl.pallas_call(
        kernel,
        out_shape=jax.ShapeDtypeStruct((N, Ho * Wo, Cout_p), jnp.float32),
        grid_spec=pltpu.PrefetchScalarGridSpec(
            num_scalar_prefetch=0,
            grid=(N,),
            in_specs=in_specs,
            out_specs=pl.BlockSpec((1, Ho * Wo, Cout_p), lambda n: (n, 0, 0)),
            scratch_shapes=[
                pltpu.VMEM((Ho * Wo, 9 * Cin_p), compute_dtype),     # conv1 patches
                pltpu.VMEM((Ho + 2, Wpad, Cout_p), compute_dtype),   # padded y1
                pltpu.VMEM((Ho * Wo, 9 * Cout_p), compute_dtype),    # conv2 patches
            ],
        ),
        compiler_params=pltpu.CompilerParams(
            dimension_semantics=("parallel",),          # batch axis -> megacore
            vmem_limit_bytes=32 * 1024 * 1024),
    )(*args)

    out = out.reshape(N, Ho, Wo, Cout_p)[:, :, :, :Cout]
    return jnp.transpose(out, (0, 3, 1, 2))             # back to NCHW


# ------------------------- reference (plain JAX, NCHW, f32) -------------------------
def ref_basic_block(x, params, stride, eps=1e-5):
    hi = lax.Precision.HIGHEST

    def conv(inp, w, s, pad):
        return lax.conv_general_dilated(
            inp, w, (s, s), [(pad, pad), (pad, pad)],
            dimension_numbers=("NCHW", "OIHW", "NCHW"), precision=hi)

    def bn(inp, p):
        g, b, m, v = (t[None, :, None, None] for t in p)
        return (inp - m) / jnp.sqrt(v + eps) * g + b

    out = jax.nn.relu(bn(conv(x, params["conv1_w"], stride, 1), params["bn1"]))
    out = bn(conv(out, params["conv2_w"], 1, 1), params["bn2"])
    if "short_w" in params:
        sc = bn(conv(x, params["short_w"], stride, 0), params["bn_s"])
    else:
        sc = x
    return out + sc


def init_params(key, Cin, Cout, stride):
    ks = jax.random.split(key, 6)

    def bn_params(k):
        k1, k2, k3, k4 = jax.random.split(k, 4)
        g = jax.random.uniform(k1, (Cout,), jnp.float32, 0.5, 1.5)
        b = 0.1 * jax.random.normal(k2, (Cout,), jnp.float32)
        m = 0.1 * jax.random.normal(k3, (Cout,), jnp.float32)
        v = jax.random.uniform(k4, (Cout,), jnp.float32, 0.5, 1.5)
        return (g, b, m, v)

    params = {
        "conv1_w": 0.1 * jax.random.normal(ks[0], (Cout, Cin, 3, 3), jnp.float32),
        "bn1": bn_params(ks[1]),
        "conv2_w": 0.1 * jax.random.normal(ks[2], (Cout, Cout, 3, 3), jnp.float32),
        "bn2": bn_params(ks[3]),
    }
    if not (stride == 1 and Cin == Cout):
        params["short_w"] = 0.1 * jax.random.normal(ks[4], (Cout, Cin, 1, 1),
                                                    jnp.float32)
        params["bn_s"] = bn_params(ks[5])
    return params


if __name__ == "__main__":
    key = jax.random.PRNGKey(0)
    kx, kp, kx2, kp2 = jax.random.split(key, 4)

    # Tolerances account for bf16 MXU inputs vs. an all-f32 reference.
    RTOL, ATOL = 3e-2, 5e-2

    # case 1: projection shortcut (stride=2, Cin != Cout)
    N, Cin, H, W, Cout, stride = 2, 4, 16, 16, 8, 2
    x = jax.random.normal(kx, (N, Cin, H, W), jnp.float32)
    params = init_params(kp, Cin, Cout, stride)
    out = jax.block_until_ready(basic_block_forward(x, params, stride))
    ref = ref_basic_block(x, params, stride)
    np.testing.assert_allclose(np.asarray(out), np.asarray(ref),
                               rtol=RTOL, atol=ATOL)

    # case 2: identity shortcut (stride=1, Cin == Cout)
    Cin2 = Cout2 = 8
    x2 = jax.random.normal(kx2, (N, Cin2, H, W), jnp.float32)
    params2 = init_params(kp2, Cin2, Cout2, 1)
    out2 = jax.block_until_ready(basic_block_forward(x2, params2, 1))
    ref2 = ref_basic_block(x2, params2, 1)
    np.testing.assert_allclose(np.asarray(out2), np.asarray(ref2),
                               rtol=RTOL, atol=ATOL)

    print("KERNEL_OK")
</pallas_src>

<mosaic_0001>
module attributes {stable_mosaic.version = 11 : i64} {
  func.func @_basic_block_kernel(%arg0: i32, %arg1: memref<1x36x9x128xbf16, #tpu.memory_space<vmem>>, %arg2: memref<1152x128xbf16, #tpu.memory_space<vmem>>, %arg3: memref<1x128xf32, #tpu.memory_space<vmem>>, %arg4: memref<1152x128xbf16, #tpu.memory_space<vmem>>, %arg5: memref<1x128xf32, #tpu.memory_space<vmem>>, %arg6: memref<128x128xbf16, #tpu.memory_space<vmem>>, %arg7: memref<1x128xf32, #tpu.memory_space<vmem>>, %arg8: memref<1x64x128xf32, #tpu.memory_space<vmem>>, %arg9: memref<64x1152xbf16, #tpu.memory_space<vmem>>, %arg10: memref<10x16x128xbf16, #tpu.memory_space<vmem>>, %arg11: memref<64x1152xbf16, #tpu.memory_space<vmem>>) attributes {dimension_semantics = [#tpu.dimension_semantics<parallel>], iteration_bounds = array<i64: 2>, scalar_prefetch = 0 : i64, scratch_operands = 3 : i64, tpu.core_type = #tpu.core_type<tc>, window_params = [{transform_indices = @transform_0, window_bounds = array<i64: 1, 36, 9, 128>}, {pipeline_mode = #tpu.pipeline_mode<synchronous>, transform_indices = @transform_1, window_bounds = array<i64: 1152, 128>}, {pipeline_mode = #tpu.pipeline_mode<synchronous>, transform_indices = @transform_2, window_bounds = array<i64: 1, 128>}, {pipeline_mode = #tpu.pipeline_mode<synchronous>, transform_indices = @transform_3, window_bounds = array<i64: 1152, 128>}, {pipeline_mode = #tpu.pipeline_mode<synchronous>, transform_indices = @transform_4, window_bounds = array<i64: 1, 128>}, {pipeline_mode = #tpu.pipeline_mode<synchronous>, transform_indices = @transform_5, window_bounds = array<i64: 128, 128>}, {pipeline_mode = #tpu.pipeline_mode<synchronous>, transform_indices = @transform_6, window_bounds = array<i64: 1, 128>}, {transform_indices = @transform_7, window_bounds = array<i64: 1, 64, 128>}]} {
    %c0 = arith.constant 0 : index
    %c0_0 = arith.constant 0 : index
    %c0_1 = arith.constant 0 : index
    %c0_2 = arith.constant 0 : index
    %0 = vector.load %arg1[%c0, %c0_0, %c0_1, %c0_2] : memref<1x36x9x128xbf16, #tpu.memory_space<vmem>>, vector<1x8x8x128xbf16>
    %1 = vector.shape_cast %0 : vector<1x8x8x128xbf16> to vector<8x8x128xbf16>
    %2 = vector.shape_cast %1 : vector<8x8x128xbf16> to vector<64x128xbf16>
    %c0_3 = arith.constant 0 : index
    %c0_4 = arith.constant 0 : index
    %3 = vector.load %arg9[%c0_3, %c0_4] : memref<64x1152xbf16, #tpu.memory_space<vmem>>, vector<64x128xbf16>
    tpu.vector_store %arg9[%c0_3, %c0_4], %2 {strides = array<i32>} : memref<64x1152xbf16, #tpu.memory_space<vmem>>, vector<64x128xbf16>,
    %c0_5 = arith.constant 0 : index
    %c9 = arith.constant 9 : index
    %c0_6 = arith.constant 0 : index
    %c0_7 = arith.constant 0 : index
    %4 = vector.load %arg1[%c0_5, %c9, %c0_6, %c0_7] : memref<1x36x9x128xbf16, #tpu.memory_space<vmem>>, vector<1x8x8x128xbf16>
    %5 = vector.shape_cast %4 : vector<1x8x8x128xbf16> to vector<8x8x128xbf16>
    %6 = vector.shape_cast %5 : vector<8x8x128xbf16> to vector<64x128xbf16>
    %c0_8 = arith.constant 0 : index
    %c128 = arith.constant 128 : index
    %7 = vector.load %arg9[%c0_8, %c128] : memref<64x1152xbf16, #tpu.memory_space<vmem>>, vector<64x128xbf16>
    tpu.vector_store %arg9[%c0_8, %c128], %6 {strides = array<i32>} : memref<64x1152xbf16, #tpu.memory_space<vmem>>, vector<64x128xbf16>,
    %c0_9 = arith.constant 0 : index
    %c0_10 = arith.constant 0 : index
    %c1 = arith.constant 1 : index
    %c0_11 = arith.constant 0 : index
    %8 = vector.load %arg1[%c0_9, %c0_10, %c1, %c0_11] : memref<1x36x9x128xbf16, #tpu.memory_space<vmem>>, vector<1x8x8x128xbf16>
    %9 = vector.shape_cast %8 : vector<1x8x8x128xbf16> to vector<8x8x128xbf16>
    %10 = vector.shape_cast %9 : vector<8x8x128xbf16> to vector<64x128xbf16>
    %c0_12 = arith.constant 0 : index
    %c256 = arith.constant 256 : index
    %11 = vector.load %arg9[%c0_12, %c256] : memref<64x1152xbf16, #tpu.memory_space<vmem>>, vector<64x128xbf16>
    tpu.vector_store %arg9[%c0_12, %c256], %10 {strides = array<i32>} : memref<64x1152xbf16, #tpu.memory_space<vmem>>, vector<64x128xbf16>,
    %c0_13 = arith.constant 0 : index
    %c18 = arith.constant 18 : index
    %c0_14 = arith.constant 0 : index
    %c0_15 = arith.constant 0 : index
    %12 = vector.load %arg1[%c0_13, %c18, %c0_14, %c0_15] : memref<1x36x9x128xbf16, #tpu.memory_space<vmem>>, vector<1x8x8x128xbf16>
    %13 = vector.shape_cast %12 : vector<1x8x8x128xbf16> to vector<8x8x128xbf16>
    %14 = vector.shape_cast %13 : vector<8x8x128xbf16> to vector<64x128xbf16>
    %c0_16 = arith.constant 0 : index
    %c384 = arith.constant 384 : index
    %15 = vector.load %arg9[%c0_16, %c384] : memref<64x1152xbf16, #tpu.memory_space<vmem>>, vector<64x128xbf16>
    tpu.vector_store %arg9[%c0_16, %c384], %14 {strides = array<i32>} : memref<64x1152xbf16, #tpu.memory_space<vmem>>, vector<64x128xbf16>,
    %c0_17 = arith.constant 0 : index
    %c27 = arith.constant 27 : index
    %c0_18 = arith.constant 0 : index
    %c0_19 = arith.constant 0 : index
    %16 = vector.load %arg1[%c0_17, %c27, %c0_18, %c0_19] : memref<1x36x9x128xbf16, #tpu.memory_space<vmem>>, vector<1x8x8x128xbf16>
    %17 = vector.shape_cast %16 : vector<1x8x8x128xbf16> to vector<8x8x128xbf16>
    %18 = vector.shape_cast %17 : vector<8x8x128xbf16> to vector<64x128xbf16>
    %c0_20 = arith.constant 0 : index
    %c512 = arith.constant 512 : index
    %19 = vector.load %arg9[%c0_20, %c512] : memref<64x1152xbf16, #tpu.memory_space<vmem>>, vector<64x128xbf16>
    tpu.vector_store %arg9[%c0_20, %c512], %18 {strides = array<i32>} : memref<64x1152xbf16, #tpu.memory_space<vmem>>, vector<64x128xbf16>,
    %c0_21 = arith.constant 0 : index
    %c18_22 = arith.constant 18 : index
    %c1_23 = arith.constant 1 : index
    %c0_24 = arith.constant 0 : index
    %20 = vector.load %arg1[%c0_21, %c18_22, %c1_23, %c0_24] : memref<1x36x9x128xbf16, #tpu.memory_space<vmem>>, vector<1x8x8x128xbf16>
    %21 = vector.shape_cast %20 : vector<1x8x8x128xbf16> to vector<8x8x128xbf16>
    %22 = vector.shape_cast %21 : vector<8x8x128xbf16> to vector<64x128xbf16>
    %c0_25 = arith.constant 0 : index
    %c640 = arith.constant 640 : index
    %23 = vector.load %arg9[%c0_25, %c640] : memref<64x1152xbf16, #tpu.memory_space<vmem>>, vector<64x128xbf16>
    tpu.vector_store %arg9[%c0_25, %c640], %22 {strides = array<i32>} : memref<64x1152xbf16, #tpu.memory_space<vmem>>, vector<64x128xbf16>,
    %c0_26 = arith.constant 0 : index
    %c1_27 = arith.constant 1 : index
    %c0_28 = arith.constant 0 : index
    %c0_29 = arith.constant 0 : index
    %24 = vector.load %arg1[%c0_26, %c1_27, %c0_28, %c0_29] : memref<1x36x9x128xbf16, #tpu.memory_space<vmem>>, vector<1x8x8x128xbf16>
    %25 = vector.shape_cast %24 : vector<1x8x8x128xbf16> to vector<8x8x128xbf16>
    %26 = vector.shape_cast %25 : vector<8x8x128xbf16> to vector<64x128xbf16>
    %c0_30 = arith.constant 0 : index
    %c768 = arith.constant 768 : index
    %27 = vector.load %arg9[%c0_30, %c768] : memref<64x1152xbf16, #tpu.memory_space<vmem>>, vector<64x128xbf16>
    tpu.vector_store %arg9[%c0_30, %c768], %26 {strides = array<i32>} : memref<64x1152xbf16, #tpu.memory_space<vmem>>, vector<64x128xbf16>,
    %c0_31 = arith.constant 0 : index
    %c10 = arith.constant 10 : index
    %c0_32 = arith.constant 0 : index
    %c0_33 = arith.constant 0 : index
    %28 = vector.load %arg1[%c0_31, %c10, %c0_32, %c0_33] : memref<1x36x9x128xbf16, #tpu.memory_space<vmem>>, vector<1x8x8x128xbf16>
    %29 = vector.shape_cast %28 : vector<1x8x8x128xbf16> to vector<8x8x128xbf16>
    %30 = vector.shape_cast %29 : vector<8x8x128xbf16> to vector<64x128xbf16>
    %c0_34 = arith.constant 0 : index
    %c896 = arith.constant 896 : index
    %31 = vector.load %arg9[%c0_34, %c896] : memref<64x1152xbf16, #tpu.memory_space<vmem>>, vector<64x128xbf16>
    tpu.vector_store %arg9[%c0_34, %c896], %30 {strides = array<i32>} : memref<64x1152xbf16, #tpu.memory_space<vmem>>, vector<64x128xbf16>,
    %c0_35 = arith.constant 0 : index
    %c1_36 = arith.constant 1 : index
    %c1_37 = arith.constant 1 : index
    %c0_38 = arith.constant 0 : index
    %32 = vector.load %arg1[%c0_35, %c1_36, %c1_37, %c0_38] : memref<1x36x9x128xbf16, #tpu.memory_space<vmem>>, vector<1x8x8x128xbf16>
    %33 = vector.shape_cast %32 : vector<1x8x8x128xbf16> to vector<8x8x128xbf16>
    %34 = vector.shape_cast %33 : vector<8x8x128xbf16> to vector<64x128xbf16>
    %c0_39 = arith.constant 0 : index
    %c1024 = arith.constant 1024 : index
    %35 = vector.load %arg9[%c0_39, %c1024] : memref<64x1152xbf16, #tpu.memory_space<vmem>>, vector<64x128xbf16>
    tpu.vector_store %arg9[%c0_39, %c1024], %34 {strides = array<i32>} : memref<64x1152xbf16, #tpu.memory_space<vmem>>, vector<64x128xbf16>,
    %c0_40 = arith.constant 0 : index
    %c0_41 = arith.constant 0 : index
    %36 = vector.load %arg9[%c0_40, %c0_41] : memref<64x1152xbf16, #tpu.memory_space<vmem>>, vector<64x1152xbf16>
    %c0_42 = arith.constant 0 : index
    %c0_43 = arith.constant 0 : index
    %37 = vector.load %arg2[%c0_42, %c0_43] : memref<1152x128xbf16, #tpu.memory_space<vmem>>, vector<1152x128xbf16>
    %cst = arith.constant dense<0.000000e+00> : vector<64x128xf32>
    %38 = tpu.matmul %36, %37, %cst {dimension_numbers = #tpu.dot_dimension_numbers<[1], [0], [0], [1], [0, 0, 1, 1], [], []>} : vector<64x1152xbf16>, vector<1152x128xbf16>, vector<64x128xf32> -> vector<64x128xf32>
    %c0_44 = arith.constant 0 : index
    %c0_45 = arith.constant 0 : index
    %39 = vector.load %arg3[%c0_44, %c0_45] : memref<1x128xf32, #tpu.memory_space<vmem>>, vector<1x128xf32>
    %40 = vector.broadcast %39 : vector<1x128xf32> to vector<64x128xf32>
    %41 = arith.addf %38, %40 : vector<64x128xf32>
    %cst_46 = arith.constant 0.000000e+00 : f32
    %42 = vector.broadcast %cst_46 : f32 to vector<64x128xf32>
    %43 = arith.maximumf %41, %42 : vector<64x128xf32>
    %cst_47 = arith.constant 0.000000e+00 : bf16
    %44 = vector.broadcast %cst_47 : bf16 to vector<1x16x128xbf16>
    %cst_48 = arith.constant 0.000000e+00 : bf16
    %45 = vector.broadcast %cst_48 : bf16 to vector<10x1x128xbf16>
    %c0_49 = arith.constant 0 : index
    %c0_50 = arith.constant 0 : index
    %c0_51 = arith.constant 0 : index
    %46 = vector.load %arg10[%c0_49, %c0_50, %c0_51] : memref<10x16x128xbf16, #tpu.memory_space<vmem>>, vector<1x16x128xbf16>
    tpu.vector_store %arg10[%c0_49, %c0_50, %c0_51], %44 {strides = array<i32>} : memref<10x16x128xbf16, #tpu.memory_space<vmem>>, vector<1x16x128xbf16>,
    %c9_52 = arith.constant 9 : index
    %c0_53 = arith.constant 0 : index
    %c0_54 = arith.constant 0 : index
    %47 = vector.load %arg10[%c9_52, %c0_53, %c0_54] : memref<10x16x128xbf16, #tpu.memory_space<vmem>>, vector<1x16x128xbf16>
    tpu.vector_store %arg10[%c9_52, %c0_53, %c0_54], %44 {strides = array<i32>} : memref<10x16x128xbf16, #tpu.memory_space<vmem>>, vector<1x16x128xbf16>,
    %c0_55 = arith.constant 0 : index
    %c0_56 = arith.constant 0 : index
    %c0_57 = arith.constant 0 : index
    %48 = vector.load %arg10[%c0_55, %c0_56, %c0_57] : memref<10x16x128xbf16, #tpu.memory_space<vmem>>, vector<10x1x128xbf16>
    tpu.vector_store %arg10[%c0_55, %c0_56, %c0_57], %45 {strides = array<i32>} : memref<10x16x128xbf16, #tpu.memory_space<vmem>>, vector<10x1x128xbf16>,
    %c0_58 = arith.constant 0 : index
    %c9_59 = arith.constant 9 : index
    %c0_60 = arith.constant 0 : index
    %49 = vector.load %arg10[%c0_58, %c9_59, %c0_60] : memref<10x16x128xbf16, #tpu.memory_space<vmem>>, vector<10x1x128xbf16>
    tpu.vector_store %arg10[%c0_58, %c9_59, %c0_60], %45 {strides = array<i32>} : memref<10x16x128xbf16, #tpu.memory_space<vmem>>, vector<10x1x128xbf16>,
    %50 = arith.truncf %43 : vector<64x128xf32> to vector<64x128xbf16>
    %51 = vector.shape_cast %50 : vector<64x128xbf16> to vector<8x8x128xbf16>
    %c1_61 = arith.constant 1 : index
    %c1_62 = arith.constant 1 : index
    %c0_63 = arith.constant 0 : index
    %52 = vector.load %arg10[%c1_61, %c1_62, %c0_63] : memref<10x16x128xbf16, #tpu.memory_space<vmem>>, vector<8x8x128xbf16>
    tpu.vector_store %arg10[%c1_61, %c1_62, %c0_63], %51 {strides = array<i32>} : memref<10x16x128xbf16, #tpu.memory_space<vmem>>, vector<8x8x128xbf16>,
    %c0_64 = arith.constant 0 : index
    %c0_65 = arith.constant 0 : index
    %c0_66 = arith.constant 0 : index
    %53 = vector.load %arg10[%c0_64, %c0_65, %c0_66] : memref<10x16x128xbf16, #tpu.memory_space<vmem>>, vector<8x8x128xbf16>
    %54 = vector.shape_cast %53 : vector<8x8x128xbf16> to vector<64x128xbf16>
    %c0_67 = arith.constant 0 : index
    %c0_68 = arith.constant 0 : index
    %55 = vector.load %arg11[%c0_67, %c0_68] : memref<64x1152xbf16, #tpu.memory_space<vmem>>, vector<64x128xbf16>
    tpu.vector_store %arg11[%c0_67, %c0_68], %54 {strides = array<i32>} : memref<64x1152xbf16, #tpu.memory_space<vmem>>, vector<64x128xbf16>,
    %c0_69 = arith.constant 0 : index
    %c1_70 = arith.constant 1 : index
    %c0_71 = arith.constant 0 : index
    %56 = vector.load %arg10[%c0_69, %c1_70, %c0_71] : memref<10x16x128xbf16, #tpu.memory_space<vmem>>, vector<8x8x128xbf16>
    %57 = vector.shape_cast %56 : vector<8x8x128xbf16> to vector<64x128xbf16>
    %c0_72 = arith.constant 0 : index
    %c128_73 = arith.constant 128 : index
    %58 = vector.load %arg11[%c0_72, %c128_73] : memref<64x1152xbf16, #tpu.memory_space<vmem>>, vector<64x128xbf16>
    tpu.vector_store %arg11[%c0_72, %c128_73], %57 {strides = array<i32>} : memref<64x1152xbf16, #tpu.memory_space<vmem>>, vector<64x128xbf16>,
    %c0_74 = arith.constant 0 : index
    %c2 = arith.constant 2 : index
    %c0_75 = arith.constant 0 : index
    %59 = vector.load %arg10[%c0_74, %c2, %c0_75] : memref<10x16x128xbf16, #tpu.memory_space<vmem>>, vector<8x8x128xbf16>
    %60 = vector.shape_cast %59 : vector<8x8x128xbf16> to vector<64x128xbf16>
    %c0_76 = arith.constant 0 : index
    %c256_77 = arith.constant 256 : index
    %61 = vector.load %arg11[%c0_76, %c256_77] : memref<64x1152xbf16, #tpu.memory_space<vmem>>, vector<64x128xbf16>
    tpu.vector_store %arg11[%c0_76, %c256_77], %60 {strides = array<i32>} : memref<64x1152xbf16, #tpu.memory_space<vmem>>, vector<64x128xbf16>,
    %c1_78 = arith.constant 1 : index
    %c0_79 = arith.constant 0 : index
    %c0_80 = arith.constant 0 : index
    %62 = vector.load %arg10[%c1_78, %c0_79, %c0_80] : memref<10x16x128xbf16, #tpu.memory_space<vmem>>, vector<8x8x128xbf16>
    %63 = vector.shape_cast %62 : vector<8x8x128xbf16> to vector<64x128xbf16>
    %c0_81 = arith.constant 0 : index
    %c384_82 = arith.constant 384 : index
    %64 = vector.load %arg11[%c0_81, %c384_82] : memref<64x1152xbf16, #tpu.memory_space<vmem>>, vector<64x128xbf16>
    tpu.vector_store %arg11[%c0_81, %c384_82], %63 {strides = array<i32>} : memref<64x1152xbf16, #tpu.memory_space<vmem>>, vector<64x128xbf16>,
    %c1_83 = arith.constant 1 : index
    %c1_84 = arith.constant 1 : index
    %c0_85 = arith.constant 0 : index
    %65 = vector.load %arg10[%c1_83, %c1_84, %c0_85] : memref<10x16x128xbf16, #tpu.memory_space<vmem>>, vector<8x8x128xbf16>
    %66 = vector.shape_cast %65 : vector<8x8x128xbf16> to vector<64x128xbf16>
    %c0_86 = arith.constant 0 : index
    %c512_87 = arith.constant 512 : index
    %67 = vector.load %arg11[%c0_86, %c512_87] : memref<64x1152xbf16, #tpu.memory_space<vmem>>, vector<64x128xbf16>
    tpu.vector_store %arg11[%c0_86, %c512_87], %66 {strides = array<i32>} : memref<64x1152xbf16, #tpu.memory_space<vmem>>, vector<64x128xbf16>,
    %c1_88 = arith.constant 1 : index
    %c2_89 = arith.constant 2 : index
    %c0_90 = arith.constant 0 : index
    %68 = vector.load %arg10[%c1_88, %c2_89, %c0_90] : memref<10x16x128xbf16, #tpu.memory_space<vmem>>, vector<8x8x128xbf16>
    %69 = vector.shape_cast %68 : vector<8x8x128xbf16> to vector<64x128xbf16>
    %c0_91 = arith.constant 0 : index
    %c640_92 = arith.constant 640 : index
    %70 = vector.load %arg11[%c0_91, %c640_92] : memref<64x1152xbf16, #tpu.memory_space<vmem>>, vector<64x128xbf16>
    tpu.vector_store %arg11[%c0_91, %c640_92], %69 {strides = array<i32>} : memref<64x1152xbf16, #tpu.memory_space<vmem>>, vector<64x128xbf16>,
    %c2_93 = arith.constant 2 : index
    %c0_94 = arith.constant 0 : index
    %c0_95 = arith.constant 0 : index
    %71 = vector.load %arg10[%c2_93, %c0_94, %c0_95] : memref<10x16x128xbf16, #tpu.memory_space<vmem>>, vector<8x8x128xbf16>
    %72 = vector.shape_cast %71 : vector<8x8x128xbf16> to vector<64x128xbf16>
    %c0_96 = arith.constant 0 : index
    %c768_97 = arith.constant 768 : index
    %73 = vector.load %arg11[%c0_96, %c768_97] : memref<64x1152xbf16, #tpu.memory_space<vmem>>, vector<64x128xbf16>
    tpu.vector_store %arg11[%c0_96, %c768_97], %72 {strides = array<i32>} : memref<64x1152xbf16, #tpu.memory_space<vmem>>, vector<64x128xbf16>,
    %c2_98 = arith.constant 2 : index
    %c1_99 = arith.constant 1 : index
    %c0_100 = arith.constant 0 : index
    %74 = vector.load %arg10[%c2_98, %c1_99, %c0_100] : memref<10x16x128xbf16, #tpu.memory_space<vmem>>, vector<8x8x128xbf16>
    %75 = vector.shape_cast %74 : vector<8x8x128xbf16> to vector<64x128xbf16>
    %c0_101 = arith.constant 0 : index
    %c896_102 = arith.constant 896 : index
    %76 = vector.load %arg11[%c0_101, %c896_102] : memref<64x1152xbf16, #tpu.memory_space<vmem>>, vector<64x128xbf16>
    tpu.vector_store %arg11[%c0_101, %c896_102], %75 {strides = array<i32>} : memref<64x1152xbf16, #tpu.memory_space<vmem>>, vector<64x128xbf16>,
    %c2_103 = arith.constant 2 : index
    %c2_104 = arith.constant 2 : index
    %c0_105 = arith.constant 0 : index
    %77 = vector.load %arg10[%c2_103, %c2_104, %c0_105] : memref<10x16x128xbf16, #tpu.memory_space<vmem>>, vector<8x8x128xbf16>
    %78 = vector.shape_cast %77 : vector<8x8x128xbf16> to vector<64x128xbf16>
    %c0_106 = arith.constant 0 : index
    %c1024_107 = arith.constant 1024 : index
    %79 = vector.load %arg11[%c0_106, %c1024_107] : memref<64x1152xbf16, #tpu.memory_space<vmem>>, vector<64x128xbf16>
    tpu.vector_store %arg11[%c0_106, %c1024_107], %78 {strides = array<i32>} : memref<64x1152xbf16, #tpu.memory_space<vmem>>, vector<64x128xbf16>,
    %c0_108 = arith.constant 0 : index
    %c0_109 = arith.constant 0 : index
    %80 = vector.load %arg11[%c0_108, %c0_109] : memref<64x1152xbf16, #tpu.memory_space<vmem>>, vector<64x1152xbf16>
    %c0_110 = arith.constant 0 : index
    %c0_111 = arith.constant 0 : index
    %81 = vector.load %arg4[%c0_110, %c0_111] : memref<1152x128xbf16, #tpu.memory_space<vmem>>, vector<1152x128xbf16>
    %cst_112 = arith.constant dense<0.000000e+00> : vector<64x128xf32>
    %82 = tpu.matmul %80, %81, %cst_112 {dimension_numbers = #tpu.dot_dimension_numbers<[1], [0], [0], [1], [0, 0, 1, 1], [], []>} : vector<64x1152xbf16>, vector<1152x128xbf16>, vector<64x128xf32> -> vector<64x128xf32>
    %c0_113 = arith.constant 0 : index
    %c0_114 = arith.constant 0 : index
    %83 = vector.load %arg5[%c0_113, %c0_114] : memref<1x128xf32, #tpu.memory_space<vmem>>, vector<1x128xf32>
    %84 = vector.broadcast %83 : vector<1x128xf32> to vector<64x128xf32>
    %85 = arith.addf %82, %84 : vector<64x128xf32>
    %c0_115 = arith.constant 0 : index
    %c27_116 = arith.constant 27 : index
    %c0_117 = arith.constant 0 : index
    %c0_118 = arith.constant 0 : index
    %86 = vector.load %arg1[%c0_115, %c27_116, %c0_117, %c0_118] : memref<1x36x9x128xbf16, #tpu.memory_space<vmem>>, vector<1x8x8x128xbf16>
    %87 = vector.shape_cast %86 : vector<1x8x8x128xbf16> to vector<8x8x128xbf16>
    %88 = vector.shape_cast %87 : vector<8x8x128xbf16> to vector<64x128xbf16>
    %c0_119 = arith.constant 0 : index
    %c0_120 = arith.constant 0 : index
    %89 = vector.load %arg6[%c0_119, %c0_120] : memref<128x128xbf16, #tpu.memory_space<vmem>>, vector<128x128xbf16>
    %cst_121 = arith.constant dense<0.000000e+00> : vector<64x128xf32>
    %90 = tpu.matmul %88, %89, %cst_121 {dimension_numbers = #tpu.dot_dimension_numbers<[1], [0], [0], [1], [0, 0, 1, 1], [], []>} : vector<64x128xbf16>, vector<128x128xbf16>, vector<64x128xf32> -> vector<64x128xf32>
    %c0_122 = arith.constant 0 : index
    %c0_123 = arith.constant 0 : index
    %91 = vector.load %arg7[%c0_122, %c0_123] : memref<1x128xf32, #tpu.memory_space<vmem>>, vector<1x128xf32>
    %92 = vector.broadcast %91 : vector<1x128xf32> to vector<64x128xf32>
    %93 = arith.addf %90, %92 : vector<64x128xf32>
    %94 = arith.addf %85, %93 : vector<64x128xf32>
    %c0_124 = arith.constant 0 : index
    %c0_125 = arith.constant 0 : index
    %c0_126 = arith.constant 0 : index
    %95 = vector.load %arg8[%c0_124, %c0_125, %c0_126] : memref<1x64x128xf32, #tpu.memory_space<vmem>>, vector<1x64x128xf32>
    %96 = vector.shape_cast %95 : vector<1x64x128xf32> to vector<64x128xf32>
    %97 = vector.shape_cast %94 : vector<64x128xf32> to vector<1x64x128xf32>
    tpu.vector_store %arg8[%c0_124, %c0_125, %c0_126], %97 {strides = array<i32>} : memref<1x64x128xf32, #tpu.memory_space<vmem>>, vector<1x64x128xf32>,
    return
  }
  func.func @transform_0(%arg0: i32) -> (i32, i32, i32, i32) {
    %c0_i32 = arith.constant 0 : i32
    %c0_i32_0 = arith.constant 0 : i32
    %c0_i32_1 = arith.constant 0 : i32
    %c0_i32_2 = arith.constant 0 : i32
    return %arg0, %c0_i32, %c0_i32_0, %c0_i32_1 : i32, i32, i32, i32
  }
  func.func @transform_1(%arg0: i32) -> (i32, i32) {
    %c0_i32 = arith.constant 0 : i32
    %c0_i32_0 = arith.constant 0 : i32
    %c0_i32_1 = arith.constant 0 : i32
    return %c0_i32, %c0_i32_0 : i32, i32
  }
  func.func @transform_2(%arg0: i32) -> (i32, i32) {
    %c0_i32 = arith.constant 0 : i32
    %c0_i32_0 = arith.constant 0 : i32
    %c0_i32_1 = arith.constant 0 : i32
    return %c0_i32, %c0_i32_0 : i32, i32
  }
  func.func @transform_3(%arg0: i32) -> (i32, i32) {
    %c0_i32 = arith.constant 0 : i32
    %c0_i32_0 = arith.constant 0 : i32
    %c0_i32_1 = arith.constant 0 : i32
    return %c0_i32, %c0_i32_0 : i32, i32
  }
  func.func @transform_4(%arg0: i32) -> (i32, i32) {
    %c0_i32 = arith.constant 0 : i32
    %c0_i32_0 = arith.constant 0 : i32
    %c0_i32_1 = arith.constant 0 : i32
    return %c0_i32, %c0_i32_0 : i32, i32
  }
  func.func @transform_5(%arg0: i32) -> (i32, i32) {
    %c0_i32 = arith.constant 0 : i32
    %c0_i32_0 = arith.constant 0 : i32
    %c0_i32_1 = arith.constant 0 : i32
    return %c0_i32, %c0_i32_0 : i32, i32
  }
  func.func @transform_6(%arg0: i32) -> (i32, i32) {
    %c0_i32 = arith.constant 0 : i32
    %c0_i32_0 = arith.constant 0 : i32
    %c0_i32_1 = arith.constant 0 : i32
    return %c0_i32, %c0_i32_0 : i32, i32
  }
  func.func @transform_7(%arg0: i32) -> (i32, i32, i32) {
    %c0_i32 = arith.constant 0 : i32
    %c0_i32_0 = arith.constant 0 : i32
    %c0_i32_1 = arith.constant 0 : i32
    return %arg0, %c0_i32, %c0_i32_0 : i32, i32, i32
  }
}

</mosaic_0001>

<llo_original>
// kernel: tpu_custom_call.1
$region0: #{tpu_custom_call.1}
  #allocation0 [shape = 'u32[]', space=smem, size = 0x4, offset = 0x4, fixed_abs, tag = 'smem constant byte address 0x4 - core index']
  #allocation1 [shape = 'u32[144,128]{1,0:T(1,128)}', space=vmem, size = 0x12000, scoped, tag = 'internal scratch']
  #allocation2 [shape = 'bf16[64,1152]{1,0:T(16,128)(2,1)}', space=vmem, size = 0x24000, scoped, tag = 'scratch operand']
  #allocation3 [shape = 'bf16[10,16,128]{2,1,0:T(16,128)(2,1)}', space=vmem, size = 0xa000, scoped, tag = 'scratch operand']
  #allocation4 [shape = 'bf16[64,1152]{1,0:T(16,128)(2,1)}', space=vmem, size = 0x24000, scoped, tag = 'scratch operand']
  %s0 = inlined_call_operand.vmem [shape: bf16[2,36,9,128], index: 0, kind: input, shape index: {}]
  %s1 = inlined_call_operand.vmem [shape: bf16[1152,128], index: 1, kind: input, shape index: {}]
  %s2 = inlined_call_operand.vmem [shape: f32[1,128], index: 2, kind: input, shape index: {}]
  %s3 = inlined_call_operand.hbm [shape: bf16[1152,128], index: 3, kind: input, shape index: {}]
  %s4 = inlined_call_operand.vmem [shape: f32[1,128], index: 4, kind: input, shape index: {}]
  %s5 = inlined_call_operand.vmem [shape: bf16[128,128], index: 5, kind: input, shape index: {}]
  %s6 = inlined_call_operand.vmem [shape: f32[1,128], index: 6, kind: input, shape index: {}]
  %s7 = inlined_call_operand.hbm [shape: f32[2,64,128], index: 7, kind: output, shape index: {}]
  %s8 = sld [smem:[#allocation0]]
  $region65: #{tpu_custom_call.1} parent=0
    _
  %s10 = ssub.s32 1, %s8
  %s11 = scalar_select 0, %s10, %s8
  $region1: #{tpu_custom_call.1} parent=0
    #allocation5 [shape = 'u8[294912]{0}', space=vmem, size = 0x48000, scoped, tag = 'input window, operand 3, single buffered']
    #allocation6 [shape = 's32[2]{0}', space=sflag, size = 0x8, scoped, tag = 'scoped memory for tpu_custom_call.1']
    #allocation7 [shape = 's32[2]{0}', space=sflag, size = 0x8, scoped, tag = 'scoped memory for tpu_custom_call.1']
    #allocation8 [shape = 'u8[65536]{0}', space=vmem, size = 0x10000, scoped, tag = 'output window, operand 0']
    %12 = vsyncpa [#allocation6], 0
    %13 = vsyncpa [#allocation7], 0
    %s14 = scalar_lea.sflag [#allocation7], 1
    %15 = vsyncpa %s14, 0
    loop: start=0, step=1, limit=4
    $region2: #{tpu_custom_call.1} parent=1 // loop_pre_header
      _
    $region3: #{tpu_custom_call.1} parent=1 // loop_header
      %s17 = sphi 0, %s21
      %p18 = scmp.ge.s32.totalorder %s17, 4
      %s27 = sphi 0, %s29
      %s30 = sphi 0, %s27
      %s31 = sphi 0, %s30
      %s47 = sphi 0, %s31
      %s51 = sphi 0, %s51
      %s53 = sphi 0, %s51
      %s54 = sphi 0, %s53
      %s68 = sphi 0, %s54
      %s72 = sphi 0, %s72
      %s74 = sphi 0, %s72
      %s75 = sphi 0, %s74
      %s89 = sphi 0, %s75
      %s93 = sphi 0, %s93
      %s95 = sphi 0, %s93
      %s96 = sphi 0, %s95
      %s110 = sphi 0, %s96
      %s114 = sphi 0, %s114
      %s116 = sphi 0, %s114
      %s117 = sphi 0, %s116
      %s131 = sphi 0, %s117
      %s135 = sphi 0, %s135
      %s137 = sphi 0, %s135
      %s138 = sphi 0, %s137
      %s152 = sphi 0, %s138
      %s156 = sphi 0, %s156
      %s158 = sphi 0, %s156
      %s159 = sphi 0, %s158
      %s173 = sphi 0, %s159
      %s179 = sphi 0, %s181
      %s182 = sphi 0, %s179
      %s183 = sphi 0, %s182
      %s199 = sphi 0, %s183
    $region4: #{tpu_custom_call.1} parent=1 // loop_header_branch
      %20 = sbr.rel (%p18) target = $region8
    $region5: #{tpu_custom_call.1} parent=1 // loop_body
      %s22 = ssub.s32 %s17, 1
      %s23 = ssub.s32 %s17, 2
      %s24 = sadd.s32 %s17, 1
      %s25 = ssub.s32 %s17, %s24
      %p26 = scmp.eq.s32.totalorder %s25, 0
      %s28 = sadd.s32 %s27, 1
      %s29 = scalar_select %p26, %s27, %s28
      %p32 = pneg %p26
      %p33 = scmp.eq.s32.totalorder %s17, 1
      %p34 = por %p32, %p33
      %p35 = scmp.ne.s32.totalorder %s27, %s30
      %p36 = scmp.eq.s32.totalorder %s17, 0
      %p37 = por %p35, %p36
      %p38 = scmp.ne.s32.totalorder %s27, %s30
      %p39 = scmp.eq.s32.totalorder %s22, 1
      %p40 = por %p38, %p39
      %p41 = scmp.ne.s32.totalorder %s30, %s31
      %p42 = scmp.eq.s32.totalorder %s22, 0
      %p43 = por %p41, %p42
      %p44 = scmp.ne.s32.totalorder %s30, %s31
      %p45 = scmp.eq.s32.totalorder %s23, 1
      %p46 = por %p44, %p45
      %p48 = scmp.ne.s32.totalorder %s31, %s47
      %p49 = scmp.eq.s32.totalorder %s23, 0
      %p50 = por %p48, %p49
      %s52 = sadd.s32 %s51, 1
      %p55 = scmp.eq.s32.totalorder %s17, 1
      %p56 = scmp.ne.s32.totalorder %s51, %s53
      %p57 = scmp.eq.s32.totalorder %s17, 0
      %p58 = por %p56, %p57
      %p59 = scmp.ne.s32.totalorder %s51, %s53
      %p60 = scmp.eq.s32.totalorder %s22, 1
      %p61 = por %p59, %p60
      %p62 = scmp.ne.s32.totalorder %s53, %s54
      %p63 = scmp.eq.s32.totalorder %s22, 0
      %p64 = por %p62, %p63
      %p65 = scmp.ne.s32.totalorder %s53, %s54
      %p66 = scmp.eq.s32.totalorder %s23, 1
      %p67 = por %p65, %p66
      %p69 = scmp.ne.s32.totalorder %s54, %s68
      %p70 = scmp.eq.s32.totalorder %s23, 0
      %p71 = por %p69, %p70
      %s73 = sadd.s32 %s72, 1
      %p76 = scmp.eq.s32.totalorder %s17, 1
      %p77 = scmp.ne.s32.totalorder %s72, %s74
      %p78 = scmp.eq.s32.totalorder %s17, 0
      %p79 = por %p77, %p78
      %p80 = scmp.ne.s32.totalorder %s72, %s74
      %p81 = scmp.eq.s32.totalorder %s22, 1
      %p82 = por %p80, %p81
      %p83 = scmp.ne.s32.totalorder %s74, %s75
      %p84 = scmp.eq.s32.totalorder %s22, 0
      %p85 = por %p83, %p84
      %p86 = scmp.ne.s32.totalorder %s74, %s75
      %p87 = scmp.eq.s32.totalorder %s23, 1
      %p88 = por %p86, %p87
      %p90 = scmp.ne.s32.totalorder %s75, %s89
      %p91 = scmp.eq.s32.totalorder %s23, 0
      %p92 = por %p90, %p91
      %s94 = sadd.s32 %s93, 1
      %p97 = scmp.eq.s32.totalorder %s17, 1
      %p98 = scmp.ne.s32.totalorder %s93, %s95
      %p99 = scmp.eq.s32.totalorder %s17, 0
      %p100 = por %p98, %p99
      %p101 = scmp.ne.s32.totalorder %s93, %s95
      %p102 = scmp.eq.s32.totalorder %s22, 1
      %p103 = por %p101, %p102
      %p104 = scmp.ne.s32.totalorder %s95, %s96
      %p105 = scmp.eq.s32.totalorder %s22, 0
      %p106 = por %p104, %p105
      %p107 = scmp.ne.s32.totalorder %s95, %s96
      %p108 = scmp.eq.s32.totalorder %s23, 1
      %p109 = por %p107, %p108
      %p111 = scmp.ne.s32.totalorder %s96, %s110
      %p112 = scmp.eq.s32.totalorder %s23, 0
      %p113 = por %p111, %p112
      %s115 = sadd.s32 %s114, 1
      %p118 = scmp.eq.s32.totalorder %s17, 1
      %p119 = scmp.ne.s32.totalorder %s114, %s116
      %p120 = scmp.eq.s32.totalorder %s17, 0
      %p121 = por %p119, %p120
      %p122 = scmp.ne.s32.totalorder %s114, %s116
      %p123 = scmp.eq.s32.totalorder %s22, 1
      %p124 = por %p122, %p123
      %p125 = scmp.ne.s32.totalorder %s116, %s117
      %p126 = scmp.eq.s32.totalorder %s22, 0
      %p127 = por %p125, %p126
      %p128 = scmp.ne.s32.totalorder %s116, %s117
      %p129 = scmp.eq.s32.totalorder %s23, 1
      %p130 = por %p128, %p129
      %p132 = scmp.ne.s32.totalorder %s117, %s131
      %p133 = scmp.eq.s32.totalorder %s23, 0
      %p134 = por %p132, %p133
      %s136 = sadd.s32 %s135, 1
      %p139 = scmp.eq.s32.totalorder %s17, 1
      %p140 = scmp.ne.s32.totalorder %s135, %s137
      %p141 = scmp.eq.s32.totalorder %s17, 0
      %p142 = por %p140, %p141
      %p143 = scmp.ne.s32.totalorder %s135, %s137
      %p144 = scmp.eq.s32.totalorder %s22, 1
      %p145 = por %p143, %p144
      %p146 = scmp.ne.s32.totalorder %s137, %s138
      %p147 = scmp.eq.s32.totalorder %s22, 0
      %p148 = por %p146, %p147
      %p149 = scmp.ne.s32.totalorder %s137, %s138
      %p150 = scmp.eq.s32.totalorder %s23, 1
      %p151 = por %p149, %p150
      %p153 = scmp.ne.s32.totalorder %s138, %s152
      %p154 = scmp.eq.s32.totalorder %s23, 0
      %p155 = por %p153, %p154
      %s157 = sadd.s32 %s156, 1
      %p160 = scmp.eq.s32.totalorder %s17, 1
      %p161 = scmp.ne.s32.totalorder %s156, %s158
      %p162 = scmp.eq.s32.totalorder %s17, 0
      %p163 = por %p161, %p162
      %p164 = scmp.ne.s32.totalorder %s156, %s158
      %p165 = scmp.eq.s32.totalorder %s22, 1
      %p166 = por %p164, %p165
      %p167 = scmp.ne.s32.totalorder %s158, %s159
      %p168 = scmp.eq.s32.totalorder %s22, 0
      %p169 = por %p167, %p168
      %p170 = scmp.ne.s32.totalorder %s158, %s159
      %p171 = scmp.eq.s32.totalorder %s23, 1
      %p172 = por %p170, %p171
      %p174 = scmp.ne.s32.totalorder %s159, %s173
      %p175 = scmp.eq.s32.totalorder %s23, 0
      %p176 = por %p174, %p175
      %s177 = ssub.s32 %s17, %s24
      %p178 = scmp.eq.s32.totalorder %s177, 0
      %s180 = sadd.s32 %s179, 1
      %s181 = scalar_select %p178, %s179, %s180
      %p184 = pneg %p178
      %p185 = scmp.eq.s32.totalorder %s17, 1
      %p186 = por %p184, %p185
      %p187 = scmp.ne.s32.totalorder %s179, %s182
      %p188 = scmp.eq.s32.totalorder %s17, 0
      %p189 = por %p187, %p188
      %p190 = scmp.ne.s32.totalorder %s179, %s182
      %p191 = scmp.eq.s32.totalorder %s22, 1
      %p192 = por %p190, %p191
      %p193 = scmp.ne.s32.totalorder %s182, %s183
      %p194 = scmp.eq.s32.totalorder %s22, 0
      %p195 = por %p193, %p194
      %p196 = scmp.ne.s32.totalorder %s182, %s183
      %p197 = scmp.eq.s32.totalorder %s23, 1
      %p198 = por %p196, %p197
      %p200 = scmp.ne.s32.totalorder %s183, %s199
      %p201 = scmp.eq.s32.totalorder %s23, 0
      %p202 = por %p200, %p201
      %p203 = scmp.le.s32.totalorder 1, %s17
      %p204 = scmp.lt.s32.totalorder %s17, 3
      %p205 = pnand %p203, %p204
      %p206 = pneg %p205
      // Predicated region
      $region9: #{tpu_custom_call.1} parent=5 // pred_check
        _
      $region10: #{tpu_custom_call.1} parent=5 // pred_check_branch
        %208 = sbr.rel (%p205) target = $region12
      $region11: #{tpu_custom_call.1} parent=5 // pred_region
        %s209 = ssub.s32 %s17, 1
        // Predicated region
        $region13: #{tpu_custom_call.1} parent=11 // pred_check
          %p210 = pneg %p64
        $region14: #{tpu_custom_call.1} parent=11 // pred_check_branch
          %212 = sbr.rel (%p210) target = $region16
        $region15: #{tpu_custom_call.1} parent=11 // pred_region
          _
        $region16: #{tpu_custom_call.1} parent=11 // pred_fallthru
          _
        // Predicated region
        $region17: #{tpu_custom_call.1} parent=11 // pred_check
          %p213 = pneg %p85
        $region18: #{tpu_custom_call.1} parent=11 // pred_check_branch
          %215 = sbr.rel (%p213) target = $region20
        $region19: #{tpu_custom_call.1} parent=11 // pred_region
          _
        $region20: #{tpu_custom_call.1} parent=11 // pred_fallthru
          _
        // Predicated region
        $region21: #{tpu_custom_call.1} parent=11 // pred_check
          %p216 = pneg %p106
        $region22: #{tpu_custom_call.1} parent=11 // pred_check_branch
          %218 = sbr.rel (%p216) target = $region24
        $region23: #{tpu_custom_call.1} parent=11 // pred_region
          %s220 = ssub.s32 9216, 9216
          %221 = vsyncadd [#allocation6], %s220
          %s222 = sshll.u32 [#allocation5], 4
          %s223 = int_to_ptr.vmem [resolvable:$true] %s222
          %228 = dma.hbm_to_vmem [thread:$0]  %s3, 9216, %s223, [#allocation6], 64, 64, 4
        $region24: #{tpu_custom_call.1} parent=11 // pred_fallthru
          _
        // Predicated region
        $region25: #{tpu_custom_call.1} parent=11 // pred_check
          %p229 = pneg %p127
        $region26: #{tpu_custom_call.1} parent=11 // pred_check_branch
          %231 = sbr.rel (%p229) target = $region28
        $region27: #{tpu_custom_call.1} parent=11 // pred_region
          _
        $region28: #{tpu_custom_call.1} parent=11 // pred_fallthru
          _
        // Predicated region
        $region29: #{tpu_custom_call.1} parent=11 // pred_check
          %p232 = pneg %p148
        $region30: #{tpu_custom_call.1} parent=11 // pred_check_branch
          %234 = sbr.rel (%p232) target = $region32
        $region31: #{tpu_custom_call.1} parent=11 // pred_region
          _
        $region32: #{tpu_custom_call.1} parent=11 // pred_fallthru
          _
        // Predicated region
        $region33: #{tpu_custom_call.1} parent=11 // pred_check
          %p235 = pneg %p169
        $region34: #{tpu_custom_call.1} parent=11 // pred_check_branch
          %237 = sbr.rel (%p235) target = $region36
        $region35: #{tpu_custom_call.1} parent=11 // pred_region
          _
        $region36: #{tpu_custom_call.1} parent=11 // pred_fallthru
          _
      $region12: #{tpu_custom_call.1} parent=5 // pred_fallthru
        _
      %p238 = scmp.lt.s32.totalorder %s17, 2
      // Predicated region
      $region37: #{tpu_custom_call.1} parent=5 // pred_check
        %p239 = pneg %p238
      $region38: #{tpu_custom_call.1} parent=5 // pred_check_branch
        %241 = sbr.rel (%p239) target = $region40
      $region39: #{tpu_custom_call.1} parent=5 // pred_region
        // Predicated region
        $region41: #{tpu_custom_call.1} parent=39 // pred_check
          %p242 = pneg %p37
        $region42: #{tpu_custom_call.1} parent=39 // pred_check_branch
          %244 = sbr.rel (%p242) target = $region44
        $region43: #{tpu_custom_call.1} parent=39 // pred_region
          %p245 = scmp.lt.s32.totalorder %s17, 1
          %s246 = scalar_select %p245, %s17, 1
          %s247 = smul.addr %s246, 72
          %s248 = smul.addr %s247, 4
          %s249 = scalar_lea.vmem %s0, %s248
        $region44: #{tpu_custom_call.1} parent=39 // pred_fallthru
          _
      $region40: #{tpu_custom_call.1} parent=5 // pred_fallthru
        _
      %p250 = scmp.le.s32.totalorder 1, %s17
      %p251 = scmp.lt.s32.totalorder %s17, 3
      %p252 = pnand %p250, %p251
      %p253 = pneg %p252
      // Predicated region
      $region45: #{tpu_custom_call.1} parent=5 // pred_check
        _
      $region46: #{tpu_custom_call.1} parent=5 // pred_check_branch
        %255 = sbr.rel (%p252) target = $region48
      $region47: #{tpu_custom_call.1} parent=5 // pred_region
        %s256 = ssub.s32 %s17, 1
        // Predicated region
        $region49: #{tpu_custom_call.1} parent=47 // pred_check
          %p257 = pneg %p106
        $region50: #{tpu_custom_call.1} parent=47 // pred_check_branch
          %259 = sbr.rel (%p257) target = $region52
        $region51: #{tpu_custom_call.1} parent=47 // pred_region
          %260 = dma.done [#allocation6], 9216
        $region52: #{tpu_custom_call.1} parent=47 // pred_fallthru
          _
        %p261 = scmp.lt.s32.totalorder %s22, 1
        %s262 = scalar_select %p261, %s22, 1
        %s263 = smul.addr %s262, 72
        %s264 = smul.addr %s263, 4
        %s265 = scalar_lea.vmem %s0, %s264
        %p266 = pneg %p43
        %p267 = pneg %p40
        %p268 = pneg %p64
        %p269 = pneg %p61
        %p270 = pneg %p85
        %p271 = pneg %p82
        %p272 = pneg %p106
        %p273 = pneg %p103
        %p274 = pneg %p127
        %p275 = pneg %p124
        %p276 = pneg %p148
        %p277 = pneg %p145
        %p278 = pneg %p169
        %p279 = pneg %p166
        %p280 = pneg %p195
        %p281 = pneg %p192
        %s282 = sand.u32 %s182, 1
        %s283 = scalar_lea.sflag [#allocation7], %s282
        %s284 = sand.u32 %s182, 1
        %s285 = smul.addr %s284, 64
        %s286 = scalar_lea.vmem [#allocation8], %s285
        %p287 = scmp.lt.s32.totalorder %s22, 1
        %s288 = scalar_select %p287, %s22, 1
        %s289 = smul.addr %s288, 72
        %s290 = smul.addr %s289, 4
        %s291 = scalar_lea.vmem %s0, %s290
        %v293 = vld [vmem:[%s291] sm:$0xf]
        %v294 = vld [vmem:[%s291 + $0x8] sm:$0xf]
        %v295 = vld [vmem:[%s291 + $0x10] sm:$0xf]
        %v296 = vld [vmem:[%s291 + $0x18] sm:$0xf]
        %v297 = vld [vmem:[%s291 + $0x20] sm:$0xf]
        %v298 = vld [vmem:[%s291 + $0x28] sm:$0xf]
        %v299 = vld [vmem:[%s291 + $0x30] sm:$0xf]
        %v300 = vld [vmem:[%s291 + $0x38] sm:$0xf]
        %v309 = vunpack.c.l.b16 %v293
        %v310 = vunpack.c.l.b16 %v294
        %v311 = vunpack.c.l.b16 %v295
        %v312 = vunpack.c.l.b16 %v296
        %v313 = vunpack.c.l.b16 %v297
        %v314 = vunpack.c.l.b16 %v298
        %v315 = vunpack.c.l.b16 %v299
        %v316 = vunpack.c.l.b16 %v300
        %v317 = vpack.c.b16 %v310, %v309
        %v318 = vpack.c.b16 %v312, %v311
        %v319 = vpack.c.b16 %v314, %v313
        %v320 = vpack.c.b16 %v316, %v315
        %325 = vst [vmem:[#allocation2] sm:$0xff] %v317
        %326 = vst [vmem:[#allocation2 + $0x48] sm:$0xff] %v318
        %327 = vst [vmem:[#allocation2 + $0x90] sm:$0xff] %v319
        %328 = vst [vmem:[#allocation2 + $0xd8] sm:$0xff] %v320
        %s329 = scalar_lea.vmem %s291, 72
        %v330 = vld [vmem:[%s329] sm:$0xf]
        %v331 = vld [vmem:[%s329 + $0x8] sm:$0xf]
        %v332 = vld [vmem:[%s329 + $0x10] sm:$0xf]
        %v333 = vld [vmem:[%s329 + $0x18] sm:$0xf]
        %v334 = vld [vmem:[%s329 + $0x20] sm:$0xf]
        %v335 = vld [vmem:[%s329 + $0x28] sm:$0xf]
        %v336 = vld [vmem:[%s329 + $0x30] sm:$0xf]
        %v337 = vld [vmem:[%s329 + $0x38] sm:$0xf]
        %v346 = vunpack.c.l.b16 %v330
        %v347 = vunpack.c.l.b16 %v331
        %v348 = vunpack.c.l.b16 %v332
        %v349 = vunpack.c.l.b16 %v333
        %v350 = vunpack.c.l.b16 %v334
        %v351 = vunpack.c.l.b16 %v335
        %v352 = vunpack.c.l.b16 %v336
        %v353 = vunpack.c.l.b16 %v337
        %v354 = vpack.c.b16 %v347, %v346
        %v355 = vpack.c.b16 %v349, %v348
        %v356 = vpack.c.b16 %v351, %v350
        %v357 = vpack.c.b16 %v353, %v352
        %362 = vst [vmem:[#allocation2 + $0x8] sm:$0xff] %v354
        %363 = vst [vmem:[#allocation2 + $0x50] sm:$0xff] %v355
        %364 = vst [vmem:[#allocation2 + $0x98] sm:$0xff] %v356
        %365 = vst [vmem:[#allocation2 + $0xe0] sm:$0xff] %v357
        %v366 = vld [vmem:[%s291] sm:$0xf]
        %v367 = vld [vmem:[%s291 + $0x4] sm:$0x1]
        %v368 = vld [vmem:[%s291 + $0x8] sm:$0xf]
        %v369 = vld [vmem:[%s291 + $0xc] sm:$0x1]
        %v370 = vld [vmem:[%s291 + $0x10] sm:$0xf]
        %v371 = vld [vmem:[%s291 + $0x14] sm:$0x1]
        %v372 = vld [vmem:[%s291 + $0x18] sm:$0xf]
        %v373 = vld [vmem:[%s291 + $0x1c] sm:$0x1]
        %v374 = vld [vmem:[%s291 + $0x20] sm:$0xf]
        %v375 = vld [vmem:[%s291 + $0x24] sm:$0x1]
        %v376 = vld [vmem:[%s291 + $0x28] sm:$0xf]
        %v377 = vld [vmem:[%s291 + $0x2c] sm:$0x1]
        %v378 = vld [vmem:[%s291 + $0x30] sm:$0xf]
        %v379 = vld [vmem:[%s291 + $0x34] sm:$0x1]
        %v380 = vld [vmem:[%s291 + $0x38] sm:$0xf]
        %v381 = vld [vmem:[%s291 + $0x3c] sm:$0x1]
        %vm382 = vsmask.f32 3328
        %vm383 = vsmask.f32 7440
        %vm384 = vmor %vm382, %vm383
        %v386 = vshrl.u32 %v366, 16
        %v388 = vrot.slane %v386, 4
        %v389 = vshll.u32 %v366, 16
        %v391 = vrot.slane %v389, 5
        %v392 = vor.u32 %v388, %v391
        %v393 = vrot.slane %v392, 4
        %v395 = vshll.u32 %v367, 16
        %v397 = vrot.slane %v395, 5
        %v398 = vsel %vm384, %v393, %v397
        %v400 = vshrl.u32 %v368, 16
        %v402 = vrot.slane %v400, 4
        %v403 = vshll.u32 %v368, 16
        %v405 = vrot.slane %v403, 5
        %v406 = vor.u32 %v402, %v405
        %v407 = vrot.slane %v406, 4
        %v409 = vshll.u32 %v369, 16
        %v411 = vrot.slane %v409, 5
        %v412 = vsel %vm384, %v407, %v411
        %v414 = vshrl.u32 %v370, 16
        %v416 = vrot.slane %v414, 4
        %v417 = vshll.u32 %v370, 16
        %v419 = vrot.slane %v417, 5
        %v420 = vor.u32 %v416, %v419
        %v421 = vrot.slane %v420, 4
        %v423 = vshll.u32 %v371, 16
        %v425 = vrot.slane %v423, 5
        %v426 = vsel %vm384, %v421, %v425
        %v428 = vshrl.u32 %v372, 16
        %v430 = vrot.slane %v428, 4
        %v431 = vshll.u32 %v372, 16
        %v433 = vrot.slane %v431, 5
        %v434 = vor.u32 %v430, %v433
        %v435 = vrot.slane %v434, 4
        %v437 = vshll.u32 %v373, 16
        %v439 = vrot.slane %v437, 5
        %v440 = vsel %vm384, %v435, %v439
        %v442 = vshrl.u32 %v374, 16
        %v444 = vrot.slane %v442, 4
        %v445 = vshll.u32 %v374, 16
        %v447 = vrot.slane %v445, 5
        %v448 = vor.u32 %v444, %v447
        %v449 = vrot.slane %v448, 4
        %v451 = vshll.u32 %v375, 16
        %v453 = vrot.slane %v451, 5
        %v454 = vsel %vm384, %v449, %v453
        %v456 = vshrl.u32 %v376, 16
        %v458 = vrot.slane %v456, 4
        %v459 = vshll.u32 %v376, 16
        %v461 = vrot.slane %v459, 5
        %v462 = vor.u32 %v458, %v461
        %v463 = vrot.slane %v462, 4
        %v465 = vshll.u32 %v377, 16
        %v467 = vrot.slane %v465, 5
        %v468 = vsel %vm384, %v463, %v467
        %v470 = vshrl.u32 %v378, 16
        %v472 = vrot.slane %v470, 4
        %v473 = vshll.u32 %v378, 16
        %v475 = vrot.slane %v473, 5
        %v476 = vor.u32 %v472, %v475
        %v477 = vrot.slane %v476, 4
        %v479 = vshll.u32 %v379, 16
        %v481 = vrot.slane %v479, 5
        %v482 = vsel %vm384, %v477, %v481
        %v484 = vshrl.u32 %v380, 16
        %v486 = vrot.slane %v484, 4
        %v487 = vshll.u32 %v380, 16
        %v489 = vrot.slane %v487, 5
        %v490 = vor.u32 %v486, %v489
        %v491 = vrot.slane %v490, 4
        %v493 = vshll.u32 %v381, 16
        %v495 = vrot.slane %v493, 5
        %v496 = vsel %vm384, %v491, %v495
        %v497 = vunpack.c.l.b16 %v398
        %v498 = vunpack.c.l.b16 %v412
        %v499 = vunpack.c.l.b16 %v426
        %v500 = vunpack.c.l.b16 %v440
        %v501 = vunpack.c.l.b16 %v454
        %v502 = vunpack.c.l.b16 %v468
        %v503 = vunpack.c.l.b16 %v482
        %v504 = vunpack.c.l.b16 %v496
        %v505 = vpack.c.b16 %v498, %v497
        %v506 = vpack.c.b16 %v500, %v499
        %v507 = vpack.c.b16 %v502, %v501
        %v508 = vpack.c.b16 %v504, %v503
        %513 = vst [vmem:[#allocation2 + $0x10] sm:$0xff] %v505
        %514 = vst [vmem:[#allocation2 + $0x58] sm:$0xff] %v506
        %515 = vst [vmem:[#allocation2 + $0xa0] sm:$0xff] %v507
        %516 = vst [vmem:[#allocation2 + $0xe8] sm:$0xff] %v508
        %s517 = scalar_lea.vmem %s291, 144
        %v518 = vld [vmem:[%s517] sm:$0xf]
        %v519 = vld [vmem:[%s517 + $0x8] sm:$0xf]
        %v520 = vld [vmem:[%s517 + $0x10] sm:$0xf]
        %v521 = vld [vmem:[%s517 + $0x18] sm:$0xf]
        %v522 = vld [vmem:[%s517 + $0x20] sm:$0xf]
        %v523 = vld [vmem:[%s517 + $0x28] sm:$0xf]
        %v524 = vld [vmem:[%s517 + $0x30] sm:$0xf]
        %v525 = vld [vmem:[%s517 + $0x38] sm:$0xf]
        %v534 = vunpack.c.l.b16 %v518
        %v535 = vunpack.c.l.b16 %v519
        %v536 = vunpack.c.l.b16 %v520
        %v537 = vunpack.c.l.b16 %v521
        %v538 = vunpack.c.l.b16 %v522
        %v539 = vunpack.c.l.b16 %v523
        %v540 = vunpack.c.l.b16 %v524
        %v541 = vunpack.c.l.b16 %v525
        %v542 = vpack.c.b16 %v535, %v534
        %v543 = vpack.c.b16 %v537, %v536
        %v544 = vpack.c.b16 %v539, %v538
        %v545 = vpack.c.b16 %v541, %v540
        %550 = vst [vmem:[#allocation2 + $0x18] sm:$0xff] %v542
        %551 = vst [vmem:[#allocation2 + $0x60] sm:$0xff] %v543
        %552 = vst [vmem:[#allocation2 + $0xa8] sm:$0xff] %v544
        %553 = vst [vmem:[#allocation2 + $0xf0] sm:$0xff] %v545
        %s554 = scalar_lea.vmem %s291, 216
        %v555 = vld [vmem:[%s554] sm:$0xf]
        %v556 = vld [vmem:[%s554 + $0x8] sm:$0xf]
        %v557 = vld [vmem:[%s554 + $0x10] sm:$0xf]
        %v558 = vld [vmem:[%s554 + $0x18] sm:$0xf]
        %v559 = vld [vmem:[%s554 + $0x20] sm:$0xf]
        %v560 = vld [vmem:[%s554 + $0x28] sm:$0xf]
        %v561 = vld [vmem:[%s554 + $0x30] sm:$0xf]
        %v562 = vld [vmem:[%s554 + $0x38] sm:$0xf]
        %v571 = vunpack.c.l.b16 %v555
        %v572 = vunpack.c.l.b16 %v556
        %v573 = vunpack.c.l.b16 %v557
        %v574 = vunpack.c.l.b16 %v558
        %v575 = vunpack.c.l.b16 %v559
        %v576 = vunpack.c.l.b16 %v560
        %v577 = vunpack.c.l.b16 %v561
        %v578 = vunpack.c.l.b16 %v562
        %v579 = vpack.c.b16 %v572, %v571
        %v580 = vpack.c.b16 %v574, %v573
        %v581 = vpack.c.b16 %v576, %v575
        %v582 = vpack.c.b16 %v578, %v577
        %587 = vst [vmem:[#allocation2 + $0x20] sm:$0xff] %v579
        %588 = vst [vmem:[#allocation2 + $0x68] sm:$0xff] %v580
        %589 = vst [vmem:[#allocation2 + $0xb0] sm:$0xff] %v581
        %590 = vst [vmem:[#allocation2 + $0xf8] sm:$0xff] %v582
        %v591 = vld [vmem:[%s517] sm:$0xf]
        %v592 = vld [vmem:[%s517 + $0x4] sm:$0x1]
        %v593 = vld [vmem:[%s517 + $0x8] sm:$0xf]
        %v594 = vld [vmem:[%s517 + $0xc] sm:$0x1]
        %v595 = vld [vmem:[%s517 + $0x10] sm:$0xf]
        %v596 = vld [vmem:[%s517 + $0x14] sm:$0x1]
        %v597 = vld [vmem:[%s517 + $0x18] sm:$0xf]
        %v598 = vld [vmem:[%s517 + $0x1c] sm:$0x1]
        %v599 = vld [vmem:[%s517 + $0x20] sm:$0xf]
        %v600 = vld [vmem:[%s517 + $0x24] sm:$0x1]
        %v601 = vld [vmem:[%s517 + $0x28] sm:$0xf]
        %v602 = vld [vmem:[%s517 + $0x2c] sm:$0x1]
        %v603 = vld [vmem:[%s517 + $0x30] sm:$0xf]
        %v604 = vld [vmem:[%s517 + $0x34] sm:$0x1]
        %v605 = vld [vmem:[%s517 + $0x38] sm:$0xf]
        %v606 = vld [vmem:[%s517 + $0x3c] sm:$0x1]
        %v608 = vshrl.u32 %v591, 16
        %v610 = vrot.slane %v608, 4
        %v611 = vshll.u32 %v591, 16
        %v613 = vrot.slane %v611, 5
        %v614 = vor.u32 %v610, %v613
        %v615 = vrot.slane %v614, 4
        %v617 = vshll.u32 %v592, 16
        %v619 = vrot.slane %v617, 5
        %v620 = vsel %vm384, %v615, %v619
        %v622 = vshrl.u32 %v593, 16
        %v624 = vrot.slane %v622, 4
        %v625 = vshll.u32 %v593, 16
        %v627 = vrot.slane %v625, 5
        %v628 = vor.u32 %v624, %v627
        %v629 = vrot.slane %v628, 4
        %v631 = vshll.u32 %v594, 16
        %v633 = vrot.slane %v631, 5
        %v634 = vsel %vm384, %v629, %v633
        %v636 = vshrl.u32 %v595, 16
        %v638 = vrot.slane %v636, 4
        %v639 = vshll.u32 %v595, 16
        %v641 = vrot.slane %v639, 5
        %v642 = vor.u32 %v638, %v641
        %v643 = vrot.slane %v642, 4
        %v645 = vshll.u32 %v596, 16
        %v647 = vrot.slane %v645, 5
        %v648 = vsel %vm384, %v643, %v647
        %v650 = vshrl.u32 %v597, 16
        %v652 = vrot.slane %v650, 4
        %v653 = vshll.u32 %v597, 16
        %v655 = vrot.slane %v653, 5
        %v656 = vor.u32 %v652, %v655
        %v657 = vrot.slane %v656, 4
        %v659 = vshll.u32 %v598, 16
        %v661 = vrot.slane %v659, 5
        %v662 = vsel %vm384, %v657, %v661
        %v664 = vshrl.u32 %v599, 16
        %v666 = vrot.slane %v664, 4
        %v667 = vshll.u32 %v599, 16
        %v669 = vrot.slane %v667, 5
        %v670 = vor.u32 %v666, %v669
        %v671 = vrot.slane %v670, 4
        %v673 = vshll.u32 %v600, 16
        %v675 = vrot.slane %v673, 5
        %v676 = vsel %vm384, %v671, %v675
        %v678 = vshrl.u32 %v601, 16
        %v680 = vrot.slane %v678, 4
        %v681 = vshll.u32 %v601, 16
        %v683 = vrot.slane %v681, 5
        %v684 = vor.u32 %v680, %v683
        %v685 = vrot.slane %v684, 4
        %v687 = vshll.u32 %v602, 16
        %v689 = vrot.slane %v687, 5
        %v690 = vsel %vm384, %v685, %v689
        %v692 = vshrl.u32 %v603, 16
        %v694 = vrot.slane %v692, 4
        %v695 = vshll.u32 %v603, 16
        %v697 = vrot.slane %v695, 5
        %v698 = vor.u32 %v694, %v697
        %v699 = vrot.slane %v698, 4
        %v701 = vshll.u32 %v604, 16
        %v703 = vrot.slane %v701, 5
        %v704 = vsel %vm384, %v699, %v703
        %v706 = vshrl.u32 %v605, 16
        %v708 = vrot.slane %v706, 4
        %v709 = vshll.u32 %v605, 16
        %v711 = vrot.slane %v709, 5
        %v712 = vor.u32 %v708, %v711
        %v713 = vrot.slane %v712, 4
        %v715 = vshll.u32 %v606, 16
        %v717 = vrot.slane %v715, 5
        %v718 = vsel %vm384, %v713, %v717
        %v719 = vunpack.c.l.b16 %v620
        %v720 = vunpack.c.l.b16 %v634
        %v721 = vunpack.c.l.b16 %v648
        %v722 = vunpack.c.l.b16 %v662
        %v723 = vunpack.c.l.b16 %v676
        %v724 = vunpack.c.l.b16 %v690
        %v725 = vunpack.c.l.b16 %v704
        %v726 = vunpack.c.l.b16 %v718
        %v727 = vpack.c.b16 %v720, %v719
        %v728 = vpack.c.b16 %v722, %v721
        %v729 = vpack.c.b16 %v724, %v723
        %v730 = vpack.c.b16 %v726, %v725
        %735 = vst [vmem:[#allocation2 + $0x28] sm:$0xff] %v727
        %736 = vst [vmem:[#allocation2 + $0x70] sm:$0xff] %v728
        %737 = vst [vmem:[#allocation2 + $0xb8] sm:$0xff] %v729
        %738 = vst [vmem:[#allocation2 + $0x100] sm:$0xff] %v730
        %s739 = scalar_lea.vmem %s291, 8
        %v740 = vld [vmem:[%s739] sm:$0xf]
        %v741 = vld [vmem:[%s739 + $0x8] sm:$0xf]
        %v742 = vld [vmem:[%s739 + $0x10] sm:$0xf]
        %v743 = vld [vmem:[%s739 + $0x18] sm:$0xf]
        %v744 = vld [vmem:[%s739 + $0x20] sm:$0xf]
        %v745 = vld [vmem:[%s739 + $0x28] sm:$0xf]
        %v746 = vld [vmem:[%s739 + $0x30] sm:$0xf]
        %v747 = vld [vmem:[%s739 + $0x38] sm:$0xf]
        %v756 = vunpack.c.l.b16 %v740
        %v757 = vunpack.c.l.b16 %v741
        %v758 = vunpack.c.l.b16 %v742
        %v759 = vunpack.c.l.b16 %v743
        %v760 = vunpack.c.l.b16 %v744
        %v761 = vunpack.c.l.b16 %v745
        %v762 = vunpack.c.l.b16 %v746
        %v763 = vunpack.c.l.b16 %v747
        %v764 = vpack.c.b16 %v757, %v756
        %v765 = vpack.c.b16 %v759, %v758
        %v766 = vpack.c.b16 %v761, %v760
        %v767 = vpack.c.b16 %v763, %v762
        %772 = vst [vmem:[#allocation2 + $0x30] sm:$0xff] %v764
        %773 = vst [vmem:[#allocation2 + $0x78] sm:$0xff] %v765
        %774 = vst [vmem:[#allocation2 + $0xc0] sm:$0xff] %v766
        %775 = vst [vmem:[#allocation2 + $0x108] sm:$0xff] %v767
        %s776 = scalar_lea.vmem %s291, 80
        %v777 = vld [vmem:[%s776] sm:$0xf]
        %v778 = vld [vmem:[%s776 + $0x8] sm:$0xf]
        %v779 = vld [vmem:[%s776 + $0x10] sm:$0xf]
        %v780 = vld [vmem:[%s776 + $0x18] sm:$0xf]
        %v781 = vld [vmem:[%s776 + $0x20] sm:$0xf]
        %v782 = vld [vmem:[%s776 + $0x28] sm:$0xf]
        %v783 = vld [vmem:[%s776 + $0x30] sm:$0xf]
        %v784 = vld [vmem:[%s776 + $0x38] sm:$0xf]
        %v793 = vunpack.c.l.b16 %v777
        %v794 = vunpack.c.l.b16 %v778
        %v795 = vunpack.c.l.b16 %v779
        %v796 = vunpack.c.l.b16 %v780
        %v797 = vunpack.c.l.b16 %v781
        %v798 = vunpack.c.l.b16 %v782
        %v799 = vunpack.c.l.b16 %v783
        %v800 = vunpack.c.l.b16 %v784
        %v801 = vpack.c.b16 %v794, %v793
        %v802 = vpack.c.b16 %v796, %v795
        %v803 = vpack.c.b16 %v798, %v797
        %v804 = vpack.c.b16 %v800, %v799
        %809 = vst [vmem:[#allocation2 + $0x38] sm:$0xff] %v801
        %810 = vst [vmem:[#allocation2 + $0x80] sm:$0xff] %v802
        %811 = vst [vmem:[#allocation2 + $0xc8] sm:$0xff] %v803
        %812 = vst [vmem:[#allocation2 + $0x110] sm:$0xff] %v804
        %v813 = vld [vmem:[%s739] sm:$0xf]
        %v814 = vld [vmem:[%s739 + $0x4] sm:$0x1]
        %v815 = vld [vmem:[%s739 + $0x8] sm:$0xf]
        %v816 = vld [vmem:[%s739 + $0xc] sm:$0x1]
        %v817 = vld [vmem:[%s739 + $0x10] sm:$0xf]
        %v818 = vld [vmem:[%s739 + $0x14] sm:$0x1]
        %v819 = vld [vmem:[%s739 + $0x18] sm:$0xf]
        %v820 = vld [vmem:[%s739 + $0x1c] sm:$0x1]
        %v821 = vld [vmem:[%s739 + $0x20] sm:$0xf]
        %v822 = vld [vmem:[%s739 + $0x24] sm:$0x1]
        %v823 = vld [vmem:[%s739 + $0x28] sm:$0xf]
        %v824 = vld [vmem:[%s739 + $0x2c] sm:$0x1]
        %v825 = vld [vmem:[%s739 + $0x30] sm:$0xf]
        %v826 = vld [vmem:[%s739 + $0x34] sm:$0x1]
        %v827 = vld [vmem:[%s739 + $0x38] sm:$0xf]
        %v828 = vld [vmem:[%s739 + $0x3c] sm:$0x1]
        %v830 = vshrl.u32 %v813, 16
        %v832 = vrot.slane %v830, 4
        %v833 = vshll.u32 %v813, 16
        %v835 = vrot.slane %v833, 5
        %v836 = vor.u32 %v832, %v835
        %v837 = vrot.slane %v836, 4
        %v839 = vshll.u32 %v814, 16
        %v841 = vrot.slane %v839, 5
        %v842 = vsel %vm384, %v837, %v841
        %v844 = vshrl.u32 %v815, 16
        %v846 = vrot.slane %v844, 4
        %v847 = vshll.u32 %v815, 16
        %v849 = vrot.slane %v847, 5
        %v850 = vor.u32 %v846, %v849
        %v851 = vrot.slane %v850, 4
        %v853 = vshll.u32 %v816, 16
        %v855 = vrot.slane %v853, 5
        %v856 = vsel %vm384, %v851, %v855
        %v858 = vshrl.u32 %v817, 16
        %v860 = vrot.slane %v858, 4
        %v861 = vshll.u32 %v817, 16
        %v863 = vrot.slane %v861, 5
        %v864 = vor.u32 %v860, %v863
        %v865 = vrot.slane %v864, 4
        %v867 = vshll.u32 %v818, 16
        %v869 = vrot.slane %v867, 5
        %v870 = vsel %vm384, %v865, %v869
        %v872 = vshrl.u32 %v819, 16
        %v874 = vrot.slane %v872, 4
        %v875 = vshll.u32 %v819, 16
        %v877 = vrot.slane %v875, 5
        %v878 = vor.u32 %v874, %v877
        %v879 = vrot.slane %v878, 4
        %v881 = vshll.u32 %v820, 16
        %v883 = vrot.slane %v881, 5
        %v884 = vsel %vm384, %v879, %v883
        %v886 = vshrl.u32 %v821, 16
        %v888 = vrot.slane %v886, 4
        %v889 = vshll.u32 %v821, 16
        %v891 = vrot.slane %v889, 5
        %v892 = vor.u32 %v888, %v891
        %v893 = vrot.slane %v892, 4
        %v895 = vshll.u32 %v822, 16
        %v897 = vrot.slane %v895, 5
        %v898 = vsel %vm384, %v893, %v897
        %v900 = vshrl.u32 %v823, 16
        %v902 = vrot.slane %v900, 4
        %v903 = vshll.u32 %v823, 16
        %v905 = vrot.slane %v903, 5
        %v906 = vor.u32 %v902, %v905
        %v907 = vrot.slane %v906, 4
        %v909 = vshll.u32 %v824, 16
        %v911 = vrot.slane %v909, 5
        %v912 = vsel %vm384, %v907, %v911
        %v914 = vshrl.u32 %v825, 16
        %v916 = vrot.slane %v914, 4
        %v917 = vshll.u32 %v825, 16
        %v919 = vrot.slane %v917, 5
        %v920 = vor.u32 %v916, %v919
        %v921 = vrot.slane %v920, 4
        %v923 = vshll.u32 %v826, 16
        %v925 = vrot.slane %v923, 5
        %v926 = vsel %vm384, %v921, %v925
        %v928 = vshrl.u32 %v827, 16
        %v930 = vrot.slane %v928, 4
        %v931 = vshll.u32 %v827, 16
        %v933 = vrot.slane %v931, 5
        %v934 = vor.u32 %v930, %v933
        %v935 = vrot.slane %v934, 4
        %v937 = vshll.u32 %v828, 16
        %v939 = vrot.slane %v937, 5
        %v940 = vsel %vm384, %v935, %v939
        %v941 = vunpack.c.l.b16 %v842
        %v942 = vunpack.c.l.b16 %v856
        %v943 = vunpack.c.l.b16 %v870
        %v944 = vunpack.c.l.b16 %v884
        %v945 = vunpack.c.l.b16 %v898
        %v946 = vunpack.c.l.b16 %v912
        %v947 = vunpack.c.l.b16 %v926
        %v948 = vunpack.c.l.b16 %v940
        %v949 = vpack.c.b16 %v942, %v941
        %v950 = vpack.c.b16 %v944, %v943
        %v951 = vpack.c.b16 %v946, %v945
        %v952 = vpack.c.b16 %v948, %v947
        %957 = vst [vmem:[#allocation2 + $0x40] sm:$0xff] %v949
        %958 = vst [vmem:[#allocation2 + $0x88] sm:$0xff] %v950
        %959 = vst [vmem:[#allocation2 + $0xd0] sm:$0xff] %v951
        %960 = vst [vmem:[#allocation2 + $0x118] sm:$0xff] %v952
        %v961 = vld [vmem:[#allocation2] sm:$0xff]
        %v962 = vld [vmem:[#allocation2 + $0x8] sm:$0xff]
        %v963 = vld [vmem:[#allocation2 + $0x10] sm:$0xff]
        %v964 = vld [vmem:[#allocation2 + $0x18] sm:$0xff]
        %v965 = vld [vmem:[#allocation2 + $0x20] sm:$0xff]
        %v966 = vld [vmem:[#allocation2 + $0x28] sm:$0xff]
        %v967 = vld [vmem:[#allocation2 + $0x30] sm:$0xff]
        %v968 = vld [vmem:[#allocation2 + $0x38] sm:$0xff]
        %v969 = vld [vmem:[#allocation2 + $0x40] sm:$0xff]
        %v970 = vld [vmem:[#allocation2 + $0x48] sm:$0xff]
        %v971 = vld [vmem:[#allocation2 + $0x50] sm:$0xff]
        %v972 = vld [vmem:[#allocation2 + $0x58] sm:$0xff]
        %v973 = vld [vmem:[#allocation2 + $0x60] sm:$0xff]
        %v974 = vld [vmem:[#allocation2 + $0x68] sm:$0xff]
        %v975 = vld [vmem:[#allocation2 + $0x70] sm:$0xff]
        %v976 = vld [vmem:[#allocation2 + $0x78] sm:$0xff]
        %v977 = vld [vmem:[#allocation2 + $0x80] sm:$0xff]
        %v978 = vld [vmem:[#allocation2 + $0x88] sm:$0xff]
        %v979 = vld [vmem:[#allocation2 + $0x90] sm:$0xff]
        %v980 = vld [vmem:[#allocation2 + $0x98] sm:$0xff]
        %v981 = vld [vmem:[#allocation2 + $0xa0] sm:$0xff]
        %v982 = vld [vmem:[#allocation2 + $0xa8] sm:$0xff]
        %v983 = vld [vmem:[#allocation2 + $0xb0] sm:$0xff]
        %v984 = vld [vmem:[#allocation2 + $0xb8] sm:$0xff]
        %v985 = vld [vmem:[#allocation2 + $0xc0] sm:$0xff]
        %v986 = vld [vmem:[#allocation2 + $0xc8] sm:$0xff]
        %v987 = vld [vmem:[#allocation2 + $0xd0] sm:$0xff]
        %v988 = vld [vmem:[#allocation2 + $0xd8] sm:$0xff]
        %v989 = vld [vmem:[#allocation2 + $0xe0] sm:$0xff]
        %v990 = vld [vmem:[#allocation2 + $0xe8] sm:$0xff]
        %v991 = vld [vmem:[#allocation2 + $0xf0] sm:$0xff]
        %v992 = vld [vmem:[#allocation2 + $0xf8] sm:$0xff]
        %v993 = vld [vmem:[#allocation2 + $0x100] sm:$0xff]
        %v994 = vld [vmem:[#allocation2 + $0x108] sm:$0xff]
        %v995 = vld [vmem:[#allocation2 + $0x110] sm:$0xff]
        %v996 = vld [vmem:[#allocation2 + $0x118] sm:$0xff]
        %v997 = vld [vmem:[%s1] sm:$0xf]
        %v998 = vld [vmem:[%s1 + $0x4] sm:$0xf]
        %v999 = vld [vmem:[%s1 + $0x8] sm:$0xf]
        %v1000 = vld [vmem:[%s1 + $0xc] sm:$0xf]
        %v1001 = vld [vmem:[%s1 + $0x10] sm:$0xf]
        %v1002 = vld [vmem:[%s1 + $0x14] sm:$0xf]
        %v1003 = vld [vmem:[%s1 + $0x18] sm:$0xf]
        %v1004 = vld [vmem:[%s1 + $0x1c] sm:$0xf]
        %v1005 = vld [vmem:[%s1 + $0x20] sm:$0xf]
        %v1006 = vld [vmem:[%s1 + $0x24] sm:$0xf]
        %v1007 = vld [vmem:[%s1 + $0x28] sm:$0xf]
        %v1008 = vld [vmem:[%s1 + $0x2c] sm:$0xf]
        %v1009 = vld [vmem:[%s1 + $0x30] sm:$0xf]
        %v1010 = vld [vmem:[%s1 + $0x34] sm:$0xf]
        %v1011 = vld [vmem:[%s1 + $0x38] sm:$0xf]
        %v1012 = vld [vmem:[%s1 + $0x3c] sm:$0xf]
        %v1013 = vld [vmem:[%s1 + $0x40] sm:$0xf]
        %v1014 = vld [vmem:[%s1 + $0x44] sm:$0xf]
        %v1015 = vld [vmem:[%s1 + $0x48] sm:$0xf]
        %v1016 = vld [vmem:[%s1 + $0x4c] sm:$0xf]
        %v1017 = vld [vmem:[%s1 + $0x50] sm:$0xf]
        %v1018 = vld [vmem:[%s1 + $0x54] sm:$0xf]
        %v1019 = vld [vmem:[%s1 + $0x58] sm:$0xf]
        %v1020 = vld [vmem:[%s1 + $0x5c] sm:$0xf]
        %v1021 = vld [vmem:[%s1 + $0x60] sm:$0xf]
        %v1022 = vld [vmem:[%s1 + $0x64] sm:$0xf]
        %v1023 = vld [vmem:[%s1 + $0x68] sm:$0xf]
        %v1024 = vld [vmem:[%s1 + $0x6c] sm:$0xf]
        %v1025 = vld [vmem:[%s1 + $0x70] sm:$0xf]
        %v1026 = vld [vmem:[%s1 + $0x74] sm:$0xf]
        %v1027 = vld [vmem:[%s1 + $0x78] sm:$0xf]
        %v1028 = vld [vmem:[%s1 + $0x7c] sm:$0xf]
        %v1029 = vld [vmem:[%s1 + $0x80] sm:$0xf]
        %v1030 = vld [vmem:[%s1 + $0x84] sm:$0xf]
        %v1031 = vld [vmem:[%s1 + $0x88] sm:$0xf]
        %v1032 = vld [vmem:[%s1 + $0x8c] sm:$0xf]
        %v1033 = vld [vmem:[%s1 + $0x90] sm:$0xf]
        %v1034 = vld [vmem:[%s1 + $0x94] sm:$0xf]
        %v1035 = vld [vmem:[%s1 + $0x98] sm:$0xf]
        %v1036 = vld [vmem:[%s1 + $0x9c] sm:$0xf]
        %v1037 = vld [vmem:[%s1 + $0xa0] sm:$0xf]
        %v1038 = vld [vmem:[%s1 + $0xa4] sm:$0xf]
        %v1039 = vld [vmem:[%s1 + $0xa8] sm:$0xf]
        %v1040 = vld [vmem:[%s1 + $0xac] sm:$0xf]
        %v1041 = vld [vmem:[%s1 + $0xb0] sm:$0xf]
        %v1042 = vld [vmem:[%s1 + $0xb4] sm:$0xf]
        %v1043 = vld [vmem:[%s1 + $0xb8] sm:$0xf]
        %v1044 = vld [vmem:[%s1 + $0xbc] sm:$0xf]
        %v1045 = vld [vmem:[%s1 + $0xc0] sm:$0xf]
        %v1046 = vld [vmem:[%s1 + $0xc4] sm:$0xf]
        %v1047 = vld [vmem:[%s1 + $0xc8] sm:$0xf]
        %v1048 = vld [vmem:[%s1 + $0xcc] sm:$0xf]
        %v1049 = vld [vmem:[%s1 + $0xd0] sm:$0xf]
        %v1050 = vld [vmem:[%s1 + $0xd4] sm:$0xf]
        %v1051 = vld [vmem:[%s1 + $0xd8] sm:$0xf]
        %v1052 = vld [vmem:[%s1 + $0xdc] sm:$0xf]
        %v1053 = vld [vmem:[%s1 + $0xe0] sm:$0xf]
        %v1054 = vld [vmem:[%s1 + $0xe4] sm:$0xf]
        %v1055 = vld [vmem:[%s1 + $0xe8] sm:$0xf]
        %v1056 = vld [vmem:[%s1 + $0xec] sm:$0xf]
        %v1057 = vld [vmem:[%s1 + $0xf0] sm:$0xf]
        %v1058 = vld [vmem:[%s1 + $0xf4] sm:$0xf]
        %v1059 = vld [vmem:[%s1 + $0xf8] sm:$0xf]
        %v1060 = vld [vmem:[%s1 + $0xfc] sm:$0xf]
        %v1061 = vld [vmem:[%s1 + $0x100] sm:$0xf]
        %v1062 = vld [vmem:[%s1 + $0x104] sm:$0xf]
        %v1063 = vld [vmem:[%s1 + $0x108] sm:$0xf]
        %v1064 = vld [vmem:[%s1 + $0x10c] sm:$0xf]
        %v1065 = vld [vmem:[%s1 + $0x110] sm:$0xf]
        %v1066 = vld [vmem:[%s1 + $0x114] sm:$0xf]
        %v1067 = vld [vmem:[%s1 + $0x118] sm:$0xf]
        %v1068 = vld [vmem:[%s1 + $0x11c] sm:$0xf]
        %v1069 = vld [vmem:[%s1 + $0x120] sm:$0xf]
        %v1070 = vld [vmem:[%s1 + $0x124] sm:$0xf]
        %v1071 = vld [vmem:[%s1 + $0x128] sm:$0xf]
        %v1072 = vld [vmem:[%s1 + $0x12c] sm:$0xf]
        %v1073 = vld [vmem:[%s1 + $0x130] sm:$0xf]
        %v1074 = vld [vmem:[%s1 + $0x134] sm:$0xf]
        %v1075 = vld [vmem:[%s1 + $0x138] sm:$0xf]
        %v1076 = vld [vmem:[%s1 + $0x13c] sm:$0xf]
        %v1077 = vld [vmem:[%s1 + $0x140] sm:$0xf]
        %v1078 = vld [vmem:[%s1 + $0x144] sm:$0xf]
        %v1079 = vld [vmem:[%s1 + $0x148] sm:$0xf]
        %v1080 = vld [vmem:[%s1 + $0x14c] sm:$0xf]
        %v1081 = vld [vmem:[%s1 + $0x150] sm:$0xf]
        %v1082 = vld [vmem:[%s1 + $0x154] sm:$0xf]
        %v1083 = vld [vmem:[%s1 + $0x158] sm:$0xf]
        %v1084 = vld [vmem:[%s1 + $0x15c] sm:$0xf]
        %v1085 = vld [vmem:[%s1 + $0x160] sm:$0xf]
        %v1086 = vld [vmem:[%s1 + $0x164] sm:$0xf]
        %v1087 = vld [vmem:[%s1 + $0x168] sm:$0xf]
        %v1088 = vld [vmem:[%s1 + $0x16c] sm:$0xf]
        %v1089 = vld [vmem:[%s1 + $0x170] sm:$0xf]
        %v1090 = vld [vmem:[%s1 + $0x174] sm:$0xf]
        %v1091 = vld [vmem:[%s1 + $0x178] sm:$0xf]
        %v1092 = vld [vmem:[%s1 + $0x17c] sm:$0xf]
        %v1093 = vld [vmem:[%s1 + $0x180] sm:$0xf]
        %v1094 = vld [vmem:[%s1 + $0x184] sm:$0xf]
        %v1095 = vld [vmem:[%s1 + $0x188] sm:$0xf]
        %v1096 = vld [vmem:[%s1 + $0x18c] sm:$0xf]
        %v1097 = vld [vmem:[%s1 + $0x190] sm:$0xf]
        %v1098 = vld [vmem:[%s1 + $0x194] sm:$0xf]
        %v1099 = vld [vmem:[%s1 + $0x198] sm:$0xf]
        %v1100 = vld [vmem:[%s1 + $0x19c] sm:$0xf]
        %v1101 = vld [vmem:[%s1 + $0x1a0] sm:$0xf]
        %v1102 = vld [vmem:[%s1 + $0x1a4] sm:$0xf]
        %v1103 = vld [vmem:[%s1 + $0x1a8] sm:$0xf]
        %v1104 = vld [vmem:[%s1 + $0x1ac] sm:$0xf]
        %v1105 = vld [vmem:[%s1 + $0x1b0] sm:$0xf]
        %v1106 = vld [vmem:[%s1 + $0x1b4] sm:$0xf]
        %v1107 = vld [vmem:[%s1 + $0x1b8] sm:$0xf]
        %v1108 = vld [vmem:[%s1 + $0x1bc] sm:$0xf]
        %v1109 = vld [vmem:[%s1 + $0x1c0] sm:$0xf]
        %v1110 = vld [vmem:[%s1 + $0x1c4] sm:$0xf]
        %v1111 = vld [vmem:[%s1 + $0x1c8] sm:$0xf]
        %v1112 = vld [vmem:[%s1 + $0x1cc] sm:$0xf]
        %v1113 = vld [vmem:[%s1 + $0x1d0] sm:$0xf]
        %v1114 = vld [vmem:[%s1 + $0x1d4] sm:$0xf]
        %v1115 = vld [vmem:[%s1 + $0x1d8] sm:$0xf]
        %v1116 = vld [vmem:[%s1 + $0x1dc] sm:$0xf]
        %v1117 = vld [vmem:[%s1 + $0x1e0] sm:$0xf]
        %v1118 = vld [vmem:[%s1 + $0x1e4] sm:$0xf]
        %v1119 = vld [vmem:[%s1 + $0x1e8] sm:$0xf]
        %v1120 = vld [vmem:[%s1 + $0x1ec] sm:$0xf]
        %v1121 = vld [vmem:[%s1 + $0x1f0] sm:$0xf]
        %v1122 = vld [vmem:[%s1 + $0x1f4] sm:$0xf]
        %v1123 = vld [vmem:[%s1 + $0x1f8] sm:$0xf]
        %v1124 = vld [vmem:[%s1 + $0x1fc] sm:$0xf]
        %v1125 = vld [vmem:[%s1 + $0x200] sm:$0xf]
        %v1126 = vld [vmem:[%s1 + $0x204] sm:$0xf]
        %v1127 = vld [vmem:[%s1 + $0x208] sm:$0xf]
        %v1128 = vld [vmem:[%s1 + $0x20c] sm:$0xf]
        %v1129 = vld [vmem:[%s1 + $0x210] sm:$0xf]
        %v1130 = vld [vmem:[%s1 + $0x214] sm:$0xf]
        %v1131 = vld [vmem:[%s1 + $0x218] sm:$0xf]
        %v1132 = vld [vmem:[%s1 + $0x21c] sm:$0xf]
        %v1133 = vld [vmem:[%s1 + $0x220] sm:$0xf]
        %v1134 = vld [vmem:[%s1 + $0x224] sm:$0xf]
        %v1135 = vld [vmem:[%s1 + $0x228] sm:$0xf]
        %v1136 = vld [vmem:[%s1 + $0x22c] sm:$0xf]
        %v1137 = vld [vmem:[%s1 + $0x230] sm:$0xf]
        %v1138 = vld [vmem:[%s1 + $0x234] sm:$0xf]
        %v1139 = vld [vmem:[%s1 + $0x238] sm:$0xf]
        %v1140 = vld [vmem:[%s1 + $0x23c] sm:$0xf]
        %v1141 = vld [vmem:[%s2] sm:$0x1]
        %v1143 = vlaneseq
        %v1144 = vshrl.u32 %v1143, 7
        %v1145 = vsub.s32 0, %v1144
        %v1146 = vrot.slane %v1141, %v1145
        %v1292 = vunpack.c.l.b16 %v997
        %v1293 = vunpack.c.l.b16 %v998
        %v1294 = vunpack.c.l.b16 %v999
        %v1295 = vunpack.c.l.b16 %v1000
        %v1296 = vunpack.c.l.b16 %v1001
        %v1297 = vunpack.c.l.b16 %v1002
        %v1298 = vunpack.c.l.b16 %v1003
        %v1299 = vunpack.c.l.b16 %v1004
        %v1300 = vunpack.c.l.b16 %v1005
        %v1301 = vunpack.c.l.b16 %v1006
        %v1302 = vunpack.c.l.b16 %v1007
        %v1303 = vunpack.c.l.b16 %v1008
        %v1304 = vunpack.c.l.b16 %v1009
        %v1305 = vunpack.c.l.b16 %v1010
        %v1306 = vunpack.c.l.b16 %v1011
        %v1307 = vunpack.c.l.b16 %v1012
        %v1308 = vunpack.c.l.b16 %v1013
        %v1309 = vunpack.c.l.b16 %v1014
        %v1310 = vunpack.c.l.b16 %v1015
        %v1311 = vunpack.c.l.b16 %v1016
        %v1312 = vunpack.c.l.b16 %v1017
        %v1313 = vunpack.c.l.b16 %v1018
        %v1314 = vunpack.c.l.b16 %v1019
        %v1315 = vunpack.c.l.b16 %v1020
        %v1316 = vunpack.c.l.b16 %v1021
        %v1317 = vunpack.c.l.b16 %v1022
        %v1318 = vunpack.c.l.b16 %v1023
        %v1319 = vunpack.c.l.b16 %v1024
        %v1320 = vunpack.c.l.b16 %v1025
        %v1321 = vunpack.c.l.b16 %v1026
        %v1322 = vunpack.c.l.b16 %v1027
        %v1323 = vunpack.c.l.b16 %v1028
        %v1324 = vunpack.c.l.b16 %v1029
        %v1325 = vunpack.c.l.b16 %v1030
        %v1326 = vunpack.c.l.b16 %v1031
        %v1327 = vunpack.c.l.b16 %v1032
        %v1328 = vunpack.c.l.b16 %v1033
        %v1329 = vunpack.c.l.b16 %v1034
        %v1330 = vunpack.c.l.b16 %v1035
        %v1331 = vunpack.c.l.b16 %v1036
        %v1332 = vunpack.c.l.b16 %v1037
        %v1333 = vunpack.c.l.b16 %v1038
        %v1334 = vunpack.c.l.b16 %v1039
        %v1335 = vunpack.c.l.b16 %v1040
        %v1336 = vunpack.c.l.b16 %v1041
        %v1337 = vunpack.c.l.b16 %v1042
        %v1338 = vunpack.c.l.b16 %v1043
        %v1339 = vunpack.c.l.b16 %v1044
        %v1340 = vunpack.c.l.b16 %v1045
        %v1341 = vunpack.c.l.b16 %v1046
        %v1342 = vunpack.c.l.b16 %v1047
        %v1343 = vunpack.c.l.b16 %v1048
        %v1344 = vunpack.c.l.b16 %v1049
        %v1345 = vunpack.c.l.b16 %v1050
        %v1346 = vunpack.c.l.b16 %v1051
        %v1347 = vunpack.c.l.b16 %v1052
        %v1348 = vunpack.c.l.b16 %v1053
        %v1349 = vunpack.c.l.b16 %v1054
        %v1350 = vunpack.c.l.b16 %v1055
        %v1351 = vunpack.c.l.b16 %v1056
        %v1352 = vunpack.c.l.b16 %v1057
        %v1353 = vunpack.c.l.b16 %v1058
        %v1354 = vunpack.c.l.b16 %v1059
        %v1355 = vunpack.c.l.b16 %v1060
        %v1356 = vunpack.c.l.b16 %v1061
        %v1357 = vunpack.c.l.b16 %v1062
        %v1358 = vunpack.c.l.b16 %v1063
        %v1359 = vunpack.c.l.b16 %v1064
        %v1360 = vunpack.c.l.b16 %v1065
        %v1361 = vunpack.c.l.b16 %v1066
        %v1362 = vunpack.c.l.b16 %v1067
        %v1363 = vunpack.c.l.b16 %v1068
        %v1364 = vunpack.c.l.b16 %v1069
        %v1365 = vunpack.c.l.b16 %v1070
        %v1366 = vunpack.c.l.b16 %v1071
        %v1367 = vunpack.c.l.b16 %v1072
        %v1368 = vunpack.c.l.b16 %v1073
        %v1369 = vunpack.c.l.b16 %v1074
        %v1370 = vunpack.c.l.b16 %v1075
        %v1371 = vunpack.c.l.b16 %v1076
        %v1372 = vunpack.c.l.b16 %v1077
        %v1373 = vunpack.c.l.b16 %v1078
        %v1374 = vunpack.c.l.b16 %v1079
        %v1375 = vunpack.c.l.b16 %v1080
        %v1376 = vunpack.c.l.b16 %v1081
        %v1377 = vunpack.c.l.b16 %v1082
        %v1378 = vunpack.c.l.b16 %v1083
        %v1379 = vunpack.c.l.b16 %v1084
        %v1380 = vunpack.c.l.b16 %v1085
        %v1381 = vunpack.c.l.b16 %v1086
        %v1382 = vunpack.c.l.b16 %v1087
        %v1383 = vunpack.c.l.b16 %v1088
        %v1384 = vunpack.c.l.b16 %v1089
        %v1385 = vunpack.c.l.b16 %v1090
        %v1386 = vunpack.c.l.b16 %v1091
        %v1387 = vunpack.c.l.b16 %v1092
        %v1388 = vunpack.c.l.b16 %v1093
        %v1389 = vunpack.c.l.b16 %v1094
        %v1390 = vunpack.c.l.b16 %v1095
        %v1391 = vunpack.c.l.b16 %v1096
        %v1392 = vunpack.c.l.b16 %v1097
        %v1393 = vunpack.c.l.b16 %v1098
        %v1394 = vunpack.c.l.b16 %v1099
        %v1395 = vunpack.c.l.b16 %v1100
        %v1396 = vunpack.c.l.b16 %v1101
        %v1397 = vunpack.c.l.b16 %v1102
        %v1398 = vunpack.c.l.b16 %v1103
        %v1399 = vunpack.c.l.b16 %v1104
        %v1400 = vunpack.c.l.b16 %v1105
        %v1401 = vunpack.c.l.b16 %v1106
        %v1402 = vunpack.c.l.b16 %v1107
        %v1403 = vunpack.c.l.b16 %v1108
        %v1404 = vunpack.c.l.b16 %v1109
        %v1405 = vunpack.c.l.b16 %v1110
        %v1406 = vunpack.c.l.b16 %v1111
        %v1407 = vunpack.c.l.b16 %v1112
        %v1408 = vunpack.c.l.b16 %v1113
        %v1409 = vunpack.c.l.b16 %v1114
        %v1410 = vunpack.c.l.b16 %v1115
        %v1411 = vunpack.c.l.b16 %v1116
        %v1412 = vunpack.c.l.b16 %v1117
        %v1413 = vunpack.c.l.b16 %v1118
        %v1414 = vunpack.c.l.b16 %v1119
        %v1415 = vunpack.c.l.b16 %v1120
        %v1416 = vunpack.c.l.b16 %v1121
        %v1417 = vunpack.c.l.b16 %v1122
        %v1418 = vunpack.c.l.b16 %v1123
        %v1419 = vunpack.c.l.b16 %v1124
        %v1420 = vunpack.c.l.b16 %v1125
        %v1421 = vunpack.c.l.b16 %v1126
        %v1422 = vunpack.c.l.b16 %v1127
        %v1423 = vunpack.c.l.b16 %v1128
        %v1424 = vunpack.c.l.b16 %v1129
        %v1425 = vunpack.c.l.b16 %v1130
        %v1426 = vunpack.c.l.b16 %v1131
        %v1427 = vunpack.c.l.b16 %v1132
        %v1428 = vunpack.c.l.b16 %v1133
        %v1429 = vunpack.c.l.b16 %v1134
        %v1430 = vunpack.c.l.b16 %v1135
        %v1431 = vunpack.c.l.b16 %v1136
        %v1432 = vunpack.c.l.b16 %v1137
        %v1433 = vunpack.c.l.b16 %v1138
        %v1434 = vunpack.c.l.b16 %v1139
        %v1435 = vunpack.c.l.b16 %v1140
        %v1436 = vpack.c.b16 %v1293, %v1292
        %v1437 = vpack.c.b16 %v1295, %v1294
        %v1438 = vpack.c.b16 %v1297, %v1296
        %v1439 = vpack.c.b16 %v1299, %v1298
        %v1440 = vpack.c.b16 %v1301, %v1300
        %v1441 = vpack.c.b16 %v1303, %v1302
        %v1442 = vpack.c.b16 %v1305, %v1304
        %v1443 = vpack.c.b16 %v1307, %v1306
        %v1444 = vpack.c.b16 %v1309, %v1308
        %v1445 = vpack.c.b16 %v1311, %v1310
        %v1446 = vpack.c.b16 %v1313, %v1312
        %v1447 = vpack.c.b16 %v1315, %v1314
        %v1448 = vpack.c.b16 %v1317, %v1316
        %v1449 = vpack.c.b16 %v1319, %v1318
        %v1450 = vpack.c.b16 %v1321, %v1320
        %v1451 = vpack.c.b16 %v1323, %v1322
        %v1452 = vpack.c.b16 %v1325, %v1324
        %v1453 = vpack.c.b16 %v1327, %v1326
        %v1454 = vpack.c.b16 %v1329, %v1328
        %v1455 = vpack.c.b16 %v1331, %v1330
        %v1456 = vpack.c.b16 %v1333, %v1332
        %v1457 = vpack.c.b16 %v1335, %v1334
        %v1458 = vpack.c.b16 %v1337, %v1336
        %v1459 = vpack.c.b16 %v1339, %v1338
        %v1460 = vpack.c.b16 %v1341, %v1340
        %v1461 = vpack.c.b16 %v1343, %v1342
        %v1462 = vpack.c.b16 %v1345, %v1344
        %v1463 = vpack.c.b16 %v1347, %v1346
        %v1464 = vpack.c.b16 %v1349, %v1348
        %v1465 = vpack.c.b16 %v1351, %v1350
        %v1466 = vpack.c.b16 %v1353, %v1352
        %v1467 = vpack.c.b16 %v1355, %v1354
        %v1468 = vpack.c.b16 %v1357, %v1356
        %v1469 = vpack.c.b16 %v1359, %v1358
        %v1470 = vpack.c.b16 %v1361, %v1360
        %v1471 = vpack.c.b16 %v1363, %v1362
        %v1472 = vpack.c.b16 %v1365, %v1364
        %v1473 = vpack.c.b16 %v1367, %v1366
        %v1474 = vpack.c.b16 %v1369, %v1368
        %v1475 = vpack.c.b16 %v1371, %v1370
        %v1476 = vpack.c.b16 %v1373, %v1372
        %v1477 = vpack.c.b16 %v1375, %v1374
        %v1478 = vpack.c.b16 %v1377, %v1376
        %v1479 = vpack.c.b16 %v1379, %v1378
        %v1480 = vpack.c.b16 %v1381, %v1380
        %v1481 = vpack.c.b16 %v1383, %v1382
        %v1482 = vpack.c.b16 %v1385, %v1384
        %v1483 = vpack.c.b16 %v1387, %v1386
        %v1484 = vpack.c.b16 %v1389, %v1388
        %v1485 = vpack.c.b16 %v1391, %v1390
        %v1486 = vpack.c.b16 %v1393, %v1392
        %v1487 = vpack.c.b16 %v1395, %v1394
        %v1488 = vpack.c.b16 %v1397, %v1396
        %v1489 = vpack.c.b16 %v1399, %v1398
        %v1490 = vpack.c.b16 %v1401, %v1400
        %v1491 = vpack.c.b16 %v1403, %v1402
        %v1492 = vpack.c.b16 %v1405, %v1404
        %v1493 = vpack.c.b16 %v1407, %v1406
        %v1494 = vpack.c.b16 %v1409, %v1408
        %v1495 = vpack.c.b16 %v1411, %v1410
        %v1496 = vpack.c.b16 %v1413, %v1412
        %v1497 = vpack.c.b16 %v1415, %v1414
        %v1498 = vpack.c.b16 %v1417, %v1416
        %v1499 = vpack.c.b16 %v1419, %v1418
        %v1500 = vpack.c.b16 %v1421, %v1420
        %v1501 = vpack.c.b16 %v1423, %v1422
        %v1502 = vpack.c.b16 %v1425, %v1424
        %v1503 = vpack.c.b16 %v1427, %v1426
        %v1504 = vpack.c.b16 %v1429, %v1428
        %v1505 = vpack.c.b16 %v1431, %v1430
        %v1506 = vpack.c.b16 %v1433, %v1432
        %v1507 = vpack.c.b16 %v1435, %v1434
        %1580 = vmatprep.subr.bf16.mxu0 0
        %1581 = vmatpush1.bf16.msra.mxu0 %v1436
        %1582 = vmatprep.subr.bf16.mxu0 0
        %1583 = vmatpush1.bf16.msra.mxu0 %v1437
        %1584 = vmatprep.subr.bf16.mxu0 0
        %1585 = vmatpush1.bf16.msra.mxu0 %v1438
        %1586 = vmatprep.subr.bf16.mxu0 0
        %1587 = vmatpush1.bf16.msra.mxu0 %v1439
        %1588 = vmatprep.subr.bf16.mxu0 0
        %1589 = vmatpush1.bf16.msra.mxu0 %v1440
        %1590 = vmatprep.subr.bf16.mxu0 0
        %1591 = vmatpush1.bf16.msra.mxu0 %v1441
        %1592 = vmatprep.subr.bf16.mxu0 0
        %1593 = vmatpush1.bf16.msra.mxu0 %v1442
        %1594 = vmatprep.subr.bf16.mxu0 0
        %1595 = vmatpush1.bf16.msra.mxu0 %v1443
        %1596 = vmatprep.subr.bf16.mxu0 0
        %1597 = vmatpush1.bf16.msra.mxu0 %v1444
        %1598 = vmatprep.subr.bf16.mxu0 0
        %1599 = vmatpush1.bf16.msra.mxu0 %v1445
        %1600 = vmatprep.subr.bf16.mxu0 0
        %1601 = vmatpush1.bf16.msra.mxu0 %v1446
        %1602 = vmatprep.subr.bf16.mxu0 0
        %1603 = vmatpush1.bf16.msra.mxu0 %v1447
        %1604 = vmatprep.subr.bf16.mxu0 0
        %1605 = vmatpush1.bf16.msra.mxu0 %v1448
        %1606 = vmatprep.subr.bf16.mxu0 0
        %1607 = vmatpush1.bf16.msra.mxu0 %v1449
        %1608 = vmatprep.subr.bf16.mxu0 0
        %1609 = vmatpush1.bf16.msra.mxu0 %v1450
        %1610 = vmatprep.subr.bf16.mxu0 0
        %1611 = vmatpush1.bf16.msra.mxu0 %v1451
        %1612 = vmatprep.mubr.bf16.mxu0 %v962
        %1613 = vmatmul.mubr.bf16.gmra.mrb[0].mxu0 %v961
        %v1614 = vpop.f32.mrb[0].mxu0
        %v1615 = vadd.f32 %v1146, %v1614
        %v1616 = vpop.f32.mrb[0].mxu0
        %v1617 = vpop.f32.mrb[0].mxu0
        %v1618 = vadd.f32 %v1146, %v1617
        %v1619 = vpop.f32.mrb[0].mxu0
        %1620 = vmatprep.mubr.bf16.mxu0 %v971
        %1621 = vmatmul.mubr.bf16.gmra.mrb[0].mxu0 %v970
        %v1622 = vpop.f32.mrb[0].mxu0
        %v1623 = vadd.f32 %v1146, %v1622
        %v1624 = vpop.f32.mrb[0].mxu0
        %v1625 = vpop.f32.mrb[0].mxu0
        %v1626 = vadd.f32 %v1146, %v1625
        %v1627 = vpop.f32.mrb[0].mxu0
        %1628 = vmatprep.mubr.bf16.mxu0 %v980
        %1629 = vmatmul.mubr.bf16.gmra.mrb[0].mxu0 %v979
        %v1630 = vpop.f32.mrb[0].mxu0
        %v1631 = vadd.f32 %v1146, %v1630
        %v1632 = vpop.f32.mrb[0].mxu0
        %v1633 = vpop.f32.mrb[0].mxu0
        %v1634 = vadd.f32 %v1146, %v1633
        %v1635 = vpop.f32.mrb[0].mxu0
        %1636 = vmatprep.mubr.bf16.mxu0 %v989
        %1637 = vmatmul.mubr.bf16.gmra.mrb[0].mxu0 %v988
        %v1638 = vpop.f32.mrb[0].mxu0
        %v1639 = vadd.f32 %v1146, %v1638
        %v1640 = vpop.f32.mrb[0].mxu0
        %v1641 = vpop.f32.mrb[0].mxu0
        %v1642 = vadd.f32 %v1146, %v1641
        %v1643 = vpop.f32.mrb[0].mxu0
        %1644 = vdwg.mxu0
        %1645 = vmatprep.subr.bf16.mxu0 0
        %1646 = vmatpush1.bf16.msra.mxu0 %v1452
        %1647 = vmatprep.subr.bf16.mxu0 0
        %1648 = vmatpush1.bf16.msra.mxu0 %v1453
        %1649 = vmatprep.subr.bf16.mxu0 0
        %1650 = vmatpush1.bf16.msra.mxu0 %v1454
        %1651 = vmatprep.subr.bf16.mxu0 0
        %1652 = vmatpush1.bf16.msra.mxu0 %v1455
        %1653 = vmatprep.subr.bf16.mxu0 0
        %1654 = vmatpush1.bf16.msra.mxu0 %v1456
        %1655 = vmatprep.subr.bf16.mxu0 0
        %1656 = vmatpush1.bf16.msra.mxu0 %v1457
        %1657 = vmatprep.subr.bf16.mxu0 0
        %1658 = vmatpush1.bf16.msra.mxu0 %v1458
        %1659 = vmatprep.subr.bf16.mxu0 0
        %1660 = vmatpush1.bf16.msra.mxu0 %v1459
        %1661 = vmatprep.subr.bf16.mxu0 0
        %1662 = vmatpush1.bf16.msra.mxu0 %v1460
        %1663 = vmatprep.subr.bf16.mxu0 0
        %1664 = vmatpush1.bf16.msra.mxu0 %v1461
        %1665 = vmatprep.subr.bf16.mxu0 0
        %1666 = vmatpush1.bf16.msra.mxu0 %v1462
        %1667 = vmatprep.subr.bf16.mxu0 0
        %1668 = vmatpush1.bf16.msra.mxu0 %v1463
        %1669 = vmatprep.subr.bf16.mxu0 0
        %1670 = vmatpush1.bf16.msra.mxu0 %v1464
        %1671 = vmatprep.subr.bf16.mxu0 0
        %1672 = vmatpush1.bf16.msra.mxu0 %v1465
        %1673 = vmatprep.subr.bf16.mxu0 0
        %1674 = vmatpush1.bf16.msra.mxu0 %v1466
        %1675 = vmatprep.subr.bf16.mxu0 0
        %1676 = vmatpush1.bf16.msra.mxu0 %v1467
        %1677 = vmatprep.mubr.bf16.mxu0 %v964
        %1678 = vmatmul.mubr.bf16.gmra.mrb[0].mxu0 %v963
        %v1679 = vpop.f32.mrb[0].mxu0
        %v1680 = vadd.f32 %v1615, %v1679
        %v1681 = vpop.f32.mrb[0].mxu0
        %v1682 = vpop.f32.mrb[0].mxu0
        %v1683 = vadd.f32 %v1618, %v1682
        %v1684 = vpop.f32.mrb[0].mxu0
        %1685 = vmatprep.mubr.bf16.mxu0 %v973
        %1686 = vmatmul.mubr.bf16.gmra.mrb[0].mxu0 %v972
        %v1687 = vpop.f32.mrb[0].mxu0
        %v1688 = vadd.f32 %v1623, %v1687
        %v1689 = vpop.f32.mrb[0].mxu0
        %v1690 = vpop.f32.mrb[0].mxu0
        %v1691 = vadd.f32 %v1626, %v1690
        %v1692 = vpop.f32.mrb[0].mxu0
        %1693 = vmatprep.mubr.bf16.mxu0 %v982
        %1694 = vmatmul.mubr.bf16.gmra.mrb[0].mxu0 %v981
        %v1695 = vpop.f32.mrb[0].mxu0
        %v1696 = vadd.f32 %v1631, %v1695
        %v1697 = vpop.f32.mrb[0].mxu0
        %v1698 = vpop.f32.mrb[0].mxu0
        %v1699 = vadd.f32 %v1634, %v1698
        %v1700 = vpop.f32.mrb[0].mxu0
        %1701 = vmatprep.mubr.bf16.mxu0 %v991
        %1702 = vmatmul.mubr.bf16.gmra.mrb[0].mxu0 %v990
        %v1703 = vpop.f32.mrb[0].mxu0
        %v1704 = vadd.f32 %v1639, %v1703
        %v1705 = vpop.f32.mrb[0].mxu0
        %v1706 = vpop.f32.mrb[0].mxu0
        %v1707 = vadd.f32 %v1642, %v1706
        %v1708 = vpop.f32.mrb[0].mxu0
        %1709 = vdwg.mxu0
        %1710 = vmatprep.subr.bf16.mxu0 0
        %1711 = vmatpush1.bf16.msra.mxu0 %v1468
        %1712 = vmatprep.subr.bf16.mxu0 0
        %1713 = vmatpush1.bf16.msra.mxu0 %v1469
        %1714 = vmatprep.subr.bf16.mxu0 0
        %1715 = vmatpush1.bf16.msra.mxu0 %v1470
        %1716 = vmatprep.subr.bf16.mxu0 0
        %1717 = vmatpush1.bf16.msra.mxu0 %v1471
        %1718 = vmatprep.subr.bf16.mxu0 0
        %1719 = vmatpush1.bf16.msra.mxu0 %v1472
        %1720 = vmatprep.subr.bf16.mxu0 0
        %1721 = vmatpush1.bf16.msra.mxu0 %v1473
        %1722 = vmatprep.subr.bf16.mxu0 0
        %1723 = vmatpush1.bf16.msra.mxu0 %v1474
        %1724 = vmatprep.subr.bf16.mxu0 0
        %1725 = vmatpush1.bf16.msra.mxu0 %v1475
        %1726 = vmatprep.subr.bf16.mxu0 0
        %1727 = vmatpush1.bf16.msra.mxu0 %v1476
        %1728 = vmatprep.subr.bf16.mxu0 0
        %1729 = vmatpush1.bf16.msra.mxu0 %v1477
        %1730 = vmatprep.subr.bf16.mxu0 0
        %1731 = vmatpush1.bf16.msra.mxu0 %v1478
        %1732 = vmatprep.subr.bf16.mxu0 0
        %1733 = vmatpush1.bf16.msra.mxu0 %v1479
        %1734 = vmatprep.subr.bf16.mxu0 0
        %1735 = vmatpush1.bf16.msra.mxu0 %v1480
        %1736 = vmatprep.subr.bf16.mxu0 0
        %1737 = vmatpush1.bf16.msra.mxu0 %v1481
        %1738 = vmatprep.subr.bf16.mxu0 0
        %1739 = vmatpush1.bf16.msra.mxu0 %v1482
        %1740 = vmatprep.subr.bf16.mxu0 0
        %1741 = vmatpush1.bf16.msra.mxu0 %v1483
        %1742 = vmatprep.mubr.bf16.mxu0 %v966
        %1743 = vmatmul.mubr.bf16.gmra.mrb[0].mxu0 %v965
        %v1744 = vpop.f32.mrb[0].mxu0
        %v1745 = vadd.f32 %v1680, %v1744
        %v1746 = vpop.f32.mrb[0].mxu0
        %v1747 = vpop.f32.mrb[0].mxu0
        %v1748 = vadd.f32 %v1683, %v1747
        %v1749 = vpop.f32.mrb[0].mxu0
        %1750 = vmatprep.mubr.bf16.mxu0 %v975
        %1751 = vmatmul.mubr.bf16.gmra.mrb[0].mxu0 %v974
        %v1752 = vpop.f32.mrb[0].mxu0
        %v1753 = vadd.f32 %v1688, %v1752
        %v1754 = vpop.f32.mrb[0].mxu0
        %v1755 = vpop.f32.mrb[0].mxu0
        %v1756 = vadd.f32 %v1691, %v1755
        %v1757 = vpop.f32.mrb[0].mxu0
        %1758 = vmatprep.mubr.bf16.mxu0 %v984
        %1759 = vmatmul.mubr.bf16.gmra.mrb[0].mxu0 %v983
        %v1760 = vpop.f32.mrb[0].mxu0
        %v1761 = vadd.f32 %v1696, %v1760
        %v1762 = vpop.f32.mrb[0].mxu0
        %v1763 = vpop.f32.mrb[0].mxu0
        %v1764 = vadd.f32 %v1699, %v1763
        %v1765 = vpop.f32.mrb[0].mxu0
        %1766 = vmatprep.mubr.bf16.mxu0 %v993
        %1767 = vmatmul.mubr.bf16.gmra.mrb[0].mxu0 %v992
        %v1768 = vpop.f32.mrb[0].mxu0
        %v1769 = vadd.f32 %v1704, %v1768
        %v1770 = vpop.f32.mrb[0].mxu0
        %v1771 = vpop.f32.mrb[0].mxu0
        %v1772 = vadd.f32 %v1707, %v1771
        %v1773 = vpop.f32.mrb[0].mxu0
        %1774 = vdwg.mxu0
        %1775 = vmatprep.subr.bf16.mxu0 0
        %1776 = vmatpush1.bf16.msra.mxu0 %v1484
        %1777 = vmatprep.subr.bf16.mxu0 0
        %1778 = vmatpush1.bf16.msra.mxu0 %v1485
        %1779 = vmatprep.subr.bf16.mxu0 0
        %1780 = vmatpush1.bf16.msra.mxu0 %v1486
        %1781 = vmatprep.subr.bf16.mxu0 0
        %1782 = vmatpush1.bf16.msra.mxu0 %v1487
        %1783 = vmatprep.subr.bf16.mxu0 0
        %1784 = vmatpush1.bf16.msra.mxu0 %v1488
        %1785 = vmatprep.subr.bf16.mxu0 0
        %1786 = vmatpush1.bf16.msra.mxu0 %v1489
        %1787 = vmatprep.subr.bf16.mxu0 0
        %1788 = vmatpush1.bf16.msra.mxu0 %v1490
        %1789 = vmatprep.subr.bf16.mxu0 0
        %1790 = vmatpush1.bf16.msra.mxu0 %v1491
        %1791 = vmatprep.subr.bf16.mxu0 0
        %1792 = vmatpush1.bf16.msra.mxu0 %v1492
        %1793 = vmatprep.subr.bf16.mxu0 0
        %1794 = vmatpush1.bf16.msra.mxu0 %v1493
        %1795 = vmatprep.subr.bf16.mxu0 0
        %1796 = vmatpush1.bf16.msra.mxu0 %v1494
        %1797 = vmatprep.subr.bf16.mxu0 0
        %1798 = vmatpush1.bf16.msra.mxu0 %v1495
        %1799 = vmatprep.subr.bf16.mxu0 0
        %1800 = vmatpush1.bf16.msra.mxu0 %v1496
        %1801 = vmatprep.subr.bf16.mxu0 0
        %1802 = vmatpush1.bf16.msra.mxu0 %v1497
        %1803 = vmatprep.subr.bf16.mxu0 0
        %1804 = vmatpush1.bf16.msra.mxu0 %v1498
        %1805 = vmatprep.subr.bf16.mxu0 0
        %1806 = vmatpush1.bf16.msra.mxu0 %v1499
        %1807 = vmatprep.mubr.bf16.mxu0 %v968
        %1808 = vmatmul.mubr.bf16.gmra.mrb[0].mxu0 %v967
        %v1809 = vpop.f32.mrb[0].mxu0
        %v1810 = vadd.f32 %v1745, %v1809
        %v1811 = vpop.f32.mrb[0].mxu0
        %v1812 = vpop.f32.mrb[0].mxu0
        %v1813 = vadd.f32 %v1748, %v1812
        %v1814 = vpop.f32.mrb[0].mxu0
        %1815 = vmatprep.mubr.bf16.mxu0 %v977
        %1816 = vmatmul.mubr.bf16.gmra.mrb[0].mxu0 %v976
        %v1817 = vpop.f32.mrb[0].mxu0
        %v1818 = vadd.f32 %v1753, %v1817
        %v1819 = vpop.f32.mrb[0].mxu0
        %v1820 = vpop.f32.mrb[0].mxu0
        %v1821 = vadd.f32 %v1756, %v1820
        %v1822 = vpop.f32.mrb[0].mxu0
        %1823 = vmatprep.mubr.bf16.mxu0 %v986
        %1824 = vmatmul.mubr.bf16.gmra.mrb[0].mxu0 %v985
        %v1825 = vpop.f32.mrb[0].mxu0
        %v1826 = vadd.f32 %v1761, %v1825
        %v1827 = vpop.f32.mrb[0].mxu0
        %v1828 = vpop.f32.mrb[0].mxu0
        %v1829 = vadd.f32 %v1764, %v1828
        %v1830 = vpop.f32.mrb[0].mxu0
        %1831 = vmatprep.mubr.bf16.mxu0 %v995
        %1832 = vmatmul.mubr.bf16.gmra.mrb[0].mxu0 %v994
        %v1833 = vpop.f32.mrb[0].mxu0
        %v1834 = vadd.f32 %v1769, %v1833
        %v1835 = vpop.f32.mrb[0].mxu0
        %v1836 = vpop.f32.mrb[0].mxu0
        %v1837 = vadd.f32 %v1772, %v1836
        %v1838 = vpop.f32.mrb[0].mxu0
        %1839 = vdwg.mxu0
        %1840 = vmatprep.subr.bf16.mxu0 0
        %1841 = vmatpush1.bf16.msra.mxu0 %v1500
        %1842 = vmatprep.subr.bf16.mxu0 0
        %1843 = vmatpush1.bf16.msra.mxu0 %v1501
        %1844 = vmatprep.subr.bf16.mxu0 0
        %1845 = vmatpush1.bf16.msra.mxu0 %v1502
        %1846 = vmatprep.subr.bf16.mxu0 0
        %1847 = vmatpush1.bf16.msra.mxu0 %v1503
        %1848 = vmatprep.subr.bf16.mxu0 0
        %1849 = vmatpush1.bf16.msra.mxu0 %v1504
        %1850 = vmatprep.subr.bf16.mxu0 0
        %1851 = vmatpush1.bf16.msra.mxu0 %v1505
        %1852 = vmatprep.subr.bf16.mxu0 0
        %1853 = vmatpush1.bf16.msra.mxu0 %v1506
        %1854 = vmatprep.subr.bf16.mxu0 0
        %1855 = vmatpush1.bf16.msra.mxu0 %v1507
        %1856 = vmatprep.subr.bf16.mxu0 0
        %1857 = vmatpush1.bf16.msra.mxu0 0
        %1858 = vmatprep.subr.bf16.mxu0 0
        %1859 = vmatpush1.bf16.msra.mxu0 0
        %1860 = vmatprep.subr.bf16.mxu0 0
        %1861 = vmatpush1.bf16.msra.mxu0 0
        %1862 = vmatprep.subr.bf16.mxu0 0
        %1863 = vmatpush1.bf16.msra.mxu0 0
        %1864 = vmatprep.subr.bf16.mxu0 0
        %1865 = vmatpush1.bf16.msra.mxu0 0
        %1866 = vmatprep.subr.bf16.mxu0 0
        %1867 = vmatpush1.bf16.msra.mxu0 0
        %1868 = vmatprep.subr.bf16.mxu0 0
        %1869 = vmatpush1.bf16.msra.mxu0 0
        %1870 = vmatprep.subr.bf16.mxu0 0
        %1871 = vmatpush1.bf16.msra.mxu0 0
        %1872 = vmatprep.mubr.bf16.mxu0 0
        %1873 = vmatmul.mubr.bf16.gmra.mrb[0].mxu0 %v969
        %v1874 = vpop.f32.mrb[0].mxu0
        %v1875 = vadd.f32 %v1810, %v1874
        %v1876 = vpop.f32.mrb[0].mxu0
        %v1877 = vpop.f32.mrb[0].mxu0
        %v1878 = vadd.f32 %v1813, %v1877
        %v1879 = vpop.f32.mrb[0].mxu0
        %1880 = vmatprep.mubr.bf16.mxu0 0
        %1881 = vmatmul.mubr.bf16.gmra.mrb[0].mxu0 %v978
        %v1882 = vpop.f32.mrb[0].mxu0
        %v1883 = vadd.f32 %v1818, %v1882
        %v1884 = vpop.f32.mrb[0].mxu0
        %v1885 = vpop.f32.mrb[0].mxu0
        %v1886 = vadd.f32 %v1821, %v1885
        %v1887 = vpop.f32.mrb[0].mxu0
        %1888 = vmatprep.mubr.bf16.mxu0 0
        %1889 = vmatmul.mubr.bf16.gmra.mrb[0].mxu0 %v987
        %v1890 = vpop.f32.mrb[0].mxu0
        %v1891 = vadd.f32 %v1826, %v1890
        %v1892 = vpop.f32.mrb[0].mxu0
        %v1893 = vpop.f32.mrb[0].mxu0
        %v1894 = vadd.f32 %v1829, %v1893
        %v1895 = vpop.f32.mrb[0].mxu0
        %1896 = vmatprep.mubr.bf16.mxu0 0
        %1897 = vmatmul.mubr.bf16.gmra.mrb[0].mxu0 %v996
        %v1898 = vpop.f32.mrb[0].mxu0
        %v1899 = vadd.f32 %v1834, %v1898
        %v1900 = vpop.f32.mrb[0].mxu0
        %v1901 = vpop.f32.mrb[0].mxu0
        %v1902 = vadd.f32 %v1837, %v1901
        %v1903 = vpop.f32.mrb[0].mxu0
        %1904 = vdwg.mxu0
        %v1905 = vmax.f32 %v1875, 0.0
        %v1906 = vmax.f32 %v1878, 0.0
        %v1907 = vmax.f32 %v1883, 0.0
        %v1908 = vmax.f32 %v1886, 0.0
        %v1909 = vmax.f32 %v1891, 0.0
        %v1910 = vmax.f32 %v1894, 0.0
        %v1911 = vmax.f32 %v1899, 0.0
        %v1912 = vmax.f32 %v1902, 0.0
        %1913 = vst [vmem:[#allocation3] sm:$0xff] 0
        %s1914 = scalar_lea.vmem [#allocation3], 72
        %1915 = vst [vmem:[%s1914] sm:$0xff] 0
        %vm1916 = vcmask 1040384
        %vm1917 = vsmask.f32 256
        %vm1918 = vmand %vm1916, %vm1917
        %v1919 = vld [vmem:[#allocation3] sm:$0x1]
        %v1920 = vsel %vm1918, 0, %v1919
        %1921 = vst [vmem:[#allocation3] sm:$0x1] %v1920
        %v1922 = vld [vmem:[#allocation3 + $0x8] sm:$0x1]
        %v1923 = vsel %vm1918, 0, %v1922
        %1924 = vst [vmem:[#allocation3 + $0x8] sm:$0x1] %v1923
        %v1925 = vld [vmem:[#allocation3 + $0x10] sm:$0x1]
        %v1926 = vsel %vm1918, 0, %v1925
        %1927 = vst [vmem:[#allocation3 + $0x10] sm:$0x1] %v1926
        %v1928 = vld [vmem:[#allocation3 + $0x18] sm:$0x1]
        %v1929 = vsel %vm1918, 0, %v1928
        %1930 = vst [vmem:[#allocation3 + $0x18] sm:$0x1] %v1929
        %v1931 = vld [vmem:[#allocation3 + $0x20] sm:$0x1]
        %v1932 = vsel %vm1918, 0, %v1931
        %1933 = vst [vmem:[#allocation3 + $0x20] sm:$0x1] %v1932
        %v1934 = vld [vmem:[#allocation3 + $0x28] sm:$0x1]
        %v1935 = vsel %vm1918, 0, %v1934
        %1936 = vst [vmem:[#allocation3 + $0x28] sm:$0x1] %v1935
        %v1937 = vld [vmem:[#allocation3 + $0x30] sm:$0x1]
        %v1938 = vsel %vm1918, 0, %v1937
        %1939 = vst [vmem:[#allocation3 + $0x30] sm:$0x1] %v1938
        %v1940 = vld [vmem:[#allocation3 + $0x38] sm:$0x1]
        %v1941 = vsel %vm1918, 0, %v1940
        %1942 = vst [vmem:[#allocation3 + $0x38] sm:$0x1] %v1941
        %v1943 = vld [vmem:[#allocation3 + $0x40] sm:$0x1]
        %v1944 = vsel %vm1918, 0, %v1943
        %1945 = vst [vmem:[#allocation3 + $0x40] sm:$0x1] %v1944
        %v1946 = vld [vmem:[#allocation3 + $0x48] sm:$0x1]
        %v1947 = vsel %vm1918, 0, %v1946
        %1948 = vst [vmem:[#allocation3 + $0x48] sm:$0x1] %v1947
        %vm1949 = vcmask 1044484
        %vm1950 = vsmask.f32 7954
        %vm1951 = vmand %vm1949, %vm1950
        %v1952 = vld [vmem:[#allocation3] sm:$0x10]
        %v1953 = vsel %vm1951, 0, %v1952
        %1954 = vst [vmem:[#allocation3] sm:$0x10] %v1953
        %v1955 = vld [vmem:[#allocation3 + $0x8] sm:$0x10]
        %v1956 = vsel %vm1951, 0, %v1955
        %1957 = vst [vmem:[#allocation3 + $0x8] sm:$0x10] %v1956
        %v1958 = vld [vmem:[#allocation3 + $0x10] sm:$0x10]
        %v1959 = vsel %vm1951, 0, %v1958
        %1960 = vst [vmem:[#allocation3 + $0x10] sm:$0x10] %v1959
        %v1961 = vld [vmem:[#allocation3 + $0x18] sm:$0x10]
        %v1962 = vsel %vm1951, 0, %v1961
        %1963 = vst [vmem:[#allocation3 + $0x18] sm:$0x10] %v1962
        %v1964 = vld [vmem:[#allocation3 + $0x20] sm:$0x10]
        %v1965 = vsel %vm1951, 0, %v1964
        %1966 = vst [vmem:[#allocation3 + $0x20] sm:$0x10] %v1965
        %v1967 = vld [vmem:[#allocation3 + $0x28] sm:$0x10]
        %v1968 = vsel %vm1951, 0, %v1967
        %1969 = vst [vmem:[#allocation3 + $0x28] sm:$0x10] %v1968
        %v1970 = vld [vmem:[#allocation3 + $0x30] sm:$0x10]
        %v1971 = vsel %vm1951, 0, %v1970
        %1972 = vst [vmem:[#allocation3 + $0x30] sm:$0x10] %v1971
        %v1973 = vld [vmem:[#allocation3 + $0x38] sm:$0x10]
        %v1974 = vsel %vm1951, 0, %v1973
        %1975 = vst [vmem:[#allocation3 + $0x38] sm:$0x10] %v1974
        %v1976 = vld [vmem:[#allocation3 + $0x40] sm:$0x10]
        %v1977 = vsel %vm1951, 0, %v1976
        %1978 = vst [vmem:[#allocation3 + $0x40] sm:$0x10] %v1977
        %v1979 = vld [vmem:[#allocation3 + $0x48] sm:$0x10]
        %v1980 = vsel %vm1951, 0, %v1979
        %1981 = vst [vmem:[#allocation3 + $0x48] sm:$0x10] %v1980
        %v1982 = vpack.c.bf16 %v1906, %v1905
        %v1983 = vpack.c.bf16 %v1908, %v1907
        %v1984 = vpack.c.bf16 %v1910, %v1909
        %v1985 = vpack.c.bf16 %v1912, %v1911
        %v1990 = vunpack.c.l.b16 %v1982
        %v1991 = vunpack.c.h.b16 %v1982
        %v1992 = vunpack.c.l.b16 %v1983
        %v1993 = vunpack.c.h.b16 %v1983
        %v1994 = vunpack.c.l.b16 %v1984
        %v1995 = vunpack.c.h.b16 %v1984
        %v1996 = vunpack.c.l.b16 %v1985
        %v1997 = vunpack.c.h.b16 %v1985
        %v1998 = vpack.c.b16 %v1990, %v1990
        %v1999 = vpack.c.b16 %v1991, %v1991
        %v2000 = vpack.c.b16 %v1992, %v1992
        %v2001 = vpack.c.b16 %v1993, %v1993
        %v2002 = vpack.c.b16 %v1994, %v1994
        %v2003 = vpack.c.b16 %v1995, %v1995
        %v2004 = vpack.c.b16 %v1996, %v1996
        %v2005 = vpack.c.b16 %v1997, %v1997
        %v2007 = vshrl.u32 %v1998, 16
        %v2009 = vrot.slane %v2007, 7
        %v2010 = vshll.u32 %v1998, 16
        %v2012 = vor.u32 %v2009, %v2010
        %v2014 = vshrl.u32 %v1999, 16
        %v2016 = vrot.slane %v2014, 7
        %v2017 = vshll.u32 %v1999, 16
        %v2019 = vor.u32 %v2016, %v2017
        %v2021 = vshrl.u32 %v2000, 16
        %v2023 = vrot.slane %v2021, 7
        %v2024 = vshll.u32 %v2000, 16
        %v2026 = vor.u32 %v2023, %v2024
        %v2028 = vshrl.u32 %v2001, 16
        %v2030 = vrot.slane %v2028, 7
        %v2031 = vshll.u32 %v2001, 16
        %v2033 = vor.u32 %v2030, %v2031
        %v2035 = vshrl.u32 %v2002, 16
        %v2037 = vrot.slane %v2035, 7
        %v2038 = vshll.u32 %v2002, 16
        %v2040 = vor.u32 %v2037, %v2038
        %v2042 = vshrl.u32 %v2003, 16
        %v2044 = vrot.slane %v2042, 7
        %v2045 = vshll.u32 %v2003, 16
        %v2047 = vor.u32 %v2044, %v2045
        %v2049 = vshrl.u32 %v2004, 16
        %v2051 = vrot.slane %v2049, 7
        %v2052 = vshll.u32 %v2004, 16
        %v2054 = vor.u32 %v2051, %v2052
        %v2056 = vshrl.u32 %v2005, 16
        %v2058 = vrot.slane %v2056, 7
        %v2059 = vshll.u32 %v2005, 16
        %v2061 = vor.u32 %v2058, %v2059
        %s2070 = scalar_lea.vmem [#allocation3], 8
        %vm2071 = vcmask 1044480
        %vm2072 = vsmask.f32 4354
        %vm2073 = vmand %vm2071, %vm2072
        %v2074 = vld [vmem:[%s2070] sm:$0x1f]
        %v2075 = vsel %vm2073, %v2012, %v2074
        %2076 = vst [vmem:[%s2070] sm:$0x1f] %v2075
        %v2077 = vld [vmem:[%s2070 + $0x8] sm:$0x1f]
        %v2078 = vsel %vm2073, %v2019, %v2077
        %2079 = vst [vmem:[%s2070 + $0x8] sm:$0x1f] %v2078
        %v2080 = vld [vmem:[%s2070 + $0x10] sm:$0x1f]
        %v2081 = vsel %vm2073, %v2026, %v2080
        %2082 = vst [vmem:[%s2070 + $0x10] sm:$0x1f] %v2081
        %v2083 = vld [vmem:[%s2070 + $0x18] sm:$0x1f]
        %v2084 = vsel %vm2073, %v2033, %v2083
        %2085 = vst [vmem:[%s2070 + $0x18] sm:$0x1f] %v2084
        %v2086 = vld [vmem:[%s2070 + $0x20] sm:$0x1f]
        %v2087 = vsel %vm2073, %v2040, %v2086
        %2088 = vst [vmem:[%s2070 + $0x20] sm:$0x1f] %v2087
        %v2089 = vld [vmem:[%s2070 + $0x28] sm:$0x1f]
        %v2090 = vsel %vm2073, %v2047, %v2089
        %2091 = vst [vmem:[%s2070 + $0x28] sm:$0x1f] %v2090
        %v2092 = vld [vmem:[%s2070 + $0x30] sm:$0x1f]
        %v2093 = vsel %vm2073, %v2054, %v2092
        %2094 = vst [vmem:[%s2070 + $0x30] sm:$0x1f] %v2093
        %v2095 = vld [vmem:[%s2070 + $0x38] sm:$0x1f]
        %v2096 = vsel %vm2073, %v2061, %v2095
        %2097 = vst [vmem:[%s2070 + $0x38] sm:$0x1f] %v2096
        %v2098 = vld [vmem:[#allocation3] sm:$0xf]
        %v2099 = vld [vmem:[#allocation3 + $0x8] sm:$0xf]
        %v2100 = vld [vmem:[#allocation3 + $0x10] sm:$0xf]
        %v2101 = vld [vmem:[#allocation3 + $0x18] sm:$0xf]
        %v2102 = vld [vmem:[#allocation3 + $0x20] sm:$0xf]
        %v2103 = vld [vmem:[#allocation3 + $0x28] sm:$0xf]
        %v2104 = vld [vmem:[#allocation3 + $0x30] sm:$0xf]
        %v2105 = vld [vmem:[#allocation3 + $0x38] sm:$0xf]
        %v2114 = vunpack.c.l.b16 %v2098
        %v2115 = vunpack.c.l.b16 %v2099
        %v2116 = vunpack.c.l.b16 %v2100
        %v2117 = vunpack.c.l.b16 %v2101
        %v2118 = vunpack.c.l.b16 %v2102
        %v2119 = vunpack.c.l.b16 %v2103
        %v2120 = vunpack.c.l.b16 %v2104
        %v2121 = vunpack.c.l.b16 %v2105
        %v2122 = vpack.c.b16 %v2115, %v2114
        %v2123 = vpack.c.b16 %v2117, %v2116
        %v2124 = vpack.c.b16 %v2119, %v2118
        %v2125 = vpack.c.b16 %v2121, %v2120
        %2130 = vst [vmem:[#allocation4] sm:$0xff] %v2122
        %2131 = vst [vmem:[#allocation4 + $0x48] sm:$0xff] %v2123
        %2132 = vst [vmem:[#allocation4 + $0x90] sm:$0xff] %v2124
        %2133 = vst [vmem:[#allocation4 + $0xd8] sm:$0xff] %v2125
        %v2134 = vld [vmem:[#allocation3] sm:$0x1f]
        %v2135 = vld [vmem:[#allocation3 + $0x8] sm:$0x1f]
        %v2136 = vld [vmem:[#allocation3 + $0x10] sm:$0x1f]
        %v2137 = vld [vmem:[#allocation3 + $0x18] sm:$0x1f]
        %v2138 = vld [vmem:[#allocation3 + $0x20] sm:$0x1f]
        %v2139 = vld [vmem:[#allocation3 + $0x28] sm:$0x1f]
        %v2140 = vld [vmem:[#allocation3 + $0x30] sm:$0x1f]
        %v2141 = vld [vmem:[#allocation3 + $0x38] sm:$0x1f]
        %v2150 = vunpack.c.l.b16 %v2134
        %v2151 = vunpack.c.h.b16 %v2134
        %v2152 = vunpack.c.l.b16 %v2135
        %v2153 = vunpack.c.h.b16 %v2135
        %v2154 = vunpack.c.l.b16 %v2136
        %v2155 = vunpack.c.h.b16 %v2136
        %v2156 = vunpack.c.l.b16 %v2137
        %v2157 = vunpack.c.h.b16 %v2137
        %v2158 = vunpack.c.l.b16 %v2138
        %v2159 = vunpack.c.h.b16 %v2138
        %v2160 = vunpack.c.l.b16 %v2139
        %v2161 = vunpack.c.h.b16 %v2139
        %v2162 = vunpack.c.l.b16 %v2140
        %v2163 = vunpack.c.h.b16 %v2140
        %v2164 = vunpack.c.l.b16 %v2141
        %v2165 = vunpack.c.h.b16 %v2141
        %v2166 = vpack.c.b16 %v2150, %v2150
        %v2167 = vpack.c.b16 %v2151, %v2151
        %v2168 = vpack.c.b16 %v2152, %v2152
        %v2169 = vpack.c.b16 %v2153, %v2153
        %v2170 = vpack.c.b16 %v2154, %v2154
        %v2171 = vpack.c.b16 %v2155, %v2155
        %v2172 = vpack.c.b16 %v2156, %v2156
        %v2173 = vpack.c.b16 %v2157, %v2157
        %v2174 = vpack.c.b16 %v2158, %v2158
        %v2175 = vpack.c.b16 %v2159, %v2159
        %v2176 = vpack.c.b16 %v2160, %v2160
        %v2177 = vpack.c.b16 %v2161, %v2161
        %v2178 = vpack.c.b16 %v2162, %v2162
        %v2179 = vpack.c.b16 %v2163, %v2163
        %v2180 = vpack.c.b16 %v2164, %v2164
        %v2181 = vpack.c.b16 %v2165, %v2165
        %v2183 = vshrl.u32 %v2166, 16
        %v2185 = vrot.slane %v2183, 4
        %v2186 = vshll.u32 %v2166, 16
        %v2188 = vrot.slane %v2186, 5
        %v2189 = vor.u32 %v2185, %v2188
        %v2190 = vrot.slane %v2189, 4
        %v2192 = vshll.u32 %v2167, 16
        %v2194 = vrot.slane %v2192, 5
        %v2195 = vsel %vm384, %v2190, %v2194
        %v2197 = vshrl.u32 %v2168, 16
        %v2199 = vrot.slane %v2197, 4
        %v2200 = vshll.u32 %v2168, 16
        %v2202 = vrot.slane %v2200, 5
        %v2203 = vor.u32 %v2199, %v2202
        %v2204 = vrot.slane %v2203, 4
        %v2206 = vshll.u32 %v2169, 16
        %v2208 = vrot.slane %v2206, 5
        %v2209 = vsel %vm384, %v2204, %v2208
        %v2211 = vshrl.u32 %v2170, 16
        %v2213 = vrot.slane %v2211, 4
        %v2214 = vshll.u32 %v2170, 16
        %v2216 = vrot.slane %v2214, 5
        %v2217 = vor.u32 %v2213, %v2216
        %v2218 = vrot.slane %v2217, 4
        %v2220 = vshll.u32 %v2171, 16
        %v2222 = vrot.slane %v2220, 5
        %v2223 = vsel %vm384, %v2218, %v2222
        %v2225 = vshrl.u32 %v2172, 16
        %v2227 = vrot.slane %v2225, 4
        %v2228 = vshll.u32 %v2172, 16
        %v2230 = vrot.slane %v2228, 5
        %v2231 = vor.u32 %v2227, %v2230
        %v2232 = vrot.slane %v2231, 4
        %v2234 = vshll.u32 %v2173, 16
        %v2236 = vrot.slane %v2234, 5
        %v2237 = vsel %vm384, %v2232, %v2236
        %v2239 = vshrl.u32 %v2174, 16
        %v2241 = vrot.slane %v2239, 4
        %v2242 = vshll.u32 %v2174, 16
        %v2244 = vrot.slane %v2242, 5
        %v2245 = vor.u32 %v2241, %v2244
        %v2246 = vrot.slane %v2245, 4
        %v2248 = vshll.u32 %v2175, 16
        %v2250 = vrot.slane %v2248, 5
        %v2251 = vsel %vm384, %v2246, %v2250
        %v2253 = vshrl.u32 %v2176, 16
        %v2255 = vrot.slane %v2253, 4
        %v2256 = vshll.u32 %v2176, 16
        %v2258 = vrot.slane %v2256, 5
        %v2259 = vor.u32 %v2255, %v2258
        %v2260 = vrot.slane %v2259, 4
        %v2262 = vshll.u32 %v2177, 16
        %v2264 = vrot.slane %v2262, 5
        %v2265 = vsel %vm384, %v2260, %v2264
        %v2267 = vshrl.u32 %v2178, 16
        %v2269 = vrot.slane %v2267, 4
        %v2270 = vshll.u32 %v2178, 16
        %v2272 = vrot.slane %v2270, 5
        %v2273 = vor.u32 %v2269, %v2272
        %v2274 = vrot.slane %v2273, 4
        %v2276 = vshll.u32 %v2179, 16
        %v2278 = vrot.slane %v2276, 5
        %v2279 = vsel %vm384, %v2274, %v2278
        %v2281 = vshrl.u32 %v2180, 16
        %v2283 = vrot.slane %v2281, 4
        %v2284 = vshll.u32 %v2180, 16
        %v2286 = vrot.slane %v2284, 5
        %v2287 = vor.u32 %v2283, %v2286
        %v2288 = vrot.slane %v2287, 4
        %v2290 = vshll.u32 %v2181, 16
        %v2292 = vrot.slane %v2290, 5
        %v2293 = vsel %vm384, %v2288, %v2292
        %v2294 = vunpack.c.l.b16 %v2195
        %v2295 = vunpack.c.l.b16 %v2209
        %v2296 = vunpack.c.l.b16 %v2223
        %v2297 = vunpack.c.l.b16 %v2237
        %v2298 = vunpack.c.l.b16 %v2251
        %v2299 = vunpack.c.l.b16 %v2265
        %v2300 = vunpack.c.l.b16 %v2279
        %v2301 = vunpack.c.l.b16 %v2293
        %v2302 = vpack.c.b16 %v2295, %v2294
        %v2303 = vpack.c.b16 %v2297, %v2296
        %v2304 = vpack.c.b16 %v2299, %v2298
        %v2305 = vpack.c.b16 %v2301, %v2300
        %2310 = vst [vmem:[#allocation4 + $0x8] sm:$0xff] %v2302
        %2311 = vst [vmem:[#allocation4 + $0x50] sm:$0xff] %v2303
        %2312 = vst [vmem:[#allocation4 + $0x98] sm:$0xff] %v2304
        %2313 = vst [vmem:[#allocation4 + $0xe0] sm:$0xff] %v2305
        %v2314 = vld [vmem:[#allocation3] sm:$0x1e]
        %v2315 = vld [vmem:[#allocation3 + $0x8] sm:$0x1e]
        %v2316 = vld [vmem:[#allocation3 + $0x10] sm:$0x1e]
        %v2317 = vld [vmem:[#allocation3 + $0x18] sm:$0x1e]
        %v2318 = vld [vmem:[#allocation3 + $0x20] sm:$0x1e]
        %v2319 = vld [vmem:[#allocation3 + $0x28] sm:$0x1e]
        %v2320 = vld [vmem:[#allocation3 + $0x30] sm:$0x1e]
        %v2321 = vld [vmem:[#allocation3 + $0x38] sm:$0x1e]
        %v2330 = vunpack.c.l.b16 %v2314
        %v2331 = vunpack.c.h.b16 %v2314
        %v2332 = vunpack.c.l.b16 %v2315
        %v2333 = vunpack.c.h.b16 %v2315
        %v2334 = vunpack.c.l.b16 %v2316
        %v2335 = vunpack.c.h.b16 %v2316
        %v2336 = vunpack.c.l.b16 %v2317
        %v2337 = vunpack.c.h.b16 %v2317
        %v2338 = vunpack.c.l.b16 %v2318
        %v2339 = vunpack.c.h.b16 %v2318
        %v2340 = vunpack.c.l.b16 %v2319
        %v2341 = vunpack.c.h.b16 %v2319
        %v2342 = vunpack.c.l.b16 %v2320
        %v2343 = vunpack.c.h.b16 %v2320
        %v2344 = vunpack.c.l.b16 %v2321
        %v2345 = vunpack.c.h.b16 %v2321
        %v2346 = vpack.c.b16 %v2330, %v2330
        %v2347 = vpack.c.b16 %v2331, %v2331
        %v2348 = vpack.c.b16 %v2332, %v2332
        %v2349 = vpack.c.b16 %v2333, %v2333
        %v2350 = vpack.c.b16 %v2334, %v2334
        %v2351 = vpack.c.b16 %v2335, %v2335
        %v2352 = vpack.c.b16 %v2336, %v2336
        %v2353 = vpack.c.b16 %v2337, %v2337
        %v2354 = vpack.c.b16 %v2338, %v2338
        %v2355 = vpack.c.b16 %v2339, %v2339
        %v2356 = vpack.c.b16 %v2340, %v2340
        %v2357 = vpack.c.b16 %v2341, %v2341
        %v2358 = vpack.c.b16 %v2342, %v2342
        %v2359 = vpack.c.b16 %v2343, %v2343
        %v2360 = vpack.c.b16 %v2344, %v2344
        %v2361 = vpack.c.b16 %v2345, %v2345
        %vm2362 = vcmask 1042432
        %vm2363 = vcmask 1046532
        %vm2364 = vmor %vm2362, %vm2363
        %v2365 = vrot.slane %v2346, 5
        %v2366 = vrot.slane %v2365, 4
        %v2367 = vrot.slane %v2347, 5
        %v2368 = vsel %vm2364, %v2366, %v2367
        %v2369 = vrot.slane %v2348, 5
        %v2370 = vrot.slane %v2369, 4
        %v2371 = vrot.slane %v2349, 5
        %v2372 = vsel %vm2364, %v2370, %v2371
        %v2373 = vrot.slane %v2350, 5
        %v2374 = vrot.slane %v2373, 4
        %v2375 = vrot.slane %v2351, 5
        %v2376 = vsel %vm2364, %v2374, %v2375
        %v2377 = vrot.slane %v2352, 5
        %v2378 = vrot.slane %v2377, 4
        %v2379 = vrot.slane %v2353, 5
        %v2380 = vsel %vm2364, %v2378, %v2379
        %v2381 = vrot.slane %v2354, 5
        %v2382 = vrot.slane %v2381, 4
        %v2383 = vrot.slane %v2355, 5
        %v2384 = vsel %vm2364, %v2382, %v2383
        %v2385 = vrot.slane %v2356, 5
        %v2386 = vrot.slane %v2385, 4
        %v2387 = vrot.slane %v2357, 5
        %v2388 = vsel %vm2364, %v2386, %v2387
        %v2389 = vrot.slane %v2358, 5
        %v2390 = vrot.slane %v2389, 4
        %v2391 = vrot.slane %v2359, 5
        %v2392 = vsel %vm2364, %v2390, %v2391
        %v2393 = vrot.slane %v2360, 5
        %v2394 = vrot.slane %v2393, 4
        %v2395 = vrot.slane %v2361, 5
        %v2396 = vsel %vm2364, %v2394, %v2395
        %v2397 = vunpack.c.l.b16 %v2368
        %v2398 = vunpack.c.l.b16 %v2372
        %v2399 = vunpack.c.l.b16 %v2376
        %v2400 = vunpack.c.l.b16 %v2380
        %v2401 = vunpack.c.l.b16 %v2384
        %v2402 = vunpack.c.l.b16 %v2388
        %v2403 = vunpack.c.l.b16 %v2392
        %v2404 = vunpack.c.l.b16 %v2396
        %v2405 = vpack.c.b16 %v2398, %v2397
        %v2406 = vpack.c.b16 %v2400, %v2399
        %v2407 = vpack.c.b16 %v2402, %v2401
        %v2408 = vpack.c.b16 %v2404, %v2403
        %2413 = vst [vmem:[#allocation4 + $0x10] sm:$0xff] %v2405
        %2414 = vst [vmem:[#allocation4 + $0x58] sm:$0xff] %v2406
        %2415 = vst [vmem:[#allocation4 + $0xa0] sm:$0xff] %v2407
        %2416 = vst [vmem:[#allocation4 + $0xe8] sm:$0xff] %v2408
        %v2417 = vld [vmem:[%s2070] sm:$0xf]
        %v2418 = vld [vmem:[%s2070 + $0x8] sm:$0xf]
        %v2419 = vld [vmem:[%s2070 + $0x10] sm:$0xf]
        %v2420 = vld [vmem:[%s2070 + $0x18] sm:$0xf]
        %v2421 = vld [vmem:[%s2070 + $0x20] sm:$0xf]
        %v2422 = vld [vmem:[%s2070 + $0x28] sm:$0xf]
        %v2423 = vld [vmem:[%s2070 + $0x30] sm:$0xf]
        %v2424 = vld [vmem:[%s2070 + $0x38] sm:$0xf]
        %v2433 = vunpack.c.l.b16 %v2417
        %v2434 = vunpack.c.l.b16 %v2418
        %v2435 = vunpack.c.l.b16 %v2419
        %v2436 = vunpack.c.l.b16 %v2420
        %v2437 = vunpack.c.l.b16 %v2421
        %v2438 = vunpack.c.l.b16 %v2422
        %v2439 = vunpack.c.l.b16 %v2423
        %v2440 = vunpack.c.l.b16 %v2424
        %v2441 = vpack.c.b16 %v2434, %v2433
        %v2442 = vpack.c.b16 %v2436, %v2435
        %v2443 = vpack.c.b16 %v2438, %v2437
        %v2444 = vpack.c.b16 %v2440, %v2439
        %2449 = vst [vmem:[#allocation4 + $0x18] sm:$0xff] %v2441
        %2450 = vst [vmem:[#allocation4 + $0x60] sm:$0xff] %v2442
        %2451 = vst [vmem:[#allocation4 + $0xa8] sm:$0xff] %v2443
        %2452 = vst [vmem:[#allocation4 + $0xf0] sm:$0xff] %v2444
        %v2453 = vld [vmem:[%s2070] sm:$0x1f]
        %v2454 = vld [vmem:[%s2070 + $0x8] sm:$0x1f]
        %v2455 = vld [vmem:[%s2070 + $0x10] sm:$0x1f]
        %v2456 = vld [vmem:[%s2070 + $0x18] sm:$0x1f]
        %v2457 = vld [vmem:[%s2070 + $0x20] sm:$0x1f]
        %v2458 = vld [vmem:[%s2070 + $0x28] sm:$0x1f]
        %v2459 = vld [vmem:[%s2070 + $0x30] sm:$0x1f]
        %v2460 = vld [vmem:[%s2070 + $0x38] sm:$0x1f]
        %v2469 = vunpack.c.l.b16 %v2453
        %v2470 = vunpack.c.h.b16 %v2453
        %v2471 = vunpack.c.l.b16 %v2454
        %v2472 = vunpack.c.h.b16 %v2454
        %v2473 = vunpack.c.l.b16 %v2455
        %v2474 = vunpack.c.h.b16 %v2455
        %v2475 = vunpack.c.l.b16 %v2456
        %v2476 = vunpack.c.h.b16 %v2456
        %v2477 = vunpack.c.l.b16 %v2457
        %v2478 = vunpack.c.h.b16 %v2457
        %v2479 = vunpack.c.l.b16 %v2458
        %v2480 = vunpack.c.h.b16 %v2458
        %v2481 = vunpack.c.l.b16 %v2459
        %v2482 = vunpack.c.h.b16 %v2459
        %v2483 = vunpack.c.l.b16 %v2460
        %v2484 = vunpack.c.h.b16 %v2460
        %v2485 = vpack.c.b16 %v2469, %v2469
        %v2486 = vpack.c.b16 %v2470, %v2470
        %v2487 = vpack.c.b16 %v2471, %v2471
        %v2488 = vpack.c.b16 %v2472, %v2472
        %v2489 = vpack.c.b16 %v2473, %v2473
        %v2490 = vpack.c.b16 %v2474, %v2474
        %v2491 = vpack.c.b16 %v2475, %v2475
        %v2492 = vpack.c.b16 %v2476, %v2476
        %v2493 = vpack.c.b16 %v2477, %v2477
        %v2494 = vpack.c.b16 %v2478, %v2478
        %v2495 = vpack.c.b16 %v2479, %v2479
        %v2496 = vpack.c.b16 %v2480, %v2480
        %v2497 = vpack.c.b16 %v2481, %v2481
        %v2498 = vpack.c.b16 %v2482, %v2482
        %v2499 = vpack.c.b16 %v2483, %v2483
        %v2500 = vpack.c.b16 %v2484, %v2484
        %v2502 = vshrl.u32 %v2485, 16
        %v2504 = vrot.slane %v2502, 4
        %v2505 = vshll.u32 %v2485, 16
        %v2507 = vrot.slane %v2505, 5
        %v2508 = vor.u32 %v2504, %v2507
        %v2509 = vrot.slane %v2508, 4
        %v2511 = vshll.u32 %v2486, 16
        %v2513 = vrot.slane %v2511, 5
        %v2514 = vsel %vm384, %v2509, %v2513
        %v2516 = vshrl.u32 %v2487, 16
        %v2518 = vrot.slane %v2516, 4
        %v2519 = vshll.u32 %v2487, 16
        %v2521 = vrot.slane %v2519, 5
        %v2522 = vor.u32 %v2518, %v2521
        %v2523 = vrot.slane %v2522, 4
        %v2525 = vshll.u32 %v2488, 16
        %v2527 = vrot.slane %v2525, 5
        %v2528 = vsel %vm384, %v2523, %v2527
        %v2530 = vshrl.u32 %v2489, 16
        %v2532 = vrot.slane %v2530, 4
        %v2533 = vshll.u32 %v2489, 16
        %v2535 = vrot.slane %v2533, 5
        %v2536 = vor.u32 %v2532, %v2535
        %v2537 = vrot.slane %v2536, 4
        %v2539 = vshll.u32 %v2490, 16
        %v2541 = vrot.slane %v2539, 5
        %v2542 = vsel %vm384, %v2537, %v2541
        %v2544 = vshrl.u32 %v2491, 16
        %v2546 = vrot.slane %v2544, 4
        %v2547 = vshll.u32 %v2491, 16
        %v2549 = vrot.slane %v2547, 5
        %v2550 = vor.u32 %v2546, %v2549
        %v2551 = vrot.slane %v2550, 4
        %v2553 = vshll.u32 %v2492, 16
        %v2555 = vrot.slane %v2553, 5
        %v2556 = vsel %vm384, %v2551, %v2555
        %v2558 = vshrl.u32 %v2493, 16
        %v2560 = vrot.slane %v2558, 4
        %v2561 = vshll.u32 %v2493, 16
        %v2563 = vrot.slane %v2561, 5
        %v2564 = vor.u32 %v2560, %v2563
        %v2565 = vrot.slane %v2564, 4
        %v2567 = vshll.u32 %v2494, 16
        %v2569 = vrot.slane %v2567, 5
        %v2570 = vsel %vm384, %v2565, %v2569
        %v2572 = vshrl.u32 %v2495, 16
        %v2574 = vrot.slane %v2572, 4
        %v2575 = vshll.u32 %v2495, 16
        %v2577 = vrot.slane %v2575, 5
        %v2578 = vor.u32 %v2574, %v2577
        %v2579 = vrot.slane %v2578, 4
        %v2581 = vshll.u32 %v2496, 16
        %v2583 = vrot.slane %v2581, 5
        %v2584 = vsel %vm384, %v2579, %v2583
        %v2586 = vshrl.u32 %v2497, 16
        %v2588 = vrot.slane %v2586, 4
        %v2589 = vshll.u32 %v2497, 16
        %v2591 = vrot.slane %v2589, 5
        %v2592 = vor.u32 %v2588, %v2591
        %v2593 = vrot.slane %v2592, 4
        %v2595 = vshll.u32 %v2498, 16
        %v2597 = vrot.slane %v2595, 5
        %v2598 = vsel %vm384, %v2593, %v2597
        %v2600 = vshrl.u32 %v2499, 16
        %v2602 = vrot.slane %v2600, 4
        %v2603 = vshll.u32 %v2499, 16
        %v2605 = vrot.slane %v2603, 5
        %v2606 = vor.u32 %v2602, %v2605
        %v2607 = vrot.slane %v2606, 4
        %v2609 = vshll.u32 %v2500, 16
        %v2611 = vrot.slane %v2609, 5
        %v2612 = vsel %vm384, %v2607, %v2611
        %v2613 = vunpack.c.l.b16 %v2514
        %v2614 = vunpack.c.l.b16 %v2528
        %v2615 = vunpack.c.l.b16 %v2542
        %v2616 = vunpack.c.l.b16 %v2556
        %v2617 = vunpack.c.l.b16 %v2570
        %v2618 = vunpack.c.l.b16 %v2584
        %v2619 = vunpack.c.l.b16 %v2598
        %v2620 = vunpack.c.l.b16 %v2612
        %v2621 = vpack.c.b16 %v2614, %v2613
        %v2622 = vpack.c.b16 %v2616, %v2615
        %v2623 = vpack.c.b16 %v2618, %v2617
        %v2624 = vpack.c.b16 %v2620, %v2619
        %2629 = vst [vmem:[#allocation4 + $0x20] sm:$0xff] %v2621
        %2630 = vst [vmem:[#allocation4 + $0x68] sm:$0xff] %v2622
        %2631 = vst [vmem:[#allocation4 + $0xb0] sm:$0xff] %v2623
        %2632 = vst [vmem:[#allocation4 + $0xf8] sm:$0xff] %v2624
        %v2633 = vld [vmem:[%s2070] sm:$0x1e]
        %v2634 = vld [vmem:[%s2070 + $0x8] sm:$0x1e]
        %v2635 = vld [vmem:[%s2070 + $0x10] sm:$0x1e]
        %v2636 = vld [vmem:[%s2070 + $0x18] sm:$0x1e]
        %v2637 = vld [vmem:[%s2070 + $0x20] sm:$0x1e]
        %v2638 = vld [vmem:[%s2070 + $0x28] sm:$0x1e]
        %v2639 = vld [vmem:[%s2070 + $0x30] sm:$0x1e]
        %v2640 = vld [vmem:[%s2070 + $0x38] sm:$0x1e]
        %v2649 = vunpack.c.l.b16 %v2633
        %v2650 = vunpack.c.h.b16 %v2633
        %v2651 = vunpack.c.l.b16 %v2634
        %v2652 = vunpack.c.h.b16 %v2634
        %v2653 = vunpack.c.l.b16 %v2635
        %v2654 = vunpack.c.h.b16 %v2635
        %v2655 = vunpack.c.l.b16 %v2636
        %v2656 = vunpack.c.h.b16 %v2636
        %v2657 = vunpack.c.l.b16 %v2637
        %v2658 = vunpack.c.h.b16 %v2637
        %v2659 = vunpack.c.l.b16 %v2638
        %v2660 = vunpack.c.h.b16 %v2638
        %v2661 = vunpack.c.l.b16 %v2639
        %v2662 = vunpack.c.h.b16 %v2639
        %v2663 = vunpack.c.l.b16 %v2640
        %v2664 = vunpack.c.h.b16 %v2640
        %v2665 = vpack.c.b16 %v2649, %v2649
        %v2666 = vpack.c.b16 %v2650, %v2650
        %v2667 = vpack.c.b16 %v2651, %v2651
        %v2668 = vpack.c.b16 %v2652, %v2652
        %v2669 = vpack.c.b16 %v2653, %v2653
        %v2670 = vpack.c.b16 %v2654, %v2654
        %v2671 = vpack.c.b16 %v2655, %v2655
        %v2672 = vpack.c.b16 %v2656, %v2656
        %v2673 = vpack.c.b16 %v2657, %v2657
        %v2674 = vpack.c.b16 %v2658, %v2658
        %v2675 = vpack.c.b16 %v2659, %v2659
        %v2676 = vpack.c.b16 %v2660, %v2660
        %v2677 = vpack.c.b16 %v2661, %v2661
        %v2678 = vpack.c.b16 %v2662, %v2662
        %v2679 = vpack.c.b16 %v2663, %v2663
        %v2680 = vpack.c.b16 %v2664, %v2664
        %v2681 = vrot.slane %v2665, 5
        %v2682 = vrot.slane %v2681, 4
        %v2683 = vrot.slane %v2666, 5
        %v2684 = vsel %vm2364, %v2682, %v2683
        %v2685 = vrot.slane %v2667, 5
        %v2686 = vrot.slane %v2685, 4
        %v2687 = vrot.slane %v2668, 5
        %v2688 = vsel %vm2364, %v2686, %v2687
        %v2689 = vrot.slane %v2669, 5
        %v2690 = vrot.slane %v2689, 4
        %v2691 = vrot.slane %v2670, 5
        %v2692 = vsel %vm2364, %v2690, %v2691
        %v2693 = vrot.slane %v2671, 5
        %v2694 = vrot.slane %v2693, 4
        %v2695 = vrot.slane %v2672, 5
        %v2696 = vsel %vm2364, %v2694, %v2695
        %v2697 = vrot.slane %v2673, 5
        %v2698 = vrot.slane %v2697, 4
        %v2699 = vrot.slane %v2674, 5
        %v2700 = vsel %vm2364, %v2698, %v2699
        %v2701 = vrot.slane %v2675, 5
        %v2702 = vrot.slane %v2701, 4
        %v2703 = vrot.slane %v2676, 5
        %v2704 = vsel %vm2364, %v2702, %v2703
        %v2705 = vrot.slane %v2677, 5
        %v2706 = vrot.slane %v2705, 4
        %v2707 = vrot.slane %v2678, 5
        %v2708 = vsel %vm2364, %v2706, %v2707
        %v2709 = vrot.slane %v2679, 5
        %v2710 = vrot.slane %v2709, 4
        %v2711 = vrot.slane %v2680, 5
        %v2712 = vsel %vm2364, %v2710, %v2711
        %v2713 = vunpack.c.l.b16 %v2684
        %v2714 = vunpack.c.l.b16 %v2688
        %v2715 = vunpack.c.l.b16 %v2692
        %v2716 = vunpack.c.l.b16 %v2696
        %v2717 = vunpack.c.l.b16 %v2700
        %v2718 = vunpack.c.l.b16 %v2704
        %v2719 = vunpack.c.l.b16 %v2708
        %v2720 = vunpack.c.l.b16 %v2712
        %v2721 = vpack.c.b16 %v2714, %v2713
        %v2722 = vpack.c.b16 %v2716, %v2715
        %v2723 = vpack.c.b16 %v2718, %v2717
        %v2724 = vpack.c.b16 %v2720, %v2719
        %2729 = vst [vmem:[#allocation4 + $0x28] sm:$0xff] %v2721
        %2730 = vst [vmem:[#allocation4 + $0x70] sm:$0xff] %v2722
        %2731 = vst [vmem:[#allocation4 + $0xb8] sm:$0xff] %v2723
        %2732 = vst [vmem:[#allocation4 + $0x100] sm:$0xff] %v2724
        %s2733 = scalar_lea.vmem [#allocation3], 16
        %v2734 = vld [vmem:[%s2733] sm:$0xf]
        %v2735 = vld [vmem:[%s2733 + $0x8] sm:$0xf]
        %v2736 = vld [vmem:[%s2733 + $0x10] sm:$0xf]
        %v2737 = vld [vmem:[%s2733 + $0x18] sm:$0xf]
        %v2738 = vld [vmem:[%s2733 + $0x20] sm:$0xf]
        %v2739 = vld [vmem:[%s2733 + $0x28] sm:$0xf]
        %v2740 = vld [vmem:[%s2733 + $0x30] sm:$0xf]
        %v2741 = vld [vmem:[%s2733 + $0x38] sm:$0xf]
        %v2750 = vunpack.c.l.b16 %v2734
        %v2751 = vunpack.c.l.b16 %v2735
        %v2752 = vunpack.c.l.b16 %v2736
        %v2753 = vunpack.c.l.b16 %v2737
        %v2754 = vunpack.c.l.b16 %v2738
        %v2755 = vunpack.c.l.b16 %v2739
        %v2756 = vunpack.c.l.b16 %v2740
        %v2757 = vunpack.c.l.b16 %v2741
        %v2758 = vpack.c.b16 %v2751, %v2750
        %v2759 = vpack.c.b16 %v2753, %v2752
        %v2760 = vpack.c.b16 %v2755, %v2754
        %v2761 = vpack.c.b16 %v2757, %v2756
        %2766 = vst [vmem:[#allocation4 + $0x30] sm:$0xff] %v2758
        %2767 = vst [vmem:[#allocation4 + $0x78] sm:$0xff] %v2759
        %2768 = vst [vmem:[#allocation4 + $0xc0] sm:$0xff] %v2760
        %2769 = vst [vmem:[#allocation4 + $0x108] sm:$0xff] %v2761
        %v2770 = vld [vmem:[%s2733] sm:$0x1f]
        %v2771 = vld [vmem:[%s2733 + $0x8] sm:$0x1f]
        %v2772 = vld [vmem:[%s2733 + $0x10] sm:$0x1f]
        %v2773 = vld [vmem:[%s2733 + $0x18] sm:$0x1f]
        %v2774 = vld [vmem:[%s2733 + $0x20] sm:$0x1f]
        %v2775 = vld [vmem:[%s2733 + $0x28] sm:$0x1f]
        %v2776 = vld [vmem:[%s2733 + $0x30] sm:$0x1f]
        %v2777 = vld [vmem:[%s2733 + $0x38] sm:$0x1f]
        %v2786 = vunpack.c.l.b16 %v2770
        %v2787 = vunpack.c.h.b16 %v2770
        %v2788 = vunpack.c.l.b16 %v2771
        %v2789 = vunpack.c.h.b16 %v2771
        %v2790 = vunpack.c.l.b16 %v2772
        %v2791 = vunpack.c.h.b16 %v2772
        %v2792 = vunpack.c.l.b16 %v2773
        %v2793 = vunpack.c.h.b16 %v2773
        %v2794 = vunpack.c.l.b16 %v2774
        %v2795 = vunpack.c.h.b16 %v2774
        %v2796 = vunpack.c.l.b16 %v2775
        %v2797 = vunpack.c.h.b16 %v2775
        %v2798 = vunpack.c.l.b16 %v2776
        %v2799 = vunpack.c.h.b16 %v2776
        %v2800 = vunpack.c.l.b16 %v2777
        %v2801 = vunpack.c.h.b16 %v2777
        %v2802 = vpack.c.b16 %v2786, %v2786
        %v2803 = vpack.c.b16 %v2787, %v2787
        %v2804 = vpack.c.b16 %v2788, %v2788
        %v2805 = vpack.c.b16 %v2789, %v2789
        %v2806 = vpack.c.b16 %v2790, %v2790
        %v2807 = vpack.c.b16 %v2791, %v2791
        %v2808 = vpack.c.b16 %v2792, %v2792
        %v2809 = vpack.c.b16 %v2793, %v2793
        %v2810 = vpack.c.b16 %v2794, %v2794
        %v2811 = vpack.c.b16 %v2795, %v2795
        %v2812 = vpack.c.b16 %v2796, %v2796
        %v2813 = vpack.c.b16 %v2797, %v2797
        %v2814 = vpack.c.b16 %v2798, %v2798
        %v2815 = vpack.c.b16 %v2799, %v2799
        %v2816 = vpack.c.b16 %v2800, %v2800
        %v2817 = vpack.c.b16 %v2801, %v2801
        %v2819 = vshrl.u32 %v2802, 16
        %v2821 = vrot.slane %v2819, 4
        %v2822 = vshll.u32 %v2802, 16
        %v2824 = vrot.slane %v2822, 5
        %v2825 = vor.u32 %v2821, %v2824
        %v2826 = vrot.slane %v2825, 4
        %v2828 = vshll.u32 %v2803, 16
        %v2830 = vrot.slane %v2828, 5
        %v2831 = vsel %vm384, %v2826, %v2830
        %v2833 = vshrl.u32 %v2804, 16
        %v2835 = vrot.slane %v2833, 4
        %v2836 = vshll.u32 %v2804, 16
        %v2838 = vrot.slane %v2836, 5
        %v2839 = vor.u32 %v2835, %v2838
        %v2840 = vrot.slane %v2839, 4
        %v2842 = vshll.u32 %v2805, 16
        %v2844 = vrot.slane %v2842, 5
        %v2845 = vsel %vm384, %v2840, %v2844
        %v2847 = vshrl.u32 %v2806, 16
        %v2849 = vrot.slane %v2847, 4
        %v2850 = vshll.u32 %v2806, 16
        %v2852 = vrot.slane %v2850, 5
        %v2853 = vor.u32 %v2849, %v2852
        %v2854 = vrot.slane %v2853, 4
        %v2856 = vshll.u32 %v2807, 16
        %v2858 = vrot.slane %v2856, 5
        %v2859 = vsel %vm384, %v2854, %v2858
        %v2861 = vshrl.u32 %v2808, 16
        %v2863 = vrot.slane %v2861, 4
        %v2864 = vshll.u32 %v2808, 16
        %v2866 = vrot.slane %v2864, 5
        %v2867 = vor.u32 %v2863, %v2866
        %v2868 = vrot.slane %v2867, 4
        %v2870 = vshll.u32 %v2809, 16
        %v2872 = vrot.slane %v2870, 5
        %v2873 = vsel %vm384, %v2868, %v2872
        %v2875 = vshrl.u32 %v2810, 16
        %v2877 = vrot.slane %v2875, 4
        %v2878 = vshll.u32 %v2810, 16
        %v2880 = vrot.slane %v2878, 5
        %v2881 = vor.u32 %v2877, %v2880
        %v2882 = vrot.slane %v2881, 4
        %v2884 = vshll.u32 %v2811, 16
        %v2886 = vrot.slane %v2884, 5
        %v2887 = vsel %vm384, %v2882, %v2886
        %v2889 = vshrl.u32 %v2812, 16
        %v2891 = vrot.slane %v2889, 4
        %v2892 = vshll.u32 %v2812, 16
        %v2894 = vrot.slane %v2892, 5
        %v2895 = vor.u32 %v2891, %v2894
        %v2896 = vrot.slane %v2895, 4
        %v2898 = vshll.u32 %v2813, 16
        %v2900 = vrot.slane %v2898, 5
        %v2901 = vsel %vm384, %v2896, %v2900
        %v2903 = vshrl.u32 %v2814, 16
        %v2905 = vrot.slane %v2903, 4
        %v2906 = vshll.u32 %v2814, 16
        %v2908 = vrot.slane %v2906, 5
        %v2909 = vor.u32 %v2905, %v2908
        %v2910 = vrot.slane %v2909, 4
        %v2912 = vshll.u32 %v2815, 16
        %v2914 = vrot.slane %v2912, 5
        %v2915 = vsel %vm384, %v2910, %v2914
        %v2917 = vshrl.u32 %v2816, 16
        %v2919 = vrot.slane %v2917, 4
        %v2920 = vshll.u32 %v2816, 16
        %v2922 = vrot.slane %v2920, 5
        %v2923 = vor.u32 %v2919, %v2922
        %v2924 = vrot.slane %v2923, 4
        %v2926 = vshll.u32 %v2817, 16
        %v2928 = vrot.slane %v2926, 5
        %v2929 = vsel %vm384, %v2924, %v2928
        %v2930 = vunpack.c.l.b16 %v2831
        %v2931 = vunpack.c.l.b16 %v2845
        %v2932 = vunpack.c.l.b16 %v2859
        %v2933 = vunpack.c.l.b16 %v2873
        %v2934 = vunpack.c.l.b16 %v2887
        %v2935 = vunpack.c.l.b16 %v2901
        %v2936 = vunpack.c.l.b16 %v2915
        %v2937 = vunpack.c.l.b16 %v2929
        %v2938 = vpack.c.b16 %v2931, %v2930
        %v2939 = vpack.c.b16 %v2933, %v2932
        %v2940 = vpack.c.b16 %v2935, %v2934
        %v2941 = vpack.c.b16 %v2937, %v2936
        %2946 = vst [vmem:[#allocation4 + $0x38] sm:$0xff] %v2938
        %2947 = vst [vmem:[#allocation4 + $0x80] sm:$0xff] %v2939
        %2948 = vst [vmem:[#allocation4 + $0xc8] sm:$0xff] %v2940
        %2949 = vst [vmem:[#allocation4 + $0x110] sm:$0xff] %v2941
        %v2950 = vld [vmem:[%s2733] sm:$0x1e]
        %v2951 = vld [vmem:[%s2733 + $0x8] sm:$0x1e]
        %v2952 = vld [vmem:[%s2733 + $0x10] sm:$0x1e]
        %v2953 = vld [vmem:[%s2733 + $0x18] sm:$0x1e]
        %v2954 = vld [vmem:[%s2733 + $0x20] sm:$0x1e]
        %v2955 = vld [vmem:[%s2733 + $0x28] sm:$0x1e]
        %v2956 = vld [vmem:[%s2733 + $0x30] sm:$0x1e]
        %v2957 = vld [vmem:[%s2733 + $0x38] sm:$0x1e]
        %v2966 = vunpack.c.l.b16 %v2950
        %v2967 = vunpack.c.h.b16 %v2950
        %v2968 = vunpack.c.l.b16 %v2951
        %v2969 = vunpack.c.h.b16 %v2951
        %v2970 = vunpack.c.l.b16 %v2952
        %v2971 = vunpack.c.h.b16 %v2952
        %v2972 = vunpack.c.l.b16 %v2953
        %v2973 = vunpack.c.h.b16 %v2953
        %v2974 = vunpack.c.l.b16 %v2954
        %v2975 = vunpack.c.h.b16 %v2954
        %v2976 = vunpack.c.l.b16 %v2955
        %v2977 = vunpack.c.h.b16 %v2955
        %v2978 = vunpack.c.l.b16 %v2956
        %v2979 = vunpack.c.h.b16 %v2956
        %v2980 = vunpack.c.l.b16 %v2957
        %v2981 = vunpack.c.h.b16 %v2957
        %v2982 = vpack.c.b16 %v2966, %v2966
        %v2983 = vpack.c.b16 %v2967, %v2967
        %v2984 = vpack.c.b16 %v2968, %v2968
        %v2985 = vpack.c.b16 %v2969, %v2969
        %v2986 = vpack.c.b16 %v2970, %v2970
        %v2987 = vpack.c.b16 %v2971, %v2971
        %v2988 = vpack.c.b16 %v2972, %v2972
        %v2989 = vpack.c.b16 %v2973, %v2973
        %v2990 = vpack.c.b16 %v2974, %v2974
        %v2991 = vpack.c.b16 %v2975, %v2975
        %v2992 = vpack.c.b16 %v2976, %v2976
        %v2993 = vpack.c.b16 %v2977, %v2977
        %v2994 = vpack.c.b16 %v2978, %v2978
        %v2995 = vpack.c.b16 %v2979, %v2979
        %v2996 = vpack.c.b16 %v2980, %v2980
        %v2997 = vpack.c.b16 %v2981, %v2981
        %v2998 = vrot.slane %v2982, 5
        %v2999 = vrot.slane %v2998, 4
        %v3000 = vrot.slane %v2983, 5
        %v3001 = vsel %vm2364, %v2999, %v3000
        %v3002 = vrot.slane %v2984, 5
        %v3003 = vrot.slane %v3002, 4
        %v3004 = vrot.slane %v2985, 5
        %v3005 = vsel %vm2364, %v3003, %v3004
        %v3006 = vrot.slane %v2986, 5
        %v3007 = vrot.slane %v3006, 4
        %v3008 = vrot.slane %v2987, 5
        %v3009 = vsel %vm2364, %v3007, %v3008
        %v3010 = vrot.slane %v2988, 5
        %v3011 = vrot.slane %v3010, 4
        %v3012 = vrot.slane %v2989, 5
        %v3013 = vsel %vm2364, %v3011, %v3012
        %v3014 = vrot.slane %v2990, 5
        %v3015 = vrot.slane %v3014, 4
        %v3016 = vrot.slane %v2991, 5
        %v3017 = vsel %vm2364, %v3015, %v3016
        %v3018 = vrot.slane %v2992, 5
        %v3019 = vrot.slane %v3018, 4
        %v3020 = vrot.slane %v2993, 5
        %v3021 = vsel %vm2364, %v3019, %v3020
        %v3022 = vrot.slane %v2994, 5
        %v3023 = vrot.slane %v3022, 4
        %v3024 = vrot.slane %v2995, 5
        %v3025 = vsel %vm2364, %v3023, %v3024
        %v3026 = vrot.slane %v2996, 5
        %v3027 = vrot.slane %v3026, 4
        %v3028 = vrot.slane %v2997, 5
        %v3029 = vsel %vm2364, %v3027, %v3028
        %v3030 = vunpack.c.l.b16 %v3001
        %v3031 = vunpack.c.l.b16 %v3005
        %v3032 = vunpack.c.l.b16 %v3009
        %v3033 = vunpack.c.l.b16 %v3013
        %v3034 = vunpack.c.l.b16 %v3017
        %v3035 = vunpack.c.l.b16 %v3021
        %v3036 = vunpack.c.l.b16 %v3025
        %v3037 = vunpack.c.l.b16 %v3029
        %v3038 = vpack.c.b16 %v3031, %v3030
        %v3039 = vpack.c.b16 %v3033, %v3032
        %v3040 = vpack.c.b16 %v3035, %v3034
        %v3041 = vpack.c.b16 %v3037, %v3036
        %3046 = vst [vmem:[#allocation4 + $0x40] sm:$0xff] %v3038
        %3047 = vst [vmem:[#allocation4 + $0x88] sm:$0xff] %v3039
        %3048 = vst [vmem:[#allocation4 + $0xd0] sm:$0xff] %v3040
        %3049 = vst [vmem:[#allocation4 + $0x118] sm:$0xff] %v3041
        %v3050 = vld [vmem:[#allocation4] sm:$0xff]
        %v3051 = vld [vmem:[#allocation4 + $0x8] sm:$0xff]
        %v3052 = vld [vmem:[#allocation4 + $0x10] sm:$0xff]
        %v3053 = vld [vmem:[#allocation4 + $0x18] sm:$0xff]
        %v3054 = vld [vmem:[#allocation4 + $0x20] sm:$0xff]
        %v3055 = vld [vmem:[#allocation4 + $0x28] sm:$0xff]
        %v3056 = vld [vmem:[#allocation4 + $0x30] sm:$0xff]
        %v3057 = vld [vmem:[#allocation4 + $0x38] sm:$0xff]
        %v3058 = vld [vmem:[#allocation4 + $0x40] sm:$0xff]
        %v3059 = vld [vmem:[#allocation4 + $0x48] sm:$0xff]
        %v3060 = vld [vmem:[#allocation4 + $0x50] sm:$0xff]
        %v3061 = vld [vmem:[#allocation4 + $0x58] sm:$0xff]
        %v3062 = vld [vmem:[#allocation4 + $0x60] sm:$0xff]
        %v3063 = vld [vmem:[#allocation4 + $0x68] sm:$0xff]
        %v3064 = vld [vmem:[#allocation4 + $0x70] sm:$0xff]
        %v3065 = vld [vmem:[#allocation4 + $0x78] sm:$0xff]
        %v3066 = vld [vmem:[#allocation4 + $0x80] sm:$0xff]
        %v3067 = vld [vmem:[#allocation4 + $0x88] sm:$0xff]
        %v3068 = vld [vmem:[#allocation4 + $0x90] sm:$0xff]
        %v3069 = vld [vmem:[#allocation4 + $0x98] sm:$0xff]
        %v3070 = vld [vmem:[#allocation4 + $0xa0] sm:$0xff]
        %v3071 = vld [vmem:[#allocation4 + $0xa8] sm:$0xff]
        %v3072 = vld [vmem:[#allocation4 + $0xb0] sm:$0xff]
        %v3073 = vld [vmem:[#allocation4 + $0xb8] sm:$0xff]
        %v3074 = vld [vmem:[#allocation4 + $0xc0] sm:$0xff]
        %v3075 = vld [vmem:[#allocation4 + $0xc8] sm:$0xff]
        %v3076 = vld [vmem:[#allocation4 + $0xd0] sm:$0xff]
        %v3077 = vld [vmem:[#allocation4 + $0xd8] sm:$0xff]
        %v3078 = vld [vmem:[#allocation4 + $0xe0] sm:$0xff]
        %v3079 = vld [vmem:[#allocation4 + $0xe8] sm:$0xff]
        %v3080 = vld [vmem:[#allocation4 + $0xf0] sm:$0xff]
        %v3081 = vld [vmem:[#allocation4 + $0xf8] sm:$0xff]
        %v3082 = vld [vmem:[#allocation4 + $0x100] sm:$0xff]
        %v3083 = vld [vmem:[#allocation4 + $0x108] sm:$0xff]
        %v3084 = vld [vmem:[#allocation4 + $0x110] sm:$0xff]
        %v3085 = vld [vmem:[#allocation4 + $0x118] sm:$0xff]
        %v3086 = vld [vmem:[#allocation5] sm:$0xf]
        %v3087 = vld [vmem:[#allocation5 + $0x4] sm:$0xf]
        %v3088 = vld [vmem:[#allocation5 + $0x8] sm:$0xf]
        %v3089 = vld [vmem:[#allocation5 + $0xc] sm:$0xf]
        %v3090 = vld [vmem:[#allocation5 + $0x10] sm:$0xf]
        %v3091 = vld [vmem:[#allocation5 + $0x14] sm:$0xf]
        %v3092 = vld [vmem:[#allocation5 + $0x18] sm:$0xf]
        %v3093 = vld [vmem:[#allocation5 + $0x1c] sm:$0xf]
        %v3094 = vld [vmem:[#allocation5 + $0x20] sm:$0xf]
        %v3095 = vld [vmem:[#allocation5 + $0x24] sm:$0xf]
        %v3096 = vld [vmem:[#allocation5 + $0x28] sm:$0xf]
        %v3097 = vld [vmem:[#allocation5 + $0x2c] sm:$0xf]
        %v3098 = vld [vmem:[#allocation5 + $0x30] sm:$0xf]
        %v3099 = vld [vmem:[#allocation5 + $0x34] sm:$0xf]
        %v3100 = vld [vmem:[#allocation5 + $0x38] sm:$0xf]
        %v3101 = vld [vmem:[#allocation5 + $0x3c] sm:$0xf]
        %v3102 = vld [vmem:[#allocation5 + $0x40] sm:$0xf]
        %v3103 = vld [vmem:[#allocation5 + $0x44] sm:$0xf]
        %v3104 = vld [vmem:[#allocation5 + $0x48] sm:$0xf]
        %v3105 = vld [vmem:[#allocation5 + $0x4c] sm:$0xf]
        %v3106 = vld [vmem:[#allocation5 + $0x50] sm:$0xf]
        %v3107 = vld [vmem:[#allocation5 + $0x54] sm:$0xf]
        %v3108 = vld [vmem:[#allocation5 + $0x58] sm:$0xf]
        %v3109 = vld [vmem:[#allocation5 + $0x5c] sm:$0xf]
        %v3110 = vld [vmem:[#allocation5 + $0x60] sm:$0xf]
        %v3111 = vld [vmem:[#allocation5 + $0x64] sm:$0xf]
        %v3112 = vld [vmem:[#allocation5 + $0x68] sm:$0xf]
        %v3113 = vld [vmem:[#allocation5 + $0x6c] sm:$0xf]
        %v3114 = vld [vmem:[#allocation5 + $0x70] sm:$0xf]
        %v3115 = vld [vmem:[#allocation5 + $0x74] sm:$0xf]
        %v3116 = vld [vmem:[#allocation5 + $0x78] sm:$0xf]
        %v3117 = vld [vmem:[#allocation5 + $0x7c] sm:$0xf]
        %v3118 = vld [vmem:[#allocation5 + $0x80] sm:$0xf]
        %v3119 = vld [vmem:[#allocation5 + $0x84] sm:$0xf]
        %v3120 = vld [vmem:[#allocation5 + $0x88] sm:$0xf]
        %v3121 = vld [vmem:[#allocation5 + $0x8c] sm:$0xf]
        %v3122 = vld [vmem:[#allocation5 + $0x90] sm:$0xf]
        %v3123 = vld [vmem:[#allocation5 + $0x94] sm:$0xf]
        %v3124 = vld [vmem:[#allocation5 + $0x98] sm:$0xf]
        %v3125 = vld [vmem:[#allocation5 + $0x9c] sm:$0xf]
        %v3126 = vld [vmem:[#allocation5 + $0xa0] sm:$0xf]
        %v3127 = vld [vmem:[#allocation5 + $0xa4] sm:$0xf]
        %v3128 = vld [vmem:[#allocation5 + $0xa8] sm:$0xf]
        %v3129 = vld [vmem:[#allocation5 + $0xac] sm:$0xf]
        %v3130 = vld [vmem:[#allocation5 + $0xb0] sm:$0xf]
        %v3131 = vld [vmem:[#allocation5 + $0xb4] sm:$0xf]
        %v3132 = vld [vmem:[#allocation5 + $0xb8] sm:$0xf]
        %v3133 = vld [vmem:[#allocation5 + $0xbc] sm:$0xf]
        %v3134 = vld [vmem:[#allocation5 + $0xc0] sm:$0xf]
        %v3135 = vld [vmem:[#allocation5 + $0xc4] sm:$0xf]
        %v3136 = vld [vmem:[#allocation5 + $0xc8] sm:$0xf]
        %v3137 = vld [vmem:[#allocation5 + $0xcc] sm:$0xf]
        %v3138 = vld [vmem:[#allocation5 + $0xd0] sm:$0xf]
        %v3139 = vld [vmem:[#allocation5 + $0xd4] sm:$0xf]
        %v3140 = vld [vmem:[#allocation5 + $0xd8] sm:$0xf]
        %v3141 = vld [vmem:[#allocation5 + $0xdc] sm:$0xf]
        %v3142 = vld [vmem:[#allocation5 + $0xe0] sm:$0xf]
        %v3143 = vld [vmem:[#allocation5 + $0xe4] sm:$0xf]
        %v3144 = vld [vmem:[#allocation5 + $0xe8] sm:$0xf]
        %v3145 = vld [vmem:[#allocation5 + $0xec] sm:$0xf]
        %v3146 = vld [vmem:[#allocation5 + $0xf0] sm:$0xf]
        %v3147 = vld [vmem:[#allocation5 + $0xf4] sm:$0xf]
        %v3148 = vld [vmem:[#allocation5 + $0xf8] sm:$0xf]
        %v3149 = vld [vmem:[#allocation5 + $0xfc] sm:$0xf]
        %v3150 = vld [vmem:[#allocation5 + $0x100] sm:$0xf]
        %v3151 = vld [vmem:[#allocation5 + $0x104] sm:$0xf]
        %v3152 = vld [vmem:[#allocation5 + $0x108] sm:$0xf]
        %v3153 = vld [vmem:[#allocation5 + $0x10c] sm:$0xf]
        %v3154 = vld [vmem:[#allocation5 + $0x110] sm:$0xf]
        %v3155 = vld [vmem:[#allocation5 + $0x114] sm:$0xf]
        %v3156 = vld [vmem:[#allocation5 + $0x118] sm:$0xf]
        %v3157 = vld [vmem:[#allocation5 + $0x11c] sm:$0xf]
        %v3158 = vld [vmem:[#allocation5 + $0x120] sm:$0xf]
        %v3159 = vld [vmem:[#allocation5 + $0x124] sm:$0xf]
        %v3160 = vld [vmem:[#allocation5 + $0x128] sm:$0xf]
        %v3161 = vld [vmem:[#allocation5 + $0x12c] sm:$0xf]
        %v3162 = vld [vmem:[#allocation5 + $0x130] sm:$0xf]
        %v3163 = vld [vmem:[#allocation5 + $0x134] sm:$0xf]
        %v3164 = vld [vmem:[#allocation5 + $0x138] sm:$0xf]
        %v3165 = vld [vmem:[#allocation5 + $0x13c] sm:$0xf]
        %v3166 = vld [vmem:[#allocation5 + $0x140] sm:$0xf]
        %v3167 = vld [vmem:[#allocation5 + $0x144] sm:$0xf]
        %v3168 = vld [vmem:[#allocation5 + $0x148] sm:$0xf]
        %v3169 = vld [vmem:[#allocation5 + $0x14c] sm:$0xf]
        %v3170 = vld [vmem:[#allocation5 + $0x150] sm:$0xf]
        %v3171 = vld [vmem:[#allocation5 + $0x154] sm:$0xf]
        %v3172 = vld [vmem:[#allocation5 + $0x158] sm:$0xf]
        %v3173 = vld [vmem:[#allocation5 + $0x15c] sm:$0xf]
        %v3174 = vld [vmem:[#allocation5 + $0x160] sm:$0xf]
        %v3175 = vld [vmem:[#allocation5 + $0x164] sm:$0xf]
        %v3176 = vld [vmem:[#allocation5 + $0x168] sm:$0xf]
        %v3177 = vld [vmem:[#allocation5 + $0x16c] sm:$0xf]
        %v3178 = vld [vmem:[#allocation5 + $0x170] sm:$0xf]
        %v3179 = vld [vmem:[#allocation5 + $0x174] sm:$0xf]
        %v3180 = vld [vmem:[#allocation5 + $0x178] sm:$0xf]
        %v3181 = vld [vmem:[#allocation5 + $0x17c] sm:$0xf]
        %v3182 = vld [vmem:[#allocation5 + $0x180] sm:$0xf]
        %v3183 = vld [vmem:[#allocation5 + $0x184] sm:$0xf]
        %v3184 = vld [vmem:[#allocation5 + $0x188] sm:$0xf]
        %v3185 = vld [vmem:[#allocation5 + $0x18c] sm:$0xf]
        %v3186 = vld [vmem:[#allocation5 + $0x190] sm:$0xf]
        %v3187 = vld [vmem:[#allocation5 + $0x194] sm:$0xf]
        %v3188 = vld [vmem:[#allocation5 + $0x198] sm:$0xf]
        %v3189 = vld [vmem:[#allocation5 + $0x19c] sm:$0xf]
        %v3190 = vld [vmem:[#allocation5 + $0x1a0] sm:$0xf]
        %v3191 = vld [vmem:[#allocation5 + $0x1a4] sm:$0xf]
        %v3192 = vld [vmem:[#allocation5 + $0x1a8] sm:$0xf]
        %v3193 = vld [vmem:[#allocation5 + $0x1ac] sm:$0xf]
        %v3194 = vld [vmem:[#allocation5 + $0x1b0] sm:$0xf]
        %v3195 = vld [vmem:[#allocation5 + $0x1b4] sm:$0xf]
        %v3196 = vld [vmem:[#allocation5 + $0x1b8] sm:$0xf]
        %v3197 = vld [vmem:[#allocation5 + $0x1bc] sm:$0xf]
        %v3198 = vld [vmem:[#allocation5 + $0x1c0] sm:$0xf]
        %v3199 = vld [vmem:[#allocation5 + $0x1c4] sm:$0xf]
        %v3200 = vld [vmem:[#allocation5 + $0x1c8] sm:$0xf]
        %v3201 = vld [vmem:[#allocation5 + $0x1cc] sm:$0xf]
        %v3202 = vld [vmem:[#allocation5 + $0x1d0] sm:$0xf]
        %v3203 = vld [vmem:[#allocation5 + $0x1d4] sm:$0xf]
        %v3204 = vld [vmem:[#allocation5 + $0x1d8] sm:$0xf]
        %v3205 = vld [vmem:[#allocation5 + $0x1dc] sm:$0xf]
        %v3206 = vld [vmem:[#allocation5 + $0x1e0] sm:$0xf]
        %v3207 = vld [vmem:[#allocation5 + $0x1e4] sm:$0xf]
        %v3208 = vld [vmem:[#allocation5 + $0x1e8] sm:$0xf]
        %v3209 = vld [vmem:[#allocation5 + $0x1ec] sm:$0xf]
        %v3210 = vld [vmem:[#allocation5 + $0x1f0] sm:$0xf]
        %v3211 = vld [vmem:[#allocation5 + $0x1f4] sm:$0xf]
        %v3212 = vld [vmem:[#allocation5 + $0x1f8] sm:$0xf]
        %v3213 = vld [vmem:[#allocation5 + $0x1fc] sm:$0xf]
        %v3214 = vld [vmem:[#allocation5 + $0x200] sm:$0xf]
        %v3215 = vld [vmem:[#allocation5 + $0x204] sm:$0xf]
        %v3216 = vld [vmem:[#allocation5 + $0x208] sm:$0xf]
        %v3217 = vld [vmem:[#allocation5 + $0x20c] sm:$0xf]
        %v3218 = vld [vmem:[#allocation5 + $0x210] sm:$0xf]
        %v3219 = vld [vmem:[#allocation5 + $0x214] sm:$0xf]
        %v3220 = vld [vmem:[#allocation5 + $0x218] sm:$0xf]
        %v3221 = vld [vmem:[#allocation5 + $0x21c] sm:$0xf]
        %v3222 = vld [vmem:[#allocation5 + $0x220] sm:$0xf]
        %v3223 = vld [vmem:[#allocation5 + $0x224] sm:$0xf]
        %v3224 = vld [vmem:[#allocation5 + $0x228] sm:$0xf]
        %v3225 = vld [vmem:[#allocation5 + $0x22c] sm:$0xf]
        %v3226 = vld [vmem:[#allocation5 + $0x230] sm:$0xf]
        %v3227 = vld [vmem:[#allocation5 + $0x234] sm:$0xf]
        %v3228 = vld [vmem:[#allocation5 + $0x238] sm:$0xf]
        %v3229 = vld [vmem:[#allocation5 + $0x23c] sm:$0xf]
        %v3230 = vld [vmem:[%s4] sm:$0x1]
        %v3232 = vlaneseq
        %v3233 = vshrl.u32 %v3232, 7
        %v3234 = vsub.s32 0, %v3233
        %v3235 = vrot.slane %v3230, %v3234
        %v3381 = vunpack.c.l.b16 %v3086
        %v3382 = vunpack.c.l.b16 %v3087
        %v3383 = vunpack.c.l.b16 %v3088
        %v3384 = vunpack.c.l.b16 %v3089
        %v3385 = vunpack.c.l.b16 %v3090
        %v3386 = vunpack.c.l.b16 %v3091
        %v3387 = vunpack.c.l.b16 %v3092
        %v3388 = vunpack.c.l.b16 %v3093
        %v3389 = vunpack.c.l.b16 %v3094
        %v3390 = vunpack.c.l.b16 %v3095
        %v3391 = vunpack.c.l.b16 %v3096
        %v3392 = vunpack.c.l.b16 %v3097
        %v3393 = vunpack.c.l.b16 %v3098
        %v3394 = vunpack.c.l.b16 %v3099
        %v3395 = vunpack.c.l.b16 %v3100
        %v3396 = vunpack.c.l.b16 %v3101
        %v3397 = vunpack.c.l.b16 %v3102
        %v3398 = vunpack.c.l.b16 %v3103
        %v3399 = vunpack.c.l.b16 %v3104
        %v3400 = vunpack.c.l.b16 %v3105
        %v3401 = vunpack.c.l.b16 %v3106
        %v3402 = vunpack.c.l.b16 %v3107
        %v3403 = vunpack.c.l.b16 %v3108
        %v3404 = vunpack.c.l.b16 %v3109
        %v3405 = vunpack.c.l.b16 %v3110
        %v3406 = vunpack.c.l.b16 %v3111
        %v3407 = vunpack.c.l.b16 %v3112
        %v3408 = vunpack.c.l.b16 %v3113
        %v3409 = vunpack.c.l.b16 %v3114
        %v3410 = vunpack.c.l.b16 %v3115
        %v3411 = vunpack.c.l.b16 %v3116
        %v3412 = vunpack.c.l.b16 %v3117
        %v3413 = vunpack.c.l.b16 %v3118
        %v3414 = vunpack.c.l.b16 %v3119
        %v3415 = vunpack.c.l.b16 %v3120
        %v3416 = vunpack.c.l.b16 %v3121
        %v3417 = vunpack.c.l.b16 %v3122
        %v3418 = vunpack.c.l.b16 %v3123
        %v3419 = vunpack.c.l.b16 %v3124
        %v3420 = vunpack.c.l.b16 %v3125
        %v3421 = vunpack.c.l.b16 %v3126
        %v3422 = vunpack.c.l.b16 %v3127
        %v3423 = vunpack.c.l.b16 %v3128
        %v3424 = vunpack.c.l.b16 %v3129
        %v3425 = vunpack.c.l.b16 %v3130
        %v3426 = vunpack.c.l.b16 %v3131
        %v3427 = vunpack.c.l.b16 %v3132
        %v3428 = vunpack.c.l.b16 %v3133
        %v3429 = vunpack.c.l.b16 %v3134
        %v3430 = vunpack.c.l.b16 %v3135
        %v3431 = vunpack.c.l.b16 %v3136
        %v3432 = vunpack.c.l.b16 %v3137
        %v3433 = vunpack.c.l.b16 %v3138
        %v3434 = vunpack.c.l.b16 %v3139
        %v3435 = vunpack.c.l.b16 %v3140
        %v3436 = vunpack.c.l.b16 %v3141
        %v3437 = vunpack.c.l.b16 %v3142
        %v3438 = vunpack.c.l.b16 %v3143
        %v3439 = vunpack.c.l.b16 %v3144
        %v3440 = vunpack.c.l.b16 %v3145
        %v3441 = vunpack.c.l.b16 %v3146
        %v3442 = vunpack.c.l.b16 %v3147
        %v3443 = vunpack.c.l.b16 %v3148
        %v3444 = vunpack.c.l.b16 %v3149
        %v3445 = vunpack.c.l.b16 %v3150
        %v3446 = vunpack.c.l.b16 %v3151
        %v3447 = vunpack.c.l.b16 %v3152
        %v3448 = vunpack.c.l.b16 %v3153
        %v3449 = vunpack.c.l.b16 %v3154
        %v3450 = vunpack.c.l.b16 %v3155
        %v3451 = vunpack.c.l.b16 %v3156
        %v3452 = vunpack.c.l.b16 %v3157
        %v3453 = vunpack.c.l.b16 %v3158
        %v3454 = vunpack.c.l.b16 %v3159
        %v3455 = vunpack.c.l.b16 %v3160
        %v3456 = vunpack.c.l.b16 %v3161
        %v3457 = vunpack.c.l.b16 %v3162
        %v3458 = vunpack.c.l.b16 %v3163
        %v3459 = vunpack.c.l.b16 %v3164
        %v3460 = vunpack.c.l.b16 %v3165
        %v3461 = vunpack.c.l.b16 %v3166
        %v3462 = vunpack.c.l.b16 %v3167
        %v3463 = vunpack.c.l.b16 %v3168
        %v3464 = vunpack.c.l.b16 %v3169
        %v3465 = vunpack.c.l.b16 %v3170
        %v3466 = vunpack.c.l.b16 %v3171
        %v3467 = vunpack.c.l.b16 %v3172
        %v3468 = vunpack.c.l.b16 %v3173
        %v3469 = vunpack.c.l.b16 %v3174
        %v3470 = vunpack.c.l.b16 %v3175
        %v3471 = vunpack.c.l.b16 %v3176
        %v3472 = vunpack.c.l.b16 %v3177
        %v3473 = vunpack.c.l.b16 %v3178
        %v3474 = vunpack.c.l.b16 %v3179
        %v3475 = vunpack.c.l.b16 %v3180
        %v3476 = vunpack.c.l.b16 %v3181
        %v3477 = vunpack.c.l.b16 %v3182
        %v3478 = vunpack.c.l.b16 %v3183
        %v3479 = vunpack.c.l.b16 %v3184
        %v3480 = vunpack.c.l.b16 %v3185
        %v3481 = vunpack.c.l.b16 %v3186
        %v3482 = vunpack.c.l.b16 %v3187
        %v3483 = vunpack.c.l.b16 %v3188
        %v3484 = vunpack.c.l.b16 %v3189
        %v3485 = vunpack.c.l.b16 %v3190
        %v3486 = vunpack.c.l.b16 %v3191
        %v3487 = vunpack.c.l.b16 %v3192
        %v3488 = vunpack.c.l.b16 %v3193
        %v3489 = vunpack.c.l.b16 %v3194
        %v3490 = vunpack.c.l.b16 %v3195
        %v3491 = vunpack.c.l.b16 %v3196
        %v3492 = vunpack.c.l.b16 %v3197
        %v3493 = vunpack.c.l.b16 %v3198
        %v3494 = vunpack.c.l.b16 %v3199
        %v3495 = vunpack.c.l.b16 %v3200
        %v3496 = vunpack.c.l.b16 %v3201
        %v3497 = vunpack.c.l.b16 %v3202
        %v3498 = vunpack.c.l.b16 %v3203
        %v3499 = vunpack.c.l.b16 %v3204
        %v3500 = vunpack.c.l.b16 %v3205
        %v3501 = vunpack.c.l.b16 %v3206
        %v3502 = vunpack.c.l.b16 %v3207
        %v3503 = vunpack.c.l.b16 %v3208
        %v3504 = vunpack.c.l.b16 %v3209
        %v3505 = vunpack.c.l.b16 %v3210
        %v3506 = vunpack.c.l.b16 %v3211
        %v3507 = vunpack.c.l.b16 %v3212
        %v3508 = vunpack.c.l.b16 %v3213
        %v3509 = vunpack.c.l.b16 %v3214
        %v3510 = vunpack.c.l.b16 %v3215
        %v3511 = vunpack.c.l.b16 %v3216
        %v3512 = vunpack.c.l.b16 %v3217
        %v3513 = vunpack.c.l.b16 %v3218
        %v3514 = vunpack.c.l.b16 %v3219
        %v3515 = vunpack.c.l.b16 %v3220
        %v3516 = vunpack.c.l.b16 %v3221
        %v3517 = vunpack.c.l.b16 %v3222
        %v3518 = vunpack.c.l.b16 %v3223
        %v3519 = vunpack.c.l.b16 %v3224
        %v3520 = vunpack.c.l.b16 %v3225
        %v3521 = vunpack.c.l.b16 %v3226
        %v3522 = vunpack.c.l.b16 %v3227
        %v3523 = vunpack.c.l.b16 %v3228
        %v3524 = vunpack.c.l.b16 %v3229
        %v3525 = vpack.c.b16 %v3382, %v3381
        %v3526 = vpack.c.b16 %v3384, %v3383
        %v3527 = vpack.c.b16 %v3386, %v3385
        %v3528 = vpack.c.b16 %v3388, %v3387
        %v3529 = vpack.c.b16 %v3390, %v3389
        %v3530 = vpack.c.b16 %v3392, %v3391
        %v3531 = vpack.c.b16 %v3394, %v3393
        %v3532 = vpack.c.b16 %v3396, %v3395
        %v3533 = vpack.c.b16 %v3398, %v3397
        %v3534 = vpack.c.b16 %v3400, %v3399
        %v3535 = vpack.c.b16 %v3402, %v3401
        %v3536 = vpack.c.b16 %v3404, %v3403
        %v3537 = vpack.c.b16 %v3406, %v3405
        %v3538 = vpack.c.b16 %v3408, %v3407
        %v3539 = vpack.c.b16 %v3410, %v3409
        %v3540 = vpack.c.b16 %v3412, %v3411
        %v3541 = vpack.c.b16 %v3414, %v3413
        %v3542 = vpack.c.b16 %v3416, %v3415
        %v3543 = vpack.c.b16 %v3418, %v3417
        %v3544 = vpack.c.b16 %v3420, %v3419
        %v3545 = vpack.c.b16 %v3422, %v3421
        %v3546 = vpack.c.b16 %v3424, %v3423
        %v3547 = vpack.c.b16 %v3426, %v3425
        %v3548 = vpack.c.b16 %v3428, %v3427
        %v3549 = vpack.c.b16 %v3430, %v3429
        %v3550 = vpack.c.b16 %v3432, %v3431
        %v3551 = vpack.c.b16 %v3434, %v3433
        %v3552 = vpack.c.b16 %v3436, %v3435
        %v3553 = vpack.c.b16 %v3438, %v3437
        %v3554 = vpack.c.b16 %v3440, %v3439
        %v3555 = vpack.c.b16 %v3442, %v3441
        %v3556 = vpack.c.b16 %v3444, %v3443
        %v3557 = vpack.c.b16 %v3446, %v3445
        %v3558 = vpack.c.b16 %v3448, %v3447
        %v3559 = vpack.c.b16 %v3450, %v3449
        %v3560 = vpack.c.b16 %v3452, %v3451
        %v3561 = vpack.c.b16 %v3454, %v3453
        %v3562 = vpack.c.b16 %v3456, %v3455
        %v3563 = vpack.c.b16 %v3458, %v3457
        %v3564 = vpack.c.b16 %v3460, %v3459
        %v3565 = vpack.c.b16 %v3462, %v3461
        %v3566 = vpack.c.b16 %v3464, %v3463
        %v3567 = vpack.c.b16 %v3466, %v3465
        %v3568 = vpack.c.b16 %v3468, %v3467
        %v3569 = vpack.c.b16 %v3470, %v3469
        %v3570 = vpack.c.b16 %v3472, %v3471
        %v3571 = vpack.c.b16 %v3474, %v3473
        %v3572 = vpack.c.b16 %v3476, %v3475
        %v3573 = vpack.c.b16 %v3478, %v3477
        %v3574 = vpack.c.b16 %v3480, %v3479
        %v3575 = vpack.c.b16 %v3482, %v3481
        %v3576 = vpack.c.b16 %v3484, %v3483
        %v3577 = vpack.c.b16 %v3486, %v3485
        %v3578 = vpack.c.b16 %v3488, %v3487
        %v3579 = vpack.c.b16 %v3490, %v3489
        %v3580 = vpack.c.b16 %v3492, %v3491
        %v3581 = vpack.c.b16 %v3494, %v3493
        %v3582 = vpack.c.b16 %v3496, %v3495
        %v3583 = vpack.c.b16 %v3498, %v3497
        %v3584 = vpack.c.b16 %v3500, %v3499
        %v3585 = vpack.c.b16 %v3502, %v3501
        %v3586 = vpack.c.b16 %v3504, %v3503
        %v3587 = vpack.c.b16 %v3506, %v3505
        %v3588 = vpack.c.b16 %v3508, %v3507
        %v3589 = vpack.c.b16 %v3510, %v3509
        %v3590 = vpack.c.b16 %v3512, %v3511
        %v3591 = vpack.c.b16 %v3514, %v3513
        %v3592 = vpack.c.b16 %v3516, %v3515
        %v3593 = vpack.c.b16 %v3518, %v3517
        %v3594 = vpack.c.b16 %v3520, %v3519
        %v3595 = vpack.c.b16 %v3522, %v3521
        %v3596 = vpack.c.b16 %v3524, %v3523
        %3669 = vmatprep.subr.bf16.mxu0 0
        %3670 = vmatpush1.bf16.msra.mxu0 %v3525
        %3671 = vmatprep.subr.bf16.mxu0 0
        %3672 = vmatpush1.bf16.msra.mxu0 %v3526
        %3673 = vmatprep.subr.bf16.mxu0 0
        %3674 = vmatpush1.bf16.msra.mxu0 %v3527
        %3675 = vmatprep.subr.bf16.mxu0 0
        %3676 = vmatpush1.bf16.msra.mxu0 %v3528
        %3677 = vmatprep.subr.bf16.mxu0 0
        %3678 = vmatpush1.bf16.msra.mxu0 %v3529
        %3679 = vmatprep.subr.bf16.mxu0 0
        %3680 = vmatpush1.bf16.msra.mxu0 %v3530
        %3681 = vmatprep.subr.bf16.mxu0 0
        %3682 = vmatpush1.bf16.msra.mxu0 %v3531
        %3683 = vmatprep.subr.bf16.mxu0 0
        %3684 = vmatpush1.bf16.msra.mxu0 %v3532
        %3685 = vmatprep.subr.bf16.mxu0 0
        %3686 = vmatpush1.bf16.msra.mxu0 %v3533
        %3687 = vmatprep.subr.bf16.mxu0 0
        %3688 = vmatpush1.bf16.msra.mxu0 %v3534
        %3689 = vmatprep.subr.bf16.mxu0 0
        %3690 = vmatpush1.bf16.msra.mxu0 %v3535
        %3691 = vmatprep.subr.bf16.mxu0 0
        %3692 = vmatpush1.bf16.msra.mxu0 %v3536
        %3693 = vmatprep.subr.bf16.mxu0 0
        %3694 = vmatpush1.bf16.msra.mxu0 %v3537
        %3695 = vmatprep.subr.bf16.mxu0 0
        %3696 = vmatpush1.bf16.msra.mxu0 %v3538
        %3697 = vmatprep.subr.bf16.mxu0 0
        %3698 = vmatpush1.bf16.msra.mxu0 %v3539
        %3699 = vmatprep.subr.bf16.mxu0 0
        %3700 = vmatpush1.bf16.msra.mxu0 %v3540
        %3701 = vmatprep.mubr.bf16.mxu0 %v3051
        %3702 = vmatmul.mubr.bf16.gmra.mrb[0].mxu0 %v3050
        %v3703 = vpop.f32.mrb[0].mxu0
        %v3704 = vadd.f32 %v3235, %v3703
        %v3705 = vpop.f32.mrb[0].mxu0
        %v3706 = vpop.f32.mrb[0].mxu0
        %v3707 = vadd.f32 %v3235, %v3706
        %v3708 = vpop.f32.mrb[0].mxu0
        %3709 = vmatprep.mubr.bf16.mxu0 %v3060
        %3710 = vmatmul.mubr.bf16.gmra.mrb[0].mxu0 %v3059
        %v3711 = vpop.f32.mrb[0].mxu0
        %v3712 = vadd.f32 %v3235, %v3711
        %v3713 = vpop.f32.mrb[0].mxu0
        %v3714 = vpop.f32.mrb[0].mxu0
        %v3715 = vadd.f32 %v3235, %v3714
        %v3716 = vpop.f32.mrb[0].mxu0
        %3717 = vmatprep.mubr.bf16.mxu0 %v3069
        %3718 = vmatmul.mubr.bf16.gmra.mrb[0].mxu0 %v3068
        %v3719 = vpop.f32.mrb[0].mxu0
        %v3720 = vadd.f32 %v3235, %v3719
        %v3721 = vpop.f32.mrb[0].mxu0
        %v3722 = vpop.f32.mrb[0].mxu0
        %v3723 = vadd.f32 %v3235, %v3722
        %v3724 = vpop.f32.mrb[0].mxu0
        %3725 = vmatprep.mubr.bf16.mxu0 %v3078
        %3726 = vmatmul.mubr.bf16.gmra.mrb[0].mxu0 %v3077
        %v3727 = vpop.f32.mrb[0].mxu0
        %v3728 = vadd.f32 %v3235, %v3727
        %v3729 = vpop.f32.mrb[0].mxu0
        %v3730 = vpop.f32.mrb[0].mxu0
        %v3731 = vadd.f32 %v3235, %v3730
        %v3732 = vpop.f32.mrb[0].mxu0
        %3733 = vdwg.mxu0
        %3734 = vmatprep.subr.bf16.mxu0 0
        %3735 = vmatpush1.bf16.msra.mxu0 %v3541
        %3736 = vmatprep.subr.bf16.mxu0 0
        %3737 = vmatpush1.bf16.msra.mxu0 %v3542
        %3738 = vmatprep.subr.bf16.mxu0 0
        %3739 = vmatpush1.bf16.msra.mxu0 %v3543
        %3740 = vmatprep.subr.bf16.mxu0 0
        %3741 = vmatpush1.bf16.msra.mxu0 %v3544
        %3742 = vmatprep.subr.bf16.mxu0 0
        %3743 = vmatpush1.bf16.msra.mxu0 %v3545
        %3744 = vmatprep.subr.bf16.mxu0 0
        %3745 = vmatpush1.bf16.msra.mxu0 %v3546
        %3746 = vmatprep.subr.bf16.mxu0 0
        %3747 = vmatpush1.bf16.msra.mxu0 %v3547
        %3748 = vmatprep.subr.bf16.mxu0 0
        %3749 = vmatpush1.bf16.msra.mxu0 %v3548
        %3750 = vmatprep.subr.bf16.mxu0 0
        %3751 = vmatpush1.bf16.msra.mxu0 %v3549
        %3752 = vmatprep.subr.bf16.mxu0 0
        %3753 = vmatpush1.bf16.msra.mxu0 %v3550
        %3754 = vmatprep.subr.bf16.mxu0 0
        %3755 = vmatpush1.bf16.msra.mxu0 %v3551
        %3756 = vmatprep.subr.bf16.mxu0 0
        %3757 = vmatpush1.bf16.msra.mxu0 %v3552
        %3758 = vmatprep.subr.bf16.mxu0 0
        %3759 = vmatpush1.bf16.msra.mxu0 %v3553
        %3760 = vmatprep.subr.bf16.mxu0 0
        %3761 = vmatpush1.bf16.msra.mxu0 %v3554
        %3762 = vmatprep.subr.bf16.mxu0 0
        %3763 = vmatpush1.bf16.msra.mxu0 %v3555
        %3764 = vmatprep.subr.bf16.mxu0 0
        %3765 = vmatpush1.bf16.msra.mxu0 %v3556
        %3766 = vmatprep.mubr.bf16.mxu0 %v3053
        %3767 = vmatmul.mubr.bf16.gmra.mrb[0].mxu0 %v3052
        %v3768 = vpop.f32.mrb[0].mxu0
        %v3769 = vadd.f32 %v3704, %v3768
        %v3770 = vpop.f32.mrb[0].mxu0
        %v3771 = vpop.f32.mrb[0].mxu0
        %v3772 = vadd.f32 %v3707, %v3771
        %v3773 = vpop.f32.mrb[0].mxu0
        %3774 = vmatprep.mubr.bf16.mxu0 %v3062
        %3775 = vmatmul.mubr.bf16.gmra.mrb[0].mxu0 %v3061
        %v3776 = vpop.f32.mrb[0].mxu0
        %v3777 = vadd.f32 %v3712, %v3776
        %v3778 = vpop.f32.mrb[0].mxu0
        %v3779 = vpop.f32.mrb[0].mxu0
        %v3780 = vadd.f32 %v3715, %v3779
        %v3781 = vpop.f32.mrb[0].mxu0
        %3782 = vmatprep.mubr.bf16.mxu0 %v3071
        %3783 = vmatmul.mubr.bf16.gmra.mrb[0].mxu0 %v3070
        %v3784 = vpop.f32.mrb[0].mxu0
        %v3785 = vadd.f32 %v3720, %v3784
        %v3786 = vpop.f32.mrb[0].mxu0
        %v3787 = vpop.f32.mrb[0].mxu0
        %v3788 = vadd.f32 %v3723, %v3787
        %v3789 = vpop.f32.mrb[0].mxu0
        %3790 = vmatprep.mubr.bf16.mxu0 %v3080
        %3791 = vmatmul.mubr.bf16.gmra.mrb[0].mxu0 %v3079
        %v3792 = vpop.f32.mrb[0].mxu0
        %v3793 = vadd.f32 %v3728, %v3792
        %v3794 = vpop.f32.mrb[0].mxu0
        %v3795 = vpop.f32.mrb[0].mxu0
        %v3796 = vadd.f32 %v3731, %v3795
        %v3797 = vpop.f32.mrb[0].mxu0
        %3798 = vdwg.mxu0
        %3799 = vmatprep.subr.bf16.mxu0 0
        %3800 = vmatpush1.bf16.msra.mxu0 %v3557
        %3801 = vmatprep.subr.bf16.mxu0 0
        %3802 = vmatpush1.bf16.msra.mxu0 %v3558
        %3803 = vmatprep.subr.bf16.mxu0 0
        %3804 = vmatpush1.bf16.msra.mxu0 %v3559
        %3805 = vmatprep.subr.bf16.mxu0 0
        %3806 = vmatpush1.bf16.msra.mxu0 %v3560
        %3807 = vmatprep.subr.bf16.mxu0 0
        %3808 = vmatpush1.bf16.msra.mxu0 %v3561
        %3809 = vmatprep.subr.bf16.mxu0 0
        %3810 = vmatpush1.bf16.msra.mxu0 %v3562
        %3811 = vmatprep.subr.bf16.mxu0 0
        %3812 = vmatpush1.bf16.msra.mxu0 %v3563
        %3813 = vmatprep.subr.bf16.mxu0 0
        %3814 = vmatpush1.bf16.msra.mxu0 %v3564
        %3815 = vmatprep.subr.bf16.mxu0 0
        %3816 = vmatpush1.bf16.msra.mxu0 %v3565
        %3817 = vmatprep.subr.bf16.mxu0 0
        %3818 = vmatpush1.bf16.msra.mxu0 %v3566
        %3819 = vmatprep.subr.bf16.mxu0 0
        %3820 = vmatpush1.bf16.msra.mxu0 %v3567
        %3821 = vmatprep.subr.bf16.mxu0 0
        %3822 = vmatpush1.bf16.msra.mxu0 %v3568
        %3823 = vmatprep.subr.bf16.mxu0 0
        %3824 = vmatpush1.bf16.msra.mxu0 %v3569
        %3825 = vmatprep.subr.bf16.mxu0 0
        %3826 = vmatpush1.bf16.msra.mxu0 %v3570
        %3827 = vmatprep.subr.bf16.mxu0 0
        %3828 = vmatpush1.bf16.msra.mxu0 %v3571
        %3829 = vmatprep.subr.bf16.mxu0 0
        %3830 = vmatpush1.bf16.msra.mxu0 %v3572
        %3831 = vmatprep.mubr.bf16.mxu0 %v3055
        %3832 = vmatmul.mubr.bf16.gmra.mrb[0].mxu0 %v3054
        %v3833 = vpop.f32.mrb[0].mxu0
        %v3834 = vadd.f32 %v3769, %v3833
        %v3835 = vpop.f32.mrb[0].mxu0
        %v3836 = vpop.f32.mrb[0].mxu0
        %v3837 = vadd.f32 %v3772, %v3836
        %v3838 = vpop.f32.mrb[0].mxu0
        %3839 = vmatprep.mubr.bf16.mxu0 %v3064
        %3840 = vmatmul.mubr.bf16.gmra.mrb[0].mxu0 %v3063
        %v3841 = vpop.f32.mrb[0].mxu0
        %v3842 = vadd.f32 %v3777, %v3841
        %v3843 = vpop.f32.mrb[0].mxu0
        %v3844 = vpop.f32.mrb[0].mxu0
        %v3845 = vadd.f32 %v3780, %v3844
        %v3846 = vpop.f32.mrb[0].mxu0
        %3847 = vmatprep.mubr.bf16.mxu0 %v3073
        %3848 = vmatmul.mubr.bf16.gmra.mrb[0].mxu0 %v3072
        %v3849 = vpop.f32.mrb[0].mxu0
        %v3850 = vadd.f32 %v3785, %v3849
        %v3851 = vpop.f32.mrb[0].mxu0
        %v3852 = vpop.f32.mrb[0].mxu0
        %v3853 = vadd.f32 %v3788, %v3852
        %v3854 = vpop.f32.mrb[0].mxu0
        %3855 = vmatprep.mubr.bf16.mxu0 %v3082
        %3856 = vmatmul.mubr.bf16.gmra.mrb[0].mxu0 %v3081
        %v3857 = vpop.f32.mrb[0].mxu0
        %v3858 = vadd.f32 %v3793, %v3857
        %v3859 = vpop.f32.mrb[0].mxu0
        %v3860 = vpop.f32.mrb[0].mxu0
        %v3861 = vadd.f32 %v3796, %v3860
        %v3862 = vpop.f32.mrb[0].mxu0
        %3863 = vdwg.mxu0
        %3864 = vmatprep.subr.bf16.mxu0 0
        %3865 = vmatpush1.bf16.msra.mxu0 %v3573
        %3866 = vmatprep.subr.bf16.mxu0 0
        %3867 = vmatpush1.bf16.msra.mxu0 %v3574
        %3868 = vmatprep.subr.bf16.mxu0 0
        %3869 = vmatpush1.bf16.msra.mxu0 %v3575
        %3870 = vmatprep.subr.bf16.mxu0 0
        %3871 = vmatpush1.bf16.msra.mxu0 %v3576
        %3872 = vmatprep.subr.bf16.mxu0 0
        %3873 = vmatpush1.bf16.msra.mxu0 %v3577
        %3874 = vmatprep.subr.bf16.mxu0 0
        %3875 = vmatpush1.bf16.msra.mxu0 %v3578
        %3876 = vmatprep.subr.bf16.mxu0 0
        %3877 = vmatpush1.bf16.msra.mxu0 %v3579
        %3878 = vmatprep.subr.bf16.mxu0 0
        %3879 = vmatpush1.bf16.msra.mxu0 %v3580
        %3880 = vmatprep.subr.bf16.mxu0 0
        %3881 = vmatpush1.bf16.msra.mxu0 %v3581
        %3882 = vmatprep.subr.bf16.mxu0 0
        %3883 = vmatpush1.bf16.msra.mxu0 %v3582
        %3884 = vmatprep.subr.bf16.mxu0 0
        %3885 = vmatpush1.bf16.msra.mxu0 %v3583
        %3886 = vmatprep.subr.bf16.mxu0 0
        %3887 = vmatpush1.bf16.msra.mxu0 %v3584
        %3888 = vmatprep.subr.bf16.mxu0 0
        %3889 = vmatpush1.bf16.msra.mxu0 %v3585
        %3890 = vmatprep.subr.bf16.mxu0 0
        %3891 = vmatpush1.bf16.msra.mxu0 %v3586
        %3892 = vmatprep.subr.bf16.mxu0 0
        %3893 = vmatpush1.bf16.msra.mxu0 %v3587
        %3894 = vmatprep.subr.bf16.mxu0 0
        %3895 = vmatpush1.bf16.msra.mxu0 %v3588
        %3896 = vmatprep.mubr.bf16.mxu0 %v3057
        %3897 = vmatmul.mubr.bf16.gmra.mrb[0].mxu0 %v3056
        %v3898 = vpop.f32.mrb[0].mxu0
        %v3899 = vadd.f32 %v3834, %v3898
        %v3900 = vpop.f32.mrb[0].mxu0
        %v3901 = vpop.f32.mrb[0].mxu0
        %v3902 = vadd.f32 %v3837, %v3901
        %v3903 = vpop.f32.mrb[0].mxu0
        %3904 = vmatprep.mubr.bf16.mxu0 %v3066
        %3905 = vmatmul.mubr.bf16.gmra.mrb[0].mxu0 %v3065
        %v3906 = vpop.f32.mrb[0].mxu0
        %v3907 = vadd.f32 %v3842, %v3906
        %v3908 = vpop.f32.mrb[0].mxu0
        %v3909 = vpop.f32.mrb[0].mxu0
        %v3910 = vadd.f32 %v3845, %v3909
        %v3911 = vpop.f32.mrb[0].mxu0
        %3912 = vmatprep.mubr.bf16.mxu0 %v3075
        %3913 = vmatmul.mubr.bf16.gmra.mrb[0].mxu0 %v3074
        %v3914 = vpop.f32.mrb[0].mxu0
        %v3915 = vadd.f32 %v3850, %v3914
        %v3916 = vpop.f32.mrb[0].mxu0
        %v3917 = vpop.f32.mrb[0].mxu0
        %v3918 = vadd.f32 %v3853, %v3917
        %v3919 = vpop.f32.mrb[0].mxu0
        %3920 = vmatprep.mubr.bf16.mxu0 %v3084
        %3921 = vmatmul.mubr.bf16.gmra.mrb[0].mxu0 %v3083
        %v3922 = vpop.f32.mrb[0].mxu0
        %v3923 = vadd.f32 %v3858, %v3922
        %v3924 = vpop.f32.mrb[0].mxu0
        %v3925 = vpop.f32.mrb[0].mxu0
        %v3926 = vadd.f32 %v3861, %v3925
        %v3927 = vpop.f32.mrb[0].mxu0
        %3928 = vdwg.mxu0
        %3929 = vmatprep.subr.bf16.mxu0 0
        %3930 = vmatpush1.bf16.msra.mxu0 %v3589
        %3931 = vmatprep.subr.bf16.mxu0 0
        %3932 = vmatpush1.bf16.msra.mxu0 %v3590
        %3933 = vmatprep.subr.bf16.mxu0 0
        %3934 = vmatpush1.bf16.msra.mxu0 %v3591
        %3935 = vmatprep.subr.bf16.mxu0 0
        %3936 = vmatpush1.bf16.msra.mxu0 %v3592
        %3937 = vmatprep.subr.bf16.mxu0 0
        %3938 = vmatpush1.bf16.msra.mxu0 %v3593
        %3939 = vmatprep.subr.bf16.mxu0 0
        %3940 = vmatpush1.bf16.msra.mxu0 %v3594
        %3941 = vmatprep.subr.bf16.mxu0 0
        %3942 = vmatpush1.bf16.msra.mxu0 %v3595
        %3943 = vmatprep.subr.bf16.mxu0 0
        %3944 = vmatpush1.bf16.msra.mxu0 %v3596
        %3945 = vmatprep.subr.bf16.mxu0 0
        %3946 = vmatpush1.bf16.msra.mxu0 0
        %3947 = vmatprep.subr.bf16.mxu0 0
        %3948 = vmatpush1.bf16.msra.mxu0 0
        %3949 = vmatprep.subr.bf16.mxu0 0
        %3950 = vmatpush1.bf16.msra.mxu0 0
        %3951 = vmatprep.subr.bf16.mxu0 0
        %3952 = vmatpush1.bf16.msra.mxu0 0
        %3953 = vmatprep.subr.bf16.mxu0 0
        %3954 = vmatpush1.bf16.msra.mxu0 0
        %3955 = vmatprep.subr.bf16.mxu0 0
        %3956 = vmatpush1.bf16.msra.mxu0 0
        %3957 = vmatprep.subr.bf16.mxu0 0
        %3958 = vmatpush1.bf16.msra.mxu0 0
        %3959 = vmatprep.subr.bf16.mxu0 0
        %3960 = vmatpush1.bf16.msra.mxu0 0
        %3961 = vmatprep.mubr.bf16.mxu0 0
        %3962 = vmatmul.mubr.bf16.gmra.mrb[0].mxu0 %v3058
        %v3963 = vpop.f32.mrb[0].mxu0
        %v3964 = vadd.f32 %v3899, %v3963
        %v3965 = vpop.f32.mrb[0].mxu0
        %v3966 = vpop.f32.mrb[0].mxu0
        %v3967 = vadd.f32 %v3902, %v3966
        %v3968 = vpop.f32.mrb[0].mxu0
        %3969 = vmatprep.mubr.bf16.mxu0 0
        %3970 = vmatmul.mubr.bf16.gmra.mrb[0].mxu0 %v3067
        %v3971 = vpop.f32.mrb[0].mxu0
        %v3972 = vadd.f32 %v3907, %v3971
        %v3973 = vpop.f32.mrb[0].mxu0
        %v3974 = vpop.f32.mrb[0].mxu0
        %v3975 = vadd.f32 %v3910, %v3974
        %v3976 = vpop.f32.mrb[0].mxu0
        %3977 = vmatprep.mubr.bf16.mxu0 0
        %3978 = vmatmul.mubr.bf16.gmra.mrb[0].mxu0 %v3076
        %v3979 = vpop.f32.mrb[0].mxu0
        %v3980 = vadd.f32 %v3915, %v3979
        %v3981 = vpop.f32.mrb[0].mxu0
        %v3982 = vpop.f32.mrb[0].mxu0
        %v3983 = vadd.f32 %v3918, %v3982
        %v3984 = vpop.f32.mrb[0].mxu0
        %3985 = vmatprep.mubr.bf16.mxu0 0
        %3986 = vmatmul.mubr.bf16.gmra.mrb[0].mxu0 %v3085
        %v3987 = vpop.f32.mrb[0].mxu0
        %v3988 = vadd.f32 %v3923, %v3987
        %v3989 = vpop.f32.mrb[0].mxu0
        %v3990 = vpop.f32.mrb[0].mxu0
        %v3991 = vadd.f32 %v3926, %v3990
        %v3992 = vpop.f32.mrb[0].mxu0
        %3993 = vdwg.mxu0
        %v3994 = vld [vmem:[%s554] sm:$0xf]
        %v3995 = vld [vmem:[%s554 + $0x8] sm:$0xf]
        %v3996 = vld [vmem:[%s554 + $0x10] sm:$0xf]
        %v3997 = vld [vmem:[%s554 + $0x18] sm:$0xf]
        %v3998 = vld [vmem:[%s554 + $0x20] sm:$0xf]
        %v3999 = vld [vmem:[%s554 + $0x28] sm:$0xf]
        %v4000 = vld [vmem:[%s554 + $0x30] sm:$0xf]
        %v4001 = vld [vmem:[%s554 + $0x38] sm:$0xf]
        %v4002 = vld [vmem:[%s5] sm:$0xf]
        %v4003 = vld [vmem:[%s5 + $0x4] sm:$0xf]
        %v4004 = vld [vmem:[%s5 + $0x8] sm:$0xf]
        %v4005 = vld [vmem:[%s5 + $0xc] sm:$0xf]
        %v4006 = vld [vmem:[%s5 + $0x10] sm:$0xf]
        %v4007 = vld [vmem:[%s5 + $0x14] sm:$0xf]
        %v4008 = vld [vmem:[%s5 + $0x18] sm:$0xf]
        %v4009 = vld [vmem:[%s5 + $0x1c] sm:$0xf]
        %v4010 = vld [vmem:[%s5 + $0x20] sm:$0xf]
        %v4011 = vld [vmem:[%s5 + $0x24] sm:$0xf]
        %v4012 = vld [vmem:[%s5 + $0x28] sm:$0xf]
        %v4013 = vld [vmem:[%s5 + $0x2c] sm:$0xf]
        %v4014 = vld [vmem:[%s5 + $0x30] sm:$0xf]
        %v4015 = vld [vmem:[%s5 + $0x34] sm:$0xf]
        %v4016 = vld [vmem:[%s5 + $0x38] sm:$0xf]
        %v4017 = vld [vmem:[%s5 + $0x3c] sm:$0xf]
        %v4018 = vld [vmem:[%s6] sm:$0x1]
        %v4020 = vlaneseq
        %v4021 = vshrl.u32 %v4020, 7
        %v4022 = vsub.s32 0, %v4021
        %v4023 = vrot.slane %v4018, %v4022
        %v4033 = vunpack.c.l.b16 %v3994
        %v4034 = vunpack.c.l.b16 %v3995
        %v4035 = vunpack.c.l.b16 %v3996
        %v4036 = vunpack.c.l.b16 %v3997
        %v4037 = vunpack.c.l.b16 %v3998
        %v4038 = vunpack.c.l.b16 %v3999
        %v4039 = vunpack.c.l.b16 %v4000
        %v4040 = vunpack.c.l.b16 %v4001
        %v4041 = vpack.c.b16 %v4034, %v4033
        %v4042 = vpack.c.b16 %v4036, %v4035
        %v4043 = vpack.c.b16 %v4038, %v4037
        %v4044 = vpack.c.b16 %v4040, %v4039
        %v4065 = vunpack.c.l.b16 %v4002
        %v4066 = vunpack.c.l.b16 %v4003
        %v4067 = vunpack.c.l.b16 %v4004
        %v4068 = vunpack.c.l.b16 %v4005
        %v4069 = vunpack.c.l.b16 %v4006
        %v4070 = vunpack.c.l.b16 %v4007
        %v4071 = vunpack.c.l.b16 %v4008
        %v4072 = vunpack.c.l.b16 %v4009
        %v4073 = vunpack.c.l.b16 %v4010
        %v4074 = vunpack.c.l.b16 %v4011
        %v4075 = vunpack.c.l.b16 %v4012
        %v4076 = vunpack.c.l.b16 %v4013
        %v4077 = vunpack.c.l.b16 %v4014
        %v4078 = vunpack.c.l.b16 %v4015
        %v4079 = vunpack.c.l.b16 %v4016
        %v4080 = vunpack.c.l.b16 %v4017
        %v4081 = vpack.c.b16 %v4066, %v4065
        %v4082 = vpack.c.b16 %v4068, %v4067
        %v4083 = vpack.c.b16 %v4070, %v4069
        %v4084 = vpack.c.b16 %v4072, %v4071
        %v4085 = vpack.c.b16 %v4074, %v4073
        %v4086 = vpack.c.b16 %v4076, %v4075
        %v4087 = vpack.c.b16 %v4078, %v4077
        %v4088 = vpack.c.b16 %v4080, %v4079
        %4097 = vmatprep.subr.bf16.mxu0 0
        %4098 = vmatpush1.bf16.msra.mxu0 %v4081
        %4099 = vmatprep.subr.bf16.mxu0 0
        %4100 = vmatpush1.bf16.msra.mxu0 %v4082
        %4101 = vmatprep.subr.bf16.mxu0 0
        %4102 = vmatpush1.bf16.msra.mxu0 %v4083
        %4103 = vmatprep.subr.bf16.mxu0 0
        %4104 = vmatpush1.bf16.msra.mxu0 %v4084
        %4105 = vmatprep.subr.bf16.mxu0 0
        %4106 = vmatpush1.bf16.msra.mxu0 %v4085
        %4107 = vmatprep.subr.bf16.mxu0 0
        %4108 = vmatpush1.bf16.msra.mxu0 %v4086
        %4109 = vmatprep.subr.bf16.mxu0 0
        %4110 = vmatpush1.bf16.msra.mxu0 %v4087
        %4111 = vmatprep.subr.bf16.mxu0 0
        %4112 = vmatpush1.bf16.msra.mxu0 %v4088
        %4113 = vmatprep.subr.bf16.mxu0 0
        %4114 = vmatpush1.bf16.msra.mxu0 0
        %4115 = vmatprep.subr.bf16.mxu0 0
        %4116 = vmatpush1.bf16.msra.mxu0 0
        %4117 = vmatprep.subr.bf16.mxu0 0
        %4118 = vmatpush1.bf16.msra.mxu0 0
        %4119 = vmatprep.subr.bf16.mxu0 0
        %4120 = vmatpush1.bf16.msra.mxu0 0
        %4121 = vmatprep.subr.bf16.mxu0 0
        %4122 = vmatpush1.bf16.msra.mxu0 0
        %4123 = vmatprep.subr.bf16.mxu0 0
        %4124 = vmatpush1.bf16.msra.mxu0 0
        %4125 = vmatprep.subr.bf16.mxu0 0
        %4126 = vmatpush1.bf16.msra.mxu0 0
        %4127 = vmatprep.subr.bf16.mxu0 0
        %4128 = vmatpush1.bf16.msra.mxu0 0
        %4129 = vmatprep.mubr.bf16.mxu0 0
        %4130 = vmatmul.mubr.bf16.gmra.mrb[0].mxu0 %v4041
        %v4131 = vpop.f32.mrb[0].mxu0
        %v4132 = vadd.f32 %v4023, %v4131
        %v4133 = vpop.f32.mrb[0].mxu0
        %v4134 = vpop.f32.mrb[0].mxu0
        %v4135 = vadd.f32 %v4023, %v4134
        %v4136 = vpop.f32.mrb[0].mxu0
        %4137 = vmatprep.mubr.bf16.mxu0 0
        %4138 = vmatmul.mubr.bf16.gmra.mrb[0].mxu0 %v4042
        %v4139 = vpop.f32.mrb[0].mxu0
        %v4140 = vadd.f32 %v4023, %v4139
        %v4141 = vpop.f32.mrb[0].mxu0
        %v4142 = vpop.f32.mrb[0].mxu0
        %v4143 = vadd.f32 %v4023, %v4142
        %v4144 = vpop.f32.mrb[0].mxu0
        %4145 = vmatprep.mubr.bf16.mxu0 0
        %4146 = vmatmul.mubr.bf16.gmra.mrb[0].mxu0 %v4043
        %v4147 = vpop.f32.mrb[0].mxu0
        %v4148 = vadd.f32 %v4023, %v4147
        %v4149 = vpop.f32.mrb[0].mxu0
        %v4150 = vpop.f32.mrb[0].mxu0
        %v4151 = vadd.f32 %v4023, %v4150
        %v4152 = vpop.f32.mrb[0].mxu0
        %4153 = vmatprep.mubr.bf16.mxu0 0
        %4154 = vmatmul.mubr.bf16.gmra.mrb[0].mxu0 %v4044
        %v4155 = vpop.f32.mrb[0].mxu0
        %v4156 = vadd.f32 %v4023, %v4155
        %v4157 = vpop.f32.mrb[0].mxu0
        %v4158 = vpop.f32.mrb[0].mxu0
        %v4159 = vadd.f32 %v4023, %v4158
        %v4160 = vpop.f32.mrb[0].mxu0
        %4161 = vdwg.mxu0
        %v4162 = vadd.f32 %v3964, %v4132
        %v4163 = vadd.f32 %v3967, %v4135
        %v4164 = vadd.f32 %v3972, %v4140
        %v4165 = vadd.f32 %v3975, %v4143
        %v4166 = vadd.f32 %v3980, %v4148
        %v4167 = vadd.f32 %v3983, %v4151
        %v4168 = vadd.f32 %v3988, %v4156
        %v4169 = vadd.f32 %v3991, %v4159
        %4170 = vst [vmem:[%s286] sm:$0xff] %v4162
        %4171 = vst [vmem:[%s286 + $0x8] sm:$0xff] %v4163
        %4172 = vst [vmem:[%s286 + $0x10] sm:$0xff] %v4164
        %4173 = vst [vmem:[%s286 + $0x18] sm:$0xff] %v4165
        %4174 = vst [vmem:[%s286 + $0x20] sm:$0xff] %v4166
        %4175 = vst [vmem:[%s286 + $0x28] sm:$0xff] %v4167
        %4176 = vst [vmem:[%s286 + $0x30] sm:$0xff] %v4168
        %4177 = vst [vmem:[%s286 + $0x38] sm:$0xff] %v4169
        %s4178 = sand.u32 %s182, 1
        %s4179 = scalar_lea.sflag [#allocation7], %s4178
        %s4180 = sand.u32 %s182, 1
        %s4181 = smul.addr %s4180, 64
        %s4182 = scalar_lea.vmem [#allocation8], %s4181
        // Predicated region
        $region53: #{tpu_custom_call.1} parent=47 // pred_check
          %p4183 = pneg %p192
        $region54: #{tpu_custom_call.1} parent=47 // pred_check_branch
          %4185 = sbr.rel (%p4183) target = $region56
        $region55: #{tpu_custom_call.1} parent=47 // pred_region
          %s4187 = ssub.s32 1024, 1024
          %4188 = vsyncadd %s4179, %s4187
          %s4189 = smul.addr %s22, 8
          %s4190 = smul.addr %s4189, 128
          %s4191 = scalar_lea.hbm %s7, %s4190
          %s4192 = sshll.u32 %s4182, 4
          %s4193 = int_to_ptr.vmem [resolvable:$true] %s4192
          %4198 = dma.vmem_to_hbm [thread:$0]  %s4193, 1024, %s4191, %s4179, 128, 128, 8
        $region56: #{tpu_custom_call.1} parent=47 // pred_fallthru
          _
      $region48: #{tpu_custom_call.1} parent=5 // pred_fallthru
        _
      %p4199 = scmp.le.s32.totalorder 2, %s17
      // Predicated region
      $region57: #{tpu_custom_call.1} parent=5 // pred_check
        %p4200 = pneg %p4199
      $region58: #{tpu_custom_call.1} parent=5 // pred_check_branch
        %4202 = sbr.rel (%p4200) target = $region60
      $region59: #{tpu_custom_call.1} parent=5 // pred_region
        %s4203 = ssub.s32 %s17, 2
        // Predicated region
        $region61: #{tpu_custom_call.1} parent=59 // pred_check
          %p4204 = pneg %p198
        $region62: #{tpu_custom_call.1} parent=59 // pred_check_branch
          %4206 = sbr.rel (%p4204) target = $region64
        $region63: #{tpu_custom_call.1} parent=59 // pred_region
          %s4207 = sand.u32 %s183, 1
          %s4208 = scalar_lea.sflag [#allocation7], %s4207
          %s4209 = sand.u32 %s183, 1
          %s4210 = smul.addr %s4209, 64
          %s4211 = scalar_lea.vmem [#allocation8], %s4210
          %4212 = dma.done %s4208, 1024
        $region64: #{tpu_custom_call.1} parent=59 // pred_fallthru
          _
      $region60: #{tpu_custom_call.1} parent=5 // pred_fallthru
        _
    $region6: #{tpu_custom_call.1} parent=1 // loop_footer
      %s21 = sadd.s32 1, %s17
    $region7: #{tpu_custom_call.1} parent=1 // loop_footer_branch
      %16 = sbr.rel target = $region3
    $region8: #{tpu_custom_call.1} parent=1 // loop_exit
      _
    %4213 = vsyncpa [#allocation6], 1
    %s4214 = scalar_lea.sflag [#allocation6], 1
    %4215 = vsyncpa %s4214, 1
    %4216 = vsyncpa [#allocation7], 1
    %s4217 = scalar_lea.sflag [#allocation7], 1
    %4218 = vsyncpa %s4217, 1

</llo_original>
